<compile_context>
chip_gen: v7x
topology: tpu7x:2x2x1
jax: 0.10.0
libtpu: 0.0.40
codegen_flags: <defaults>
</compile_context>

<pallas_src>
from functools import partial

import jax
import jax.numpy as jnp
from jax import lax
from jax.experimental import pallas as pl
from jax.experimental.pallas import tpu as pltpu

LANE = 128


def _round_up(x, m):
    return ((x + m - 1) // m) * m


# ----------------------------- Pallas kernels ------------------------------
def _pw_conv_bias_relu_kernel(x_ref, w_ref, b_ref, o_ref):
    # 1x1x1 conv == channel matmul (BN scale pre-folded into w) + bias + ReLU.
    y = jnp.dot(x_ref[...], w_ref[...], preferred_element_type=jnp.float32)
    o_ref[...] = jnp.maximum(y + b_ref[...], 0.0).astype(o_ref.dtype)


def _conv2_conv3_res_kernel(xm_ref, x0_ref, xp_ref, w2_ref, b2_ref,
                            w3_ref, b3_ref, res_ref, o_ref, *, H, W):
    # xm/x0/xp: (1, 1, P_pad, Cp) flattened padded planes at depths d, d+1, d+2
    # Build the 27 taps as row-shifted windows and contract them in a single
    # deep-K matmul (K = 27*Cp), then fuse conv3 + bias + residual + relu.
    W2 = W + 2
    HW2 = H * W2
    taps = []
    for xref in (xm_ref, x0_ref, xp_ref):            # kd = 0, 1, 2
        for kh in range(3):
            for kw in range(3):
                s = kh * W2 + kw
                taps.append(xref[0, 0, s:s + HW2, :])
    big = jnp.concatenate(taps, axis=-1)             # (HW2, 27*Cp) bf16
    h2 = jnp.dot(big, w2_ref[...], preferred_element_type=jnp.float32)
    h2 = jnp.maximum(h2 + b2_ref[...], 0.0)          # bn2 bias + relu
    y = jnp.dot(h2.astype(jnp.bfloat16), w3_ref[...],
                preferred_element_type=jnp.float32)
    y = y + b3_ref[...] + res_ref[0, 0]              # bn3 bias + residual
    o_ref[0, 0] = jnp.maximum(y, 0.0)


# ----------------------------- pallas_call wrappers -------------------------
def pw_conv_bias_relu(x2, w, b, *, tm=512):
    Mp, cin = x2.shape
    cout = w.shape[1]
    return pl.pallas_call(
        _pw_conv_bias_relu_kernel,
        out_shape=jax.ShapeDtypeStruct((Mp, cout), jnp.bfloat16),
        grid=(Mp // tm,),
        in_specs=[pl.BlockSpec((tm, cin), lambda i: (i, 0)),
                  pl.BlockSpec((cin, cout), lambda i: (0, 0)),
                  pl.BlockSpec((1, cout), lambda i: (0, 0))],
        out_specs=pl.BlockSpec((tm, cout), lambda i: (i, 0)),
        compiler_params=pltpu.CompilerParams(
            dimension_semantics=("parallel",),
            vmem_limit_bytes=48 * 1024 * 1024),
    )(x2, w, b)


def conv2_conv3_residual(h1_planes, w2, b2, w3, b3, res, *, H, W):
    N, Dp2, P_pad, Cp = h1_planes.shape
    D = Dp2 - 2
    HW2 = H * (W + 2)
    Coutp = w3.shape[1]
    kernel = partial(_conv2_conv3_res_kernel, H=H, W=W)
    tap_specs = [
        pl.BlockSpec((1, 1, P_pad, Cp),
                     (lambda n, d, kd=kd: (n, d + kd, 0, 0)))
        for kd in range(3)]
    return pl.pallas_call(
        kernel,
        out_shape=jax.ShapeDtypeStruct((N, D, HW2, Coutp), jnp.float32),
        grid=(N, D),
        in_specs=tap_specs + [
            pl.BlockSpec((w2.shape[0], Cp), lambda n, d: (0, 0)),
            pl.BlockSpec((1, Cp), lambda n, d: (0, 0)),
            pl.BlockSpec((Cp, Coutp), lambda n, d: (0, 0)),
            pl.BlockSpec((1, Coutp), lambda n, d: (0, 0)),
            pl.BlockSpec((1, 1, HW2, Coutp), lambda n, d: (n, d, 0, 0)),
        ],
        out_specs=pl.BlockSpec((1, 1, HW2, Coutp), lambda n, d: (n, d, 0, 0)),
        input_output_aliases={7: 0},   # residual buffer reused as output
        compiler_params=pltpu.CompilerParams(
            dimension_semantics=("parallel", "parallel"),
            vmem_limit_bytes=48 * 1024 * 1024),
    )(h1_planes, h1_planes, h1_planes, w2, b2, w3, b3, res)


# ----------------------------- Bottleneck forward ---------------------------
def bottleneck_forward(x_ncdhw, params, *, tm=512):
    """x_ncdhw: (N, C_in, D, H, W); stride=1, downsample=None path."""
    N, Cin, D, H, W = x_ncdhw.shape
    Cin_p, Cp = params["w1"].shape           # padded in / mid channels
    Coutp = params["w3"].shape[1]            # padded output channels
    cout = Cin                               # downsample=None => Cout == Cin

    xt = jnp.transpose(x_ncdhw, (0, 2, 3, 4, 1))                 # NDHWC, f32
    x_cp = jnp.pad(xt, ((0, 0),) * 4 + ((0, Cin_p - Cin),))

    # ---- stage 1: conv1 (1x1x1) + bn1 + relu -------------------------------
    M = N * D * H * W
    Mp = _round_up(M, tm)
    x2 = x_cp.reshape(M, Cin_p).astype(jnp.bfloat16)
    x2 = jnp.pad(x2, ((0, Mp - M), (0, 0)))
    h1 = pw_conv_bias_relu(x2, params["w1"], params["b1"], tm=tm)  # (Mp,Cp) bf16
    h1 = h1[:M].reshape(N, D, H, W, Cp)

    # ---- stage 2: conv2 (3x3x3) + bn2 + relu + conv3 + bn3 + res + relu ----
    # Zero-pad spatially (== Conv3d padding=1), flatten each (H+2, W+2) plane
    # so every tap is a contiguous row window, and pad the flat row axis so
    # all windows stay in bounds.  (2 of every W+2 output columns are garbage
    # and sliced off below; ~6-20% extra MXU work, zero extra HBM passes.)
    h1p = jnp.pad(h1, ((0, 0), (1, 1), (1, 1), (1, 1), (0, 0)))
    P = (H + 2) * (W + 2)
    HW2 = H * (W + 2)
    P_pad = _round_up(P + 2, 8)
    h1_planes = jnp.pad(h1p.reshape(N, D + 2, P, Cp),
                        ((0, 0), (0, 0), (0, P_pad - P), (0, 0)))

    # residual laid out in the same (H, W+2) row space, padded channels, f32
    res = jnp.pad(xt, ((0, 0), (0, 0), (0, 0), (0, 2), (0, Coutp - Cin)))
    res = res.reshape(N, D, HW2, Coutp).astype(jnp.float32)

    out = conv2_conv3_residual(h1_planes, params["w2"], params["b2"],
                               params["w3"], params["b3"], res, H=H, W=W)
    out = out.reshape(N, D, H, W + 2, Coutp)[:, :, :, :W, :cout]
    return jnp.transpose(out, (0, 4, 1, 2, 3))                    # NCDHW


# ----------------------------- params & reference ---------------------------
def init_params(key, in_planes, planes, expansion=4, eps=1e-5):
    ks = jax.random.split(key, 6)

    def bn(k, c):
        k1, k2, k3, k4 = jax.random.split(k, 4)
        gamma = 1.0 + 0.1 * jax.random.normal(k1, (c,), jnp.float32)
        beta = 0.1 * jax.random.normal(k2, (c,), jnp.float32)
        mean = 0.1 * jax.random.normal(k3, (c,), jnp.float32)
        var = jax.random.uniform(k4, (c,), jnp.float32, 0.5, 1.5)
        scale = gamma / jnp.sqrt(var + eps)
        bias = beta - mean * scale
        return scale, bias

    cout = planes * expansion
    w1 = 0.2 * jax.random.normal(ks[0], (in_planes, planes), jnp.float32)
    w2 = 0.2 * jax.random.normal(ks[1], (3, 3, 3, planes, planes), jnp.float32)
    w3 = 0.2 * jax.random.normal(ks[2], (planes, cout), jnp.float32)
    s1, b1 = bn(ks[3], planes)
    s2, b2 = bn(ks[4], planes)
    s3, b3 = bn(ks[5], cout)

    ref_params = dict(w1=w1, w2=w2, w3=w3, s1=s1, b1=b1, s2=s2, b2=b2,
                      s3=s3, b3=b3)

    # kernel params: fold BN scale into weights, pad channels to 128 lanes,
    # cast matmul operands to bf16 (f32 accumulation happens in-kernel).
    cin_p = _round_up(in_planes, LANE)
    cp = _round_up(planes, LANE)
    cout_p = _round_up(cout, LANE)

    w1f = jnp.zeros((cin_p, cp), jnp.float32)
    w1f = w1f.at[:in_planes, :planes].set(w1 * s1[None, :])
    w2f = jnp.zeros((3, 3, 3, cp, cp), jnp.float32)
    w2f = w2f.at[:, :, :, :planes, :planes].set(
        w2 * s2[None, None, None, None, :])
    w3f = jnp.zeros((cp, cout_p), jnp.float32)
    w3f = w3f.at[:planes, :cout].set(w3 * s3[None, :])

    b1p = jnp.zeros((1, cp), jnp.float32).at[0, :planes].set(b1)
    b2p = jnp.zeros((1, cp), jnp.float32).at[0, :planes].set(b2)
    b3p = jnp.zeros((1, cout_p), jnp.float32).at[0, :cout].set(b3)

    kparams = dict(w1=w1f.astype(jnp.bfloat16),
                   w2=w2f.reshape(27 * cp, cp).astype(jnp.bfloat16),
                   w3=w3f.astype(jnp.bfloat16),
                   b1=b1p, b2=b2p, b3=b3p)
    return kparams, ref_params


def ref_forward(x_ncdhw, rp):
    xt = jnp.transpose(x_ncdhw, (0, 2, 3, 4, 1))
    h = jnp.einsum("ndhwc,cf->ndhwf", xt, rp["w1"])
    h = jnp.maximum(h * rp["s1"] + rp["b1"], 0.0)
    h = lax.conv_general_dilated(h, rp["w2"], (1, 1, 1), [(1, 1)] * 3,
                                 dimension_numbers=("NDHWC", "DHWIO", "NDHWC"))
    h = jnp.maximum(h * rp["s2"] + rp["b2"], 0.0)
    h = jnp.einsum("ndhwc,cf->ndhwf", h, rp["w3"])
    h = jnp.maximum(h * rp["s3"] + rp["b3"] + xt, 0.0)
    return jnp.transpose(h, (0, 4, 1, 2, 3))


if __name__ == "__main__":
    key = jax.random.PRNGKey(0)
    kx, kp = jax.random.split(key)

    # in_planes == planes * expansion so downsample=None / stride=1 applies
    N, planes, expansion = 2, 4, 4
    in_planes = planes * expansion                      # 16
    D = H = W = 8

    x = jax.random.normal(kx, (N, in_planes, D, H, W), jnp.float32)
    kparams, rparams = init_params(kp, in_planes, planes, expansion)

    fwd = jax.jit(bottleneck_forward)
    out = jax.block_until_ready(fwd(x, kparams))

    assert out.shape == (N, planes * expansion, D, H, W)
    assert bool(jnp.all(jnp.isfinite(out)))

    ref = ref_forward(x, rparams)
    max_err = float(jnp.max(jnp.abs(out - ref)))
    rel_err = float(jnp.linalg.norm(out - ref) / jnp.linalg.norm(ref))
    # bf16 matmul operands (f32 accumulation) vs f32 reference -> loosened tol
    assert rel_err < 2e-2, f"relative error {rel_err}"
    assert jnp.allclose(out, ref, atol=5e-2, rtol=5e-2), f"max abs err {max_err}"

    print("KERNEL_OK")
</pallas_src>

<mosaic_0001>
module attributes {stable_mosaic.version = 11 : i64} {
  func.func @_pw_conv_bias_relu_kernel(%arg0: i32, %arg1: memref<512x128xbf16, #tpu.memory_space<vmem>>, %arg2: memref<128x128xbf16, #tpu.memory_space<vmem>>, %arg3: memref<1x128xf32, #tpu.memory_space<vmem>>, %arg4: memref<512x128xbf16, #tpu.memory_space<vmem>>) attributes {dimension_semantics = [#tpu.dimension_semantics<parallel>], iteration_bounds = array<i64: 2>, scalar_prefetch = 0 : i64, scratch_operands = 0 : i64, tpu.core_type = #tpu.core_type<tc>, window_params = [{transform_indices = @transform_0, window_bounds = array<i64: 512, 128>}, {pipeline_mode = #tpu.pipeline_mode<synchronous>, transform_indices = @transform_1, window_bounds = array<i64: 128, 128>}, {pipeline_mode = #tpu.pipeline_mode<synchronous>, transform_indices = @transform_2, window_bounds = array<i64: 1, 128>}, {transform_indices = @transform_3, window_bounds = array<i64: 512, 128>}]} {
    %c0 = arith.constant 0 : index
    %c0_0 = arith.constant 0 : index
    %0 = vector.load %arg1[%c0, %c0_0] : memref<512x128xbf16, #tpu.memory_space<vmem>>, vector<512x128xbf16>
    %c0_1 = arith.constant 0 : index
    %c0_2 = arith.constant 0 : index
    %1 = vector.load %arg2[%c0_1, %c0_2] : memref<128x128xbf16, #tpu.memory_space<vmem>>, vector<128x128xbf16>
    %cst = arith.constant dense<0.000000e+00> : vector<512x128xf32>
    %2 = tpu.matmul %0, %1, %cst {dimension_numbers = #tpu.dot_dimension_numbers<[1], [0], [0], [1], [0, 0, 1, 1], [], []>} : vector<512x128xbf16>, vector<128x128xbf16>, vector<512x128xf32> -> vector<512x128xf32>
    %c0_3 = arith.constant 0 : index
    %c0_4 = arith.constant 0 : index
    %3 = vector.load %arg3[%c0_3, %c0_4] : memref<1x128xf32, #tpu.memory_space<vmem>>, vector<1x128xf32>
    %4 = vector.broadcast %3 : vector<1x128xf32> to vector<512x128xf32>
    %5 = arith.addf %2, %4 : vector<512x128xf32>
    %cst_5 = arith.constant 0.000000e+00 : f32
    %6 = vector.broadcast %cst_5 : f32 to vector<512x128xf32>
    %7 = arith.maximumf %5, %6 : vector<512x128xf32>
    %8 = arith.truncf %7 : vector<512x128xf32> to vector<512x128xbf16>
    %c0_6 = arith.constant 0 : index
    %c0_7 = arith.constant 0 : index
    %9 = vector.load %arg4[%c0_6, %c0_7] : memref<512x128xbf16, #tpu.memory_space<vmem>>, vector<512x128xbf16>
    tpu.vector_store %arg4[%c0_6, %c0_7], %8 {strides = array<i32>} : memref<512x128xbf16, #tpu.memory_space<vmem>>, vector<512x128xbf16>,
    return
  }
  func.func @transform_0(%arg0: i32) -> (i32, i32) {
    %c0_i32 = arith.constant 0 : i32
    %c0_i32_0 = arith.constant 0 : i32
    return %arg0, %c0_i32 : i32, i32
  }
  func.func @transform_1(%arg0: i32) -> (i32, i32) {
    %c0_i32 = arith.constant 0 : i32
    %c0_i32_0 = arith.constant 0 : i32
    %c0_i32_1 = arith.constant 0 : i32
    return %c0_i32, %c0_i32_0 : i32, i32
  }
  func.func @transform_2(%arg0: i32) -> (i32, i32) {
    %c0_i32 = arith.constant 0 : i32
    %c0_i32_0 = arith.constant 0 : i32
    %c0_i32_1 = arith.constant 0 : i32
    return %c0_i32, %c0_i32_0 : i32, i32
  }
  func.func @transform_3(%arg0: i32) -> (i32, i32) {
    %c0_i32 = arith.constant 0 : i32
    %c0_i32_0 = arith.constant 0 : i32
    return %arg0, %c0_i32 : i32, i32
  }
}

module attributes {stable_mosaic.version = 11 : i64} {
  func.func @_conv2_conv3_res_kernel(%arg0: i32, %arg1: i32, %arg2: memref<1x1x104x128xbf16, #tpu.memory_space<vmem>>, %arg3: memref<1x1x104x128xbf16, #tpu.memory_space<vmem>>, %arg4: memref<1x1x104x128xbf16, #tpu.memory_space<vmem>>, %arg5: memref<3456x128xbf16, #tpu.memory_space<vmem>>, %arg6: memref<1x128xf32, #tpu.memory_space<vmem>>, %arg7: memref<128x128xbf16, #tpu.memory_space<vmem>>, %arg8: memref<1x128xf32, #tpu.memory_space<vmem>>, %arg9: memref<1x1x80x128xf32, #tpu.memory_space<vmem>>, %arg10: memref<1x1x80x128xf32, #tpu.memory_space<vmem>>) attributes {dimension_semantics = [#tpu.dimension_semantics<parallel>, #tpu.dimension_semantics<parallel>], iteration_bounds = array<i64: 2, 8>, scalar_prefetch = 0 : i64, scratch_operands = 0 : i64, tpu.core_type = #tpu.core_type<tc>, window_params = [{transform_indices = @transform_0, window_bounds = array<i64: 1, 1, 104, 128>}, {transform_indices = @transform_1, window_bounds = array<i64: 1, 1, 104, 128>}, {transform_indices = @transform_2, window_bounds = array<i64: 1, 1, 104, 128>}, {pipeline_mode = #tpu.pipeline_mode<synchronous>, transform_indices = @transform_3, window_bounds = array<i64: 3456, 128>}, {pipeline_mode = #tpu.pipeline_mode<synchronous>, transform_indices = @transform_4, window_bounds = array<i64: 1, 128>}, {pipeline_mode = #tpu.pipeline_mode<synchronous>, transform_indices = @transform_5, window_bounds = array<i64: 128, 128>}, {pipeline_mode = #tpu.pipeline_mode<synchronous>, transform_indices = @transform_6, window_bounds = array<i64: 1, 128>}, {transform_indices = @transform_7, window_bounds = array<i64: 1, 1, 80, 128>}, {transform_indices = @transform_8, window_bounds = array<i64: 1, 1, 80, 128>}]} {
    %c0 = arith.constant 0 : index
    %c0_0 = arith.constant 0 : index
    %c0_1 = arith.constant 0 : index
    %c0_2 = arith.constant 0 : index
    %0 = vector.load %arg2[%c0, %c0_0, %c0_1, %c0_2] : memref<1x1x104x128xbf16, #tpu.memory_space<vmem>>, vector<1x1x80x128xbf16>
    %1 = vector.shape_cast %0 : vector<1x1x80x128xbf16> to vector<80x128xbf16>
    %c0_3 = arith.constant 0 : index
    %c0_4 = arith.constant 0 : index
    %c1 = arith.constant 1 : index
    %c0_5 = arith.constant 0 : index
    %2 = vector.load %arg2[%c0_3, %c0_4, %c1, %c0_5] : memref<1x1x104x128xbf16, #tpu.memory_space<vmem>>, vector<1x1x80x128xbf16>
    %3 = vector.shape_cast %2 : vector<1x1x80x128xbf16> to vector<80x128xbf16>
    %c0_6 = arith.constant 0 : index
    %c0_7 = arith.constant 0 : index
    %c2 = arith.constant 2 : index
    %c0_8 = arith.constant 0 : index
    %4 = vector.load %arg2[%c0_6, %c0_7, %c2, %c0_8] : memref<1x1x104x128xbf16, #tpu.memory_space<vmem>>, vector<1x1x80x128xbf16>
    %5 = vector.shape_cast %4 : vector<1x1x80x128xbf16> to vector<80x128xbf16>
    %c0_9 = arith.constant 0 : index
    %c0_10 = arith.constant 0 : index
    %c10 = arith.constant 10 : index
    %c0_11 = arith.constant 0 : index
    %6 = vector.load %arg2[%c0_9, %c0_10, %c10, %c0_11] : memref<1x1x104x128xbf16, #tpu.memory_space<vmem>>, vector<1x1x80x128xbf16>
    %7 = vector.shape_cast %6 : vector<1x1x80x128xbf16> to vector<80x128xbf16>
    %c0_12 = arith.constant 0 : index
    %c0_13 = arith.constant 0 : index
    %c11 = arith.constant 11 : index
    %c0_14 = arith.constant 0 : index
    %8 = vector.load %arg2[%c0_12, %c0_13, %c11, %c0_14] : memref<1x1x104x128xbf16, #tpu.memory_space<vmem>>, vector<1x1x80x128xbf16>
    %9 = vector.shape_cast %8 : vector<1x1x80x128xbf16> to vector<80x128xbf16>
    %c0_15 = arith.constant 0 : index
    %c0_16 = arith.constant 0 : index
    %c12 = arith.constant 12 : index
    %c0_17 = arith.constant 0 : index
    %10 = vector.load %arg2[%c0_15, %c0_16, %c12, %c0_17] : memref<1x1x104x128xbf16, #tpu.memory_space<vmem>>, vector<1x1x80x128xbf16>
    %11 = vector.shape_cast %10 : vector<1x1x80x128xbf16> to vector<80x128xbf16>
    %c0_18 = arith.constant 0 : index
    %c0_19 = arith.constant 0 : index
    %c20 = arith.constant 20 : index
    %c0_20 = arith.constant 0 : index
    %12 = vector.load %arg2[%c0_18, %c0_19, %c20, %c0_20] : memref<1x1x104x128xbf16, #tpu.memory_space<vmem>>, vector<1x1x80x128xbf16>
    %13 = vector.shape_cast %12 : vector<1x1x80x128xbf16> to vector<80x128xbf16>
    %c0_21 = arith.constant 0 : index
    %c0_22 = arith.constant 0 : index
    %c21 = arith.constant 21 : index
    %c0_23 = arith.constant 0 : index
    %14 = vector.load %arg2[%c0_21, %c0_22, %c21, %c0_23] : memref<1x1x104x128xbf16, #tpu.memory_space<vmem>>, vector<1x1x80x128xbf16>
    %15 = vector.shape_cast %14 : vector<1x1x80x128xbf16> to vector<80x128xbf16>
    %c0_24 = arith.constant 0 : index
    %c0_25 = arith.constant 0 : index
    %c22 = arith.constant 22 : index
    %c0_26 = arith.constant 0 : index
    %16 = vector.load %arg2[%c0_24, %c0_25, %c22, %c0_26] : memref<1x1x104x128xbf16, #tpu.memory_space<vmem>>, vector<1x1x80x128xbf16>
    %17 = vector.shape_cast %16 : vector<1x1x80x128xbf16> to vector<80x128xbf16>
    %c0_27 = arith.constant 0 : index
    %c0_28 = arith.constant 0 : index
    %c0_29 = arith.constant 0 : index
    %c0_30 = arith.constant 0 : index
    %18 = vector.load %arg3[%c0_27, %c0_28, %c0_29, %c0_30] : memref<1x1x104x128xbf16, #tpu.memory_space<vmem>>, vector<1x1x80x128xbf16>
    %19 = vector.shape_cast %18 : vector<1x1x80x128xbf16> to vector<80x128xbf16>
    %c0_31 = arith.constant 0 : index
    %c0_32 = arith.constant 0 : index
    %c1_33 = arith.constant 1 : index
    %c0_34 = arith.constant 0 : index
    %20 = vector.load %arg3[%c0_31, %c0_32, %c1_33, %c0_34] : memref<1x1x104x128xbf16, #tpu.memory_space<vmem>>, vector<1x1x80x128xbf16>
    %21 = vector.shape_cast %20 : vector<1x1x80x128xbf16> to vector<80x128xbf16>
    %c0_35 = arith.constant 0 : index
    %c0_36 = arith.constant 0 : index
    %c2_37 = arith.constant 2 : index
    %c0_38 = arith.constant 0 : index
    %22 = vector.load %arg3[%c0_35, %c0_36, %c2_37, %c0_38] : memref<1x1x104x128xbf16, #tpu.memory_space<vmem>>, vector<1x1x80x128xbf16>
    %23 = vector.shape_cast %22 : vector<1x1x80x128xbf16> to vector<80x128xbf16>
    %c0_39 = arith.constant 0 : index
    %c0_40 = arith.constant 0 : index
    %c10_41 = arith.constant 10 : index
    %c0_42 = arith.constant 0 : index
    %24 = vector.load %arg3[%c0_39, %c0_40, %c10_41, %c0_42] : memref<1x1x104x128xbf16, #tpu.memory_space<vmem>>, vector<1x1x80x128xbf16>
    %25 = vector.shape_cast %24 : vector<1x1x80x128xbf16> to vector<80x128xbf16>
    %c0_43 = arith.constant 0 : index
    %c0_44 = arith.constant 0 : index
    %c11_45 = arith.constant 11 : index
    %c0_46 = arith.constant 0 : index
    %26 = vector.load %arg3[%c0_43, %c0_44, %c11_45, %c0_46] : memref<1x1x104x128xbf16, #tpu.memory_space<vmem>>, vector<1x1x80x128xbf16>
    %27 = vector.shape_cast %26 : vector<1x1x80x128xbf16> to vector<80x128xbf16>
    %c0_47 = arith.constant 0 : index
    %c0_48 = arith.constant 0 : index
    %c12_49 = arith.constant 12 : index
    %c0_50 = arith.constant 0 : index
    %28 = vector.load %arg3[%c0_47, %c0_48, %c12_49, %c0_50] : memref<1x1x104x128xbf16, #tpu.memory_space<vmem>>, vector<1x1x80x128xbf16>
    %29 = vector.shape_cast %28 : vector<1x1x80x128xbf16> to vector<80x128xbf16>
    %c0_51 = arith.constant 0 : index
    %c0_52 = arith.constant 0 : index
    %c20_53 = arith.constant 20 : index
    %c0_54 = arith.constant 0 : index
    %30 = vector.load %arg3[%c0_51, %c0_52, %c20_53, %c0_54] : memref<1x1x104x128xbf16, #tpu.memory_space<vmem>>, vector<1x1x80x128xbf16>
    %31 = vector.shape_cast %30 : vector<1x1x80x128xbf16> to vector<80x128xbf16>
    %c0_55 = arith.constant 0 : index
    %c0_56 = arith.constant 0 : index
    %c21_57 = arith.constant 21 : index
    %c0_58 = arith.constant 0 : index
    %32 = vector.load %arg3[%c0_55, %c0_56, %c21_57, %c0_58] : memref<1x1x104x128xbf16, #tpu.memory_space<vmem>>, vector<1x1x80x128xbf16>
    %33 = vector.shape_cast %32 : vector<1x1x80x128xbf16> to vector<80x128xbf16>
    %c0_59 = arith.constant 0 : index
    %c0_60 = arith.constant 0 : index
    %c22_61 = arith.constant 22 : index
    %c0_62 = arith.constant 0 : index
    %34 = vector.load %arg3[%c0_59, %c0_60, %c22_61, %c0_62] : memref<1x1x104x128xbf16, #tpu.memory_space<vmem>>, vector<1x1x80x128xbf16>
    %35 = vector.shape_cast %34 : vector<1x1x80x128xbf16> to vector<80x128xbf16>
    %c0_63 = arith.constant 0 : index
    %c0_64 = arith.constant 0 : index
    %c0_65 = arith.constant 0 : index
    %c0_66 = arith.constant 0 : index
    %36 = vector.load %arg4[%c0_63, %c0_64, %c0_65, %c0_66] : memref<1x1x104x128xbf16, #tpu.memory_space<vmem>>, vector<1x1x80x128xbf16>
    %37 = vector.shape_cast %36 : vector<1x1x80x128xbf16> to vector<80x128xbf16>
    %c0_67 = arith.constant 0 : index
    %c0_68 = arith.constant 0 : index
    %c1_69 = arith.constant 1 : index
    %c0_70 = arith.constant 0 : index
    %38 = vector.load %arg4[%c0_67, %c0_68, %c1_69, %c0_70] : memref<1x1x104x128xbf16, #tpu.memory_space<vmem>>, vector<1x1x80x128xbf16>
    %39 = vector.shape_cast %38 : vector<1x1x80x128xbf16> to vector<80x128xbf16>
    %c0_71 = arith.constant 0 : index
    %c0_72 = arith.constant 0 : index
    %c2_73 = arith.constant 2 : index
    %c0_74 = arith.constant 0 : index
    %40 = vector.load %arg4[%c0_71, %c0_72, %c2_73, %c0_74] : memref<1x1x104x128xbf16, #tpu.memory_space<vmem>>, vector<1x1x80x128xbf16>
    %41 = vector.shape_cast %40 : vector<1x1x80x128xbf16> to vector<80x128xbf16>
    %c0_75 = arith.constant 0 : index
    %c0_76 = arith.constant 0 : index
    %c10_77 = arith.constant 10 : index
    %c0_78 = arith.constant 0 : index
    %42 = vector.load %arg4[%c0_75, %c0_76, %c10_77, %c0_78] : memref<1x1x104x128xbf16, #tpu.memory_space<vmem>>, vector<1x1x80x128xbf16>
    %43 = vector.shape_cast %42 : vector<1x1x80x128xbf16> to vector<80x128xbf16>
    %c0_79 = arith.constant 0 : index
    %c0_80 = arith.constant 0 : index
    %c11_81 = arith.constant 11 : index
    %c0_82 = arith.constant 0 : index
    %44 = vector.load %arg4[%c0_79, %c0_80, %c11_81, %c0_82] : memref<1x1x104x128xbf16, #tpu.memory_space<vmem>>, vector<1x1x80x128xbf16>
    %45 = vector.shape_cast %44 : vector<1x1x80x128xbf16> to vector<80x128xbf16>
    %c0_83 = arith.constant 0 : index
    %c0_84 = arith.constant 0 : index
    %c12_85 = arith.constant 12 : index
    %c0_86 = arith.constant 0 : index
    %46 = vector.load %arg4[%c0_83, %c0_84, %c12_85, %c0_86] : memref<1x1x104x128xbf16, #tpu.memory_space<vmem>>, vector<1x1x80x128xbf16>
    %47 = vector.shape_cast %46 : vector<1x1x80x128xbf16> to vector<80x128xbf16>
    %c0_87 = arith.constant 0 : index
    %c0_88 = arith.constant 0 : index
    %c20_89 = arith.constant 20 : index
    %c0_90 = arith.constant 0 : index
    %48 = vector.load %arg4[%c0_87, %c0_88, %c20_89, %c0_90] : memref<1x1x104x128xbf16, #tpu.memory_space<vmem>>, vector<1x1x80x128xbf16>
    %49 = vector.shape_cast %48 : vector<1x1x80x128xbf16> to vector<80x128xbf16>
    %c0_91 = arith.constant 0 : index
    %c0_92 = arith.constant 0 : index
    %c21_93 = arith.constant 21 : index
    %c0_94 = arith.constant 0 : index
    %50 = vector.load %arg4[%c0_91, %c0_92, %c21_93, %c0_94] : memref<1x1x104x128xbf16, #tpu.memory_space<vmem>>, vector<1x1x80x128xbf16>
    %51 = vector.shape_cast %50 : vector<1x1x80x128xbf16> to vector<80x128xbf16>
    %c0_95 = arith.constant 0 : index
    %c0_96 = arith.constant 0 : index
    %c22_97 = arith.constant 22 : index
    %c0_98 = arith.constant 0 : index
    %52 = vector.load %arg4[%c0_95, %c0_96, %c22_97, %c0_98] : memref<1x1x104x128xbf16, #tpu.memory_space<vmem>>, vector<1x1x80x128xbf16>
    %53 = vector.shape_cast %52 : vector<1x1x80x128xbf16> to vector<80x128xbf16>
    %54 = tpu.concatenate %1, %3, %5, %7, %9, %11, %13, %15, %17, %19, %21, %23, %25, %27, %29, %31 in 1 : vector<80x128xbf16>, vector<80x128xbf16>, vector<80x128xbf16>, vector<80x128xbf16>, vector<80x128xbf16>, vector<80x128xbf16>, vector<80x128xbf16>, vector<80x128xbf16>, vector<80x128xbf16>, vector<80x128xbf16>, vector<80x128xbf16>, vector<80x128xbf16>, vector<80x128xbf16>, vector<80x128xbf16>, vector<80x128xbf16>, vector<80x128xbf16> -> vector<80x2048xbf16>
    %55 = tpu.concatenate %33, %35, %37, %39, %41, %43, %45, %47, %49, %51, %53 in 1 : vector<80x128xbf16>, vector<80x128xbf16>, vector<80x128xbf16>, vector<80x128xbf16>, vector<80x128xbf16>, vector<80x128xbf16>, vector<80x128xbf16>, vector<80x128xbf16>, vector<80x128xbf16>, vector<80x128xbf16>, vector<80x128xbf16> -> vector<80x1408xbf16>
    %56 = tpu.concatenate %54, %55 in 1 : vector<80x2048xbf16>, vector<80x1408xbf16> -> vector<80x3456xbf16>
    %c0_99 = arith.constant 0 : index
    %c0_100 = arith.constant 0 : index
    %57 = vector.load %arg5[%c0_99, %c0_100] : memref<3456x128xbf16, #tpu.memory_space<vmem>>, vector<3456x128xbf16>
    %cst = arith.constant dense<0.000000e+00> : vector<80x128xf32>
    %58 = tpu.matmul %56, %57, %cst {dimension_numbers = #tpu.dot_dimension_numbers<[1], [0], [0], [1], [0, 0, 1, 1], [], []>} : vector<80x3456xbf16>, vector<3456x128xbf16>, vector<80x128xf32> -> vector<80x128xf32>
    %c0_101 = arith.constant 0 : index
    %c0_102 = arith.constant 0 : index
    %59 = vector.load %arg6[%c0_101, %c0_102] : memref<1x128xf32, #tpu.memory_space<vmem>>, vector<1x128xf32>
    %60 = vector.broadcast %59 : vector<1x128xf32> to vector<80x128xf32>
    %61 = arith.addf %58, %60 : vector<80x128xf32>
    %cst_103 = arith.constant 0.000000e+00 : f32
    %62 = vector.broadcast %cst_103 : f32 to vector<80x128xf32>
    %63 = arith.maximumf %61, %62 : vector<80x128xf32>
    %64 = arith.truncf %63 : vector<80x128xf32> to vector<80x128xbf16>
    %c0_104 = arith.constant 0 : index
    %c0_105 = arith.constant 0 : index
    %65 = vector.load %arg7[%c0_104, %c0_105] : memref<128x128xbf16, #tpu.memory_space<vmem>>, vector<128x128xbf16>
    %cst_106 = arith.constant dense<0.000000e+00> : vector<80x128xf32>
    %66 = tpu.matmul %64, %65, %cst_106 {dimension_numbers = #tpu.dot_dimension_numbers<[1], [0], [0], [1], [0, 0, 1, 1], [], []>} : vector<80x128xbf16>, vector<128x128xbf16>, vector<80x128xf32> -> vector<80x128xf32>
    %c0_107 = arith.constant 0 : index
    %c0_108 = arith.constant 0 : index
    %67 = vector.load %arg8[%c0_107, %c0_108] : memref<1x128xf32, #tpu.memory_space<vmem>>, vector<1x128xf32>
    %68 = vector.broadcast %67 : vector<1x128xf32> to vector<80x128xf32>
    %69 = arith.addf %66, %68 : vector<80x128xf32>
    %c0_109 = arith.constant 0 : index
    %c0_110 = arith.constant 0 : index
    %c0_111 = arith.constant 0 : index
    %c0_112 = arith.constant 0 : index
    %70 = vector.load %arg9[%c0_109, %c0_110, %c0_111, %c0_112] : memref<1x1x80x128xf32, #tpu.memory_space<vmem>>, vector<1x1x80x128xf32>
    %71 = vector.shape_cast %70 : vector<1x1x80x128xf32> to vector<80x128xf32>
    %72 = arith.addf %69, %71 : vector<80x128xf32>
    %cst_113 = arith.constant 0.000000e+00 : f32
    %73 = vector.broadcast %cst_113 : f32 to vector<80x128xf32>
    %74 = arith.maximumf %72, %73 : vector<80x128xf32>
    %c0_114 = arith.constant 0 : index
    %c0_115 = arith.constant 0 : index
    %c0_116 = arith.constant 0 : index
    %c0_117 = arith.constant 0 : index
    %75 = vector.load %arg10[%c0_114, %c0_115, %c0_116, %c0_117] : memref<1x1x80x128xf32, #tpu.memory_space<vmem>>, vector<1x1x80x128xf32>
    %76 = vector.shape_cast %75 : vector<1x1x80x128xf32> to vector<80x128xf32>
    %77 = vector.shape_cast %74 : vector<80x128xf32> to vector<1x1x80x128xf32>
    tpu.vector_store %arg10[%c0_114, %c0_115, %c0_116, %c0_117], %77 {strides = array<i32>} : memref<1x1x80x128xf32, #tpu.memory_space<vmem>>, vector<1x1x80x128xf32>,
    return
  }
  func.func @transform_0(%arg0: i32, %arg1: i32) -> (i32, i32, i32, i32) {
    %c0_i32 = arith.constant 0 : i32
    %0 = arith.addi %arg1, %c0_i32 : i32
    %c0_i32_0 = arith.constant 0 : i32
    %c0_i32_1 = arith.constant 0 : i32
    %c0_i32_2 = arith.constant 0 : i32
    return %arg0, %0, %c0_i32_0, %c0_i32_1 : i32, i32, i32, i32
  }
  func.func @transform_1(%arg0: i32, %arg1: i32) -> (i32, i32, i32, i32) {
    %c1_i32 = arith.constant 1 : i32
    %0 = arith.addi %arg1, %c1_i32 : i32
    %c0_i32 = arith.constant 0 : i32
    %c0_i32_0 = arith.constant 0 : i32
    %c0_i32_1 = arith.constant 0 : i32
    return %arg0, %0, %c0_i32, %c0_i32_0 : i32, i32, i32, i32
  }
  func.func @transform_2(%arg0: i32, %arg1: i32) -> (i32, i32, i32, i32) {
    %c2_i32 = arith.constant 2 : i32
    %0 = arith.addi %arg1, %c2_i32 : i32
    %c0_i32 = arith.constant 0 : i32
    %c0_i32_0 = arith.constant 0 : i32
    %c0_i32_1 = arith.constant 0 : i32
    return %arg0, %0, %c0_i32, %c0_i32_0 : i32, i32, i32, i32
  }
  func.func @transform_3(%arg0: i32, %arg1: i32) -> (i32, i32) {
    %c0_i32 = arith.constant 0 : i32
    %c0_i32_0 = arith.constant 0 : i32
    %c0_i32_1 = arith.constant 0 : i32
    return %c0_i32, %c0_i32_0 : i32, i32
  }
  func.func @transform_4(%arg0: i32, %arg1: i32) -> (i32, i32) {
    %c0_i32 = arith.constant 0 : i32
    %c0_i32_0 = arith.constant 0 : i32
    %c0_i32_1 = arith.constant 0 : i32
    return %c0_i32, %c0_i32_0 : i32, i32
  }
  func.func @transform_5(%arg0: i32, %arg1: i32) -> (i32, i32) {
    %c0_i32 = arith.constant 0 : i32
    %c0_i32_0 = arith.constant 0 : i32
    %c0_i32_1 = arith.constant 0 : i32
    return %c0_i32, %c0_i32_0 : i32, i32
  }
  func.func @transform_6(%arg0: i32, %arg1: i32) -> (i32, i32) {
    %c0_i32 = arith.constant 0 : i32
    %c0_i32_0 = arith.constant 0 : i32
    %c0_i32_1 = arith.constant 0 : i32
    return %c0_i32, %c0_i32_0 : i32, i32
  }
  func.func @transform_7(%arg0: i32, %arg1: i32) -> (i32, i32, i32, i32) {
    %c0_i32 = arith.constant 0 : i32
    %c0_i32_0 = arith.constant 0 : i32
    %c0_i32_1 = arith.constant 0 : i32
    return %arg0, %arg1, %c0_i32, %c0_i32_0 : i32, i32, i32, i32
  }
  func.func @transform_8(%arg0: i32, %arg1: i32) -> (i32, i32, i32, i32) {
    %c0_i32 = arith.constant 0 : i32
    %c0_i32_0 = arith.constant 0 : i32
    %c0_i32_1 = arith.constant 0 : i32
    return %arg0, %arg1, %c0_i32, %c0_i32_0 : i32, i32, i32, i32
  }
}

</mosaic_0001>

<llo_original>
// kernel: bottleneck_forward.2
$region0: #{bottleneck_forward.2}
  #allocation0 [shape = 'u32[]', space=smem, size = 0x4, offset = 0x4, fixed_abs, tag = 'smem constant byte address 0x4 - core index']
  #allocation1 [shape = 'u32[144,128]{1,0:T(1,128)}', space=vmem, size = 0x12000, scoped, tag = 'internal scratch']
  %s0 = inlined_call_operand.vmem [shape: bf16[1024,128], index: 0, kind: input, shape index: {}]
  %s1 = inlined_call_operand.vmem [shape: bf16[128,128], index: 1, kind: input, shape index: {}]
  %s2 = inlined_call_operand.vmem [shape: f32[1,128], index: 2, kind: input, shape index: {}]
  %s3 = inlined_call_operand.vmem [shape: bf16[1024,128], index: 3, kind: output, shape index: {}]
  %s4 = sld [smem:[#allocation0]]
  $region45: #{bottleneck_forward.2} parent=0
    _
  %s6 = ssub.s32 1, %s4
  %s7 = scalar_select 0, %s6, %s4
  loop: start=0, step=1, limit=4
  $region2: #{bottleneck_forward.2} parent=0 // loop_pre_header
    _
  $region3: #{bottleneck_forward.2} parent=0 // loop_header
    %s9 = sphi 0, %s13
    %p10 = scmp.ge.s32.totalorder %s9, 4
    %s19 = sphi 0, %s21
    %s22 = sphi 0, %s19
    %s23 = sphi 0, %s22
    %s39 = sphi 0, %s23
    %s43 = sphi 0, %s43
    %s45 = sphi 0, %s43
    %s46 = sphi 0, %s45
    %s60 = sphi 0, %s46
    %s64 = sphi 0, %s64
    %s66 = sphi 0, %s64
    %s67 = sphi 0, %s66
    %s81 = sphi 0, %s67
    %s87 = sphi 0, %s89
    %s90 = sphi 0, %s87
    %s91 = sphi 0, %s90
    %s107 = sphi 0, %s91
  $region4: #{bottleneck_forward.2} parent=0 // loop_header_branch
    %12 = sbr.rel (%p10) target = $region8
  $region5: #{bottleneck_forward.2} parent=0 // loop_body
    %s14 = ssub.s32 %s9, 1
    %s15 = ssub.s32 %s9, 2
    %s16 = sadd.s32 %s9, 1
    %s17 = ssub.s32 %s9, %s16
    %p18 = scmp.eq.s32.totalorder %s17, 0
    %s20 = sadd.s32 %s19, 1
    %s21 = scalar_select %p18, %s19, %s20
    %p24 = pneg %p18
    %p25 = scmp.eq.s32.totalorder %s9, 1
    %p26 = por %p24, %p25
    %p27 = scmp.ne.s32.totalorder %s19, %s22
    %p28 = scmp.eq.s32.totalorder %s9, 0
    %p29 = por %p27, %p28
    %p30 = scmp.ne.s32.totalorder %s19, %s22
    %p31 = scmp.eq.s32.totalorder %s14, 1
    %p32 = por %p30, %p31
    %p33 = scmp.ne.s32.totalorder %s22, %s23
    %p34 = scmp.eq.s32.totalorder %s14, 0
    %p35 = por %p33, %p34
    %p36 = scmp.ne.s32.totalorder %s22, %s23
    %p37 = scmp.eq.s32.totalorder %s15, 1
    %p38 = por %p36, %p37
    %p40 = scmp.ne.s32.totalorder %s23, %s39
    %p41 = scmp.eq.s32.totalorder %s15, 0
    %p42 = por %p40, %p41
    %s44 = sadd.s32 %s43, 1
    %p47 = scmp.eq.s32.totalorder %s9, 1
    %p48 = scmp.ne.s32.totalorder %s43, %s45
    %p49 = scmp.eq.s32.totalorder %s9, 0
    %p50 = por %p48, %p49
    %p51 = scmp.ne.s32.totalorder %s43, %s45
    %p52 = scmp.eq.s32.totalorder %s14, 1
    %p53 = por %p51, %p52
    %p54 = scmp.ne.s32.totalorder %s45, %s46
    %p55 = scmp.eq.s32.totalorder %s14, 0
    %p56 = por %p54, %p55
    %p57 = scmp.ne.s32.totalorder %s45, %s46
    %p58 = scmp.eq.s32.totalorder %s15, 1
    %p59 = por %p57, %p58
    %p61 = scmp.ne.s32.totalorder %s46, %s60
    %p62 = scmp.eq.s32.totalorder %s15, 0
    %p63 = por %p61, %p62
    %s65 = sadd.s32 %s64, 1
    %p68 = scmp.eq.s32.totalorder %s9, 1
    %p69 = scmp.ne.s32.totalorder %s64, %s66
    %p70 = scmp.eq.s32.totalorder %s9, 0
    %p71 = por %p69, %p70
    %p72 = scmp.ne.s32.totalorder %s64, %s66
    %p73 = scmp.eq.s32.totalorder %s14, 1
    %p74 = por %p72, %p73
    %p75 = scmp.ne.s32.totalorder %s66, %s67
    %p76 = scmp.eq.s32.totalorder %s14, 0
    %p77 = por %p75, %p76
    %p78 = scmp.ne.s32.totalorder %s66, %s67
    %p79 = scmp.eq.s32.totalorder %s15, 1
    %p80 = por %p78, %p79
    %p82 = scmp.ne.s32.totalorder %s67, %s81
    %p83 = scmp.eq.s32.totalorder %s15, 0
    %p84 = por %p82, %p83
    %s85 = ssub.s32 %s9, %s16
    %p86 = scmp.eq.s32.totalorder %s85, 0
    %s88 = sadd.s32 %s87, 1
    %s89 = scalar_select %p86, %s87, %s88
    %p92 = pneg %p86
    %p93 = scmp.eq.s32.totalorder %s9, 1
    %p94 = por %p92, %p93
    %p95 = scmp.ne.s32.totalorder %s87, %s90
    %p96 = scmp.eq.s32.totalorder %s9, 0
    %p97 = por %p95, %p96
    %p98 = scmp.ne.s32.totalorder %s87, %s90
    %p99 = scmp.eq.s32.totalorder %s14, 1
    %p100 = por %p98, %p99
    %p101 = scmp.ne.s32.totalorder %s90, %s91
    %p102 = scmp.eq.s32.totalorder %s14, 0
    %p103 = por %p101, %p102
    %p104 = scmp.ne.s32.totalorder %s90, %s91
    %p105 = scmp.eq.s32.totalorder %s15, 1
    %p106 = por %p104, %p105
    %p108 = scmp.ne.s32.totalorder %s91, %s107
    %p109 = scmp.eq.s32.totalorder %s15, 0
    %p110 = por %p108, %p109
    %p111 = scmp.le.s32.totalorder 1, %s9
    %p112 = scmp.lt.s32.totalorder %s9, 3
    %p113 = pnand %p111, %p112
    %p114 = pneg %p113
    // Predicated region
    $region9: #{bottleneck_forward.2} parent=5 // pred_check
      _
    $region10: #{bottleneck_forward.2} parent=5 // pred_check_branch
      %116 = sbr.rel (%p113) target = $region12
    $region11: #{bottleneck_forward.2} parent=5 // pred_region
      %s117 = ssub.s32 %s9, 1
      // Predicated region
      $region13: #{bottleneck_forward.2} parent=11 // pred_check
        %p118 = pneg %p56
      $region14: #{bottleneck_forward.2} parent=11 // pred_check_branch
        %120 = sbr.rel (%p118) target = $region16
      $region15: #{bottleneck_forward.2} parent=11 // pred_region
        _
      $region16: #{bottleneck_forward.2} parent=11 // pred_fallthru
        _
      // Predicated region
      $region17: #{bottleneck_forward.2} parent=11 // pred_check
        %p121 = pneg %p77
      $region18: #{bottleneck_forward.2} parent=11 // pred_check_branch
        %123 = sbr.rel (%p121) target = $region20
      $region19: #{bottleneck_forward.2} parent=11 // pred_region
        _
      $region20: #{bottleneck_forward.2} parent=11 // pred_fallthru
        _
    $region12: #{bottleneck_forward.2} parent=5 // pred_fallthru
      _
    %p124 = scmp.lt.s32.totalorder %s9, 2
    // Predicated region
    $region21: #{bottleneck_forward.2} parent=5 // pred_check
      %p125 = pneg %p124
    $region22: #{bottleneck_forward.2} parent=5 // pred_check_branch
      %127 = sbr.rel (%p125) target = $region24
    $region23: #{bottleneck_forward.2} parent=5 // pred_region
      // Predicated region
      $region25: #{bottleneck_forward.2} parent=23 // pred_check
        %p128 = pneg %p29
      $region26: #{bottleneck_forward.2} parent=23 // pred_check_branch
        %130 = sbr.rel (%p128) target = $region28
      $region27: #{bottleneck_forward.2} parent=23 // pred_region
        %s131 = smul.u32 64, %s9
        %p132 = scmp.lt.s32.totalorder %s131, 127
        %s133 = scalar_select %p132, %s131, 127
        %s134 = smul.addr %s133, 4
        %s135 = scalar_lea.vmem %s0, %s134
        %s136 = smul.u32 64, %s9
      $region28: #{bottleneck_forward.2} parent=23 // pred_fallthru
        _
    $region24: #{bottleneck_forward.2} parent=5 // pred_fallthru
      _
    %p137 = scmp.le.s32.totalorder 1, %s9
    %p138 = scmp.lt.s32.totalorder %s9, 3
    %p139 = pnand %p137, %p138
    %p140 = pneg %p139
    // Predicated region
    $region29: #{bottleneck_forward.2} parent=5 // pred_check
      _
    $region30: #{bottleneck_forward.2} parent=5 // pred_check_branch
      %142 = sbr.rel (%p139) target = $region32
    $region31: #{bottleneck_forward.2} parent=5 // pred_region
      %s143 = ssub.s32 %s9, 1
      %s144 = smul.u32 64, %s14
      %p145 = scmp.lt.s32.totalorder %s144, 127
      %s146 = scalar_select %p145, %s144, 127
      %s147 = smul.addr %s146, 4
      %s148 = scalar_lea.vmem %s0, %s147
      %p149 = pneg %p35
      %p150 = pneg %p32
      %p151 = pneg %p56
      %p152 = pneg %p53
      %p153 = pneg %p77
      %p154 = pneg %p74
      %p155 = pneg %p103
      %p156 = pneg %p100
      %s157 = smul.u32 64, %s14
      %p158 = scmp.lt.s32.totalorder %s157, 127
      %s159 = scalar_select %p158, %s157, 127
      %s160 = smul.addr %s159, 4
      %s161 = scalar_lea.vmem %s3, %s160
      %s162 = smul.u32 64, %s14
      %p163 = scmp.lt.s32.totalorder %s162, 127
      %s164 = scalar_select %p163, %s162, 127
      %s165 = smul.addr %s164, 4
      %s166 = scalar_lea.vmem %s0, %s165
      %s167 = smul.u32 64, %s14
      %s168 = smul.u32 64, %s14
      %p169 = scmp.lt.s32.totalorder %s168, 127
      %s170 = scalar_select %p169, %s168, 127
      %s171 = smul.addr %s170, 4
      %s172 = scalar_lea.vmem %s3, %s171
      %s173 = smul.u32 64, %s14
      %v175 = vld [vmem:[%s166] sm:$0xf]
      %v176 = vld [vmem:[%s166 + $0x4] sm:$0xf]
      %v177 = vld [vmem:[%s166 + $0x8] sm:$0xf]
      %v178 = vld [vmem:[%s166 + $0xc] sm:$0xf]
      %v179 = vld [vmem:[%s166 + $0x10] sm:$0xf]
      %v180 = vld [vmem:[%s166 + $0x14] sm:$0xf]
      %v181 = vld [vmem:[%s166 + $0x18] sm:$0xf]
      %v182 = vld [vmem:[%s166 + $0x1c] sm:$0xf]
      %v183 = vld [vmem:[%s166 + $0x20] sm:$0xf]
      %v184 = vld [vmem:[%s166 + $0x24] sm:$0xf]
      %v185 = vld [vmem:[%s166 + $0x28] sm:$0xf]
      %v186 = vld [vmem:[%s166 + $0x2c] sm:$0xf]
      %v187 = vld [vmem:[%s166 + $0x30] sm:$0xf]
      %v188 = vld [vmem:[%s166 + $0x34] sm:$0xf]
      %v189 = vld [vmem:[%s166 + $0x38] sm:$0xf]
      %v190 = vld [vmem:[%s166 + $0x3c] sm:$0xf]
      %v191 = vld [vmem:[%s166 + $0x40] sm:$0xf]
      %v192 = vld [vmem:[%s166 + $0x44] sm:$0xf]
      %v193 = vld [vmem:[%s166 + $0x48] sm:$0xf]
      %v194 = vld [vmem:[%s166 + $0x4c] sm:$0xf]
      %v195 = vld [vmem:[%s166 + $0x50] sm:$0xf]
      %v196 = vld [vmem:[%s166 + $0x54] sm:$0xf]
      %v197 = vld [vmem:[%s166 + $0x58] sm:$0xf]
      %v198 = vld [vmem:[%s166 + $0x5c] sm:$0xf]
      %v199 = vld [vmem:[%s166 + $0x60] sm:$0xf]
      %v200 = vld [vmem:[%s166 + $0x64] sm:$0xf]
      %v201 = vld [vmem:[%s166 + $0x68] sm:$0xf]
      %v202 = vld [vmem:[%s166 + $0x6c] sm:$0xf]
      %v203 = vld [vmem:[%s166 + $0x70] sm:$0xf]
      %v204 = vld [vmem:[%s166 + $0x74] sm:$0xf]
      %v205 = vld [vmem:[%s166 + $0x78] sm:$0xf]
      %v206 = vld [vmem:[%s166 + $0x7c] sm:$0xf]
      %v207 = vld [vmem:[%s166 + $0x80] sm:$0xf]
      %v208 = vld [vmem:[%s166 + $0x84] sm:$0xf]
      %v209 = vld [vmem:[%s166 + $0x88] sm:$0xf]
      %v210 = vld [vmem:[%s166 + $0x8c] sm:$0xf]
      %v211 = vld [vmem:[%s166 + $0x90] sm:$0xf]
      %v212 = vld [vmem:[%s166 + $0x94] sm:$0xf]
      %v213 = vld [vmem:[%s166 + $0x98] sm:$0xf]
      %v214 = vld [vmem:[%s166 + $0x9c] sm:$0xf]
      %v215 = vld [vmem:[%s166 + $0xa0] sm:$0xf]
      %v216 = vld [vmem:[%s166 + $0xa4] sm:$0xf]
      %v217 = vld [vmem:[%s166 + $0xa8] sm:$0xf]
      %v218 = vld [vmem:[%s166 + $0xac] sm:$0xf]
      %v219 = vld [vmem:[%s166 + $0xb0] sm:$0xf]
      %v220 = vld [vmem:[%s166 + $0xb4] sm:$0xf]
      %v221 = vld [vmem:[%s166 + $0xb8] sm:$0xf]
      %v222 = vld [vmem:[%s166 + $0xbc] sm:$0xf]
      %v223 = vld [vmem:[%s166 + $0xc0] sm:$0xf]
      %v224 = vld [vmem:[%s166 + $0xc4] sm:$0xf]
      %v225 = vld [vmem:[%s166 + $0xc8] sm:$0xf]
      %v226 = vld [vmem:[%s166 + $0xcc] sm:$0xf]
      %v227 = vld [vmem:[%s166 + $0xd0] sm:$0xf]
      %v228 = vld [vmem:[%s166 + $0xd4] sm:$0xf]
      %v229 = vld [vmem:[%s166 + $0xd8] sm:$0xf]
      %v230 = vld [vmem:[%s166 + $0xdc] sm:$0xf]
      %v231 = vld [vmem:[%s166 + $0xe0] sm:$0xf]
      %v232 = vld [vmem:[%s166 + $0xe4] sm:$0xf]
      %v233 = vld [vmem:[%s166 + $0xe8] sm:$0xf]
      %v234 = vld [vmem:[%s166 + $0xec] sm:$0xf]
      %v235 = vld [vmem:[%s166 + $0xf0] sm:$0xf]
      %v236 = vld [vmem:[%s166 + $0xf4] sm:$0xf]
      %v237 = vld [vmem:[%s166 + $0xf8] sm:$0xf]
      %v238 = vld [vmem:[%s166 + $0xfc] sm:$0xf]
      %v239 = vld [vmem:[%s1] sm:$0xf]
      %v240 = vld [vmem:[%s1 + $0x4] sm:$0xf]
      %v241 = vld [vmem:[%s1 + $0x8] sm:$0xf]
      %v242 = vld [vmem:[%s1 + $0xc] sm:$0xf]
      %v243 = vld [vmem:[%s1 + $0x10] sm:$0xf]
      %v244 = vld [vmem:[%s1 + $0x14] sm:$0xf]
      %v245 = vld [vmem:[%s1 + $0x18] sm:$0xf]
      %v246 = vld [vmem:[%s1 + $0x1c] sm:$0xf]
      %v247 = vld [vmem:[%s1 + $0x20] sm:$0xf]
      %v248 = vld [vmem:[%s1 + $0x24] sm:$0xf]
      %v249 = vld [vmem:[%s1 + $0x28] sm:$0xf]
      %v250 = vld [vmem:[%s1 + $0x2c] sm:$0xf]
      %v251 = vld [vmem:[%s1 + $0x30] sm:$0xf]
      %v252 = vld [vmem:[%s1 + $0x34] sm:$0xf]
      %v253 = vld [vmem:[%s1 + $0x38] sm:$0xf]
      %v254 = vld [vmem:[%s1 + $0x3c] sm:$0xf]
      %v255 = vld [vmem:[%s2] sm:$0x1]
      %v257 = vlaneseq
      %v258 = vshrl.u32 %v257, 7
      %v259 = vsub.s32 0, %v258
      %v260 = vrot.slane %v255, %v259
      %v326 = vunpack.c.l.b16 %v175
      %v327 = vunpack.c.l.b16 %v176
      %v328 = vunpack.c.l.b16 %v177
      %v329 = vunpack.c.l.b16 %v178
      %v330 = vunpack.c.l.b16 %v179
      %v331 = vunpack.c.l.b16 %v180
      %v332 = vunpack.c.l.b16 %v181
      %v333 = vunpack.c.l.b16 %v182
      %v334 = vunpack.c.l.b16 %v183
      %v335 = vunpack.c.l.b16 %v184
      %v336 = vunpack.c.l.b16 %v185
      %v337 = vunpack.c.l.b16 %v186
      %v338 = vunpack.c.l.b16 %v187
      %v339 = vunpack.c.l.b16 %v188
      %v340 = vunpack.c.l.b16 %v189
      %v341 = vunpack.c.l.b16 %v190
      %v342 = vunpack.c.l.b16 %v191
      %v343 = vunpack.c.l.b16 %v192
      %v344 = vunpack.c.l.b16 %v193
      %v345 = vunpack.c.l.b16 %v194
      %v346 = vunpack.c.l.b16 %v195
      %v347 = vunpack.c.l.b16 %v196
      %v348 = vunpack.c.l.b16 %v197
      %v349 = vunpack.c.l.b16 %v198
      %v350 = vunpack.c.l.b16 %v199
      %v351 = vunpack.c.l.b16 %v200
      %v352 = vunpack.c.l.b16 %v201
      %v353 = vunpack.c.l.b16 %v202
      %v354 = vunpack.c.l.b16 %v203
      %v355 = vunpack.c.l.b16 %v204
      %v356 = vunpack.c.l.b16 %v205
      %v357 = vunpack.c.l.b16 %v206
      %v358 = vunpack.c.l.b16 %v207
      %v359 = vunpack.c.l.b16 %v208
      %v360 = vunpack.c.l.b16 %v209
      %v361 = vunpack.c.l.b16 %v210
      %v362 = vunpack.c.l.b16 %v211
      %v363 = vunpack.c.l.b16 %v212
      %v364 = vunpack.c.l.b16 %v213
      %v365 = vunpack.c.l.b16 %v214
      %v366 = vunpack.c.l.b16 %v215
      %v367 = vunpack.c.l.b16 %v216
      %v368 = vunpack.c.l.b16 %v217
      %v369 = vunpack.c.l.b16 %v218
      %v370 = vunpack.c.l.b16 %v219
      %v371 = vunpack.c.l.b16 %v220
      %v372 = vunpack.c.l.b16 %v221
      %v373 = vunpack.c.l.b16 %v222
      %v374 = vunpack.c.l.b16 %v223
      %v375 = vunpack.c.l.b16 %v224
      %v376 = vunpack.c.l.b16 %v225
      %v377 = vunpack.c.l.b16 %v226
      %v378 = vunpack.c.l.b16 %v227
      %v379 = vunpack.c.l.b16 %v228
      %v380 = vunpack.c.l.b16 %v229
      %v381 = vunpack.c.l.b16 %v230
      %v382 = vunpack.c.l.b16 %v231
      %v383 = vunpack.c.l.b16 %v232
      %v384 = vunpack.c.l.b16 %v233
      %v385 = vunpack.c.l.b16 %v234
      %v386 = vunpack.c.l.b16 %v235
      %v387 = vunpack.c.l.b16 %v236
      %v388 = vunpack.c.l.b16 %v237
      %v389 = vunpack.c.l.b16 %v238
      %v390 = vpack.c.b16 %v327, %v326
      %v391 = vpack.c.b16 %v329, %v328
      %v392 = vpack.c.b16 %v331, %v330
      %v393 = vpack.c.b16 %v333, %v332
      %v394 = vpack.c.b16 %v335, %v334
      %v395 = vpack.c.b16 %v337, %v336
      %v396 = vpack.c.b16 %v339, %v338
      %v397 = vpack.c.b16 %v341, %v340
      %v398 = vpack.c.b16 %v343, %v342
      %v399 = vpack.c.b16 %v345, %v344
      %v400 = vpack.c.b16 %v347, %v346
      %v401 = vpack.c.b16 %v349, %v348
      %v402 = vpack.c.b16 %v351, %v350
      %v403 = vpack.c.b16 %v353, %v352
      %v404 = vpack.c.b16 %v355, %v354
      %v405 = vpack.c.b16 %v357, %v356
      %v406 = vpack.c.b16 %v359, %v358
      %v407 = vpack.c.b16 %v361, %v360
      %v408 = vpack.c.b16 %v363, %v362
      %v409 = vpack.c.b16 %v365, %v364
      %v410 = vpack.c.b16 %v367, %v366
      %v411 = vpack.c.b16 %v369, %v368
      %v412 = vpack.c.b16 %v371, %v370
      %v413 = vpack.c.b16 %v373, %v372
      %v414 = vpack.c.b16 %v375, %v374
      %v415 = vpack.c.b16 %v377, %v376
      %v416 = vpack.c.b16 %v379, %v378
      %v417 = vpack.c.b16 %v381, %v380
      %v418 = vpack.c.b16 %v383, %v382
      %v419 = vpack.c.b16 %v385, %v384
      %v420 = vpack.c.b16 %v387, %v386
      %v421 = vpack.c.b16 %v389, %v388
      %v470 = vunpack.c.l.b16 %v239
      %v471 = vunpack.c.l.b16 %v240
      %v472 = vunpack.c.l.b16 %v241
      %v473 = vunpack.c.l.b16 %v242
      %v474 = vunpack.c.l.b16 %v243
      %v475 = vunpack.c.l.b16 %v244
      %v476 = vunpack.c.l.b16 %v245
      %v477 = vunpack.c.l.b16 %v246
      %v478 = vunpack.c.l.b16 %v247
      %v479 = vunpack.c.l.b16 %v248
      %v480 = vunpack.c.l.b16 %v249
      %v481 = vunpack.c.l.b16 %v250
      %v482 = vunpack.c.l.b16 %v251
      %v483 = vunpack.c.l.b16 %v252
      %v484 = vunpack.c.l.b16 %v253
      %v485 = vunpack.c.l.b16 %v254
      %v486 = vpack.c.b16 %v471, %v470
      %v487 = vpack.c.b16 %v473, %v472
      %v488 = vpack.c.b16 %v475, %v474
      %v489 = vpack.c.b16 %v477, %v476
      %v490 = vpack.c.b16 %v479, %v478
      %v491 = vpack.c.b16 %v481, %v480
      %v492 = vpack.c.b16 %v483, %v482
      %v493 = vpack.c.b16 %v485, %v484
      %502 = vmatprep.subr.bf16.mxu0 0
      %503 = vmatpush1.bf16.msra.mxu0 %v486
      %504 = vmatprep.subr.bf16.mxu0 0
      %505 = vmatpush1.bf16.msra.mxu0 %v487
      %506 = vmatprep.subr.bf16.mxu0 0
      %507 = vmatpush1.bf16.msra.mxu0 %v488
      %508 = vmatprep.subr.bf16.mxu0 0
      %509 = vmatpush1.bf16.msra.mxu0 %v489
      %510 = vmatprep.subr.bf16.mxu0 0
      %511 = vmatpush1.bf16.msra.mxu0 %v490
      %512 = vmatprep.subr.bf16.mxu0 0
      %513 = vmatpush1.bf16.msra.mxu0 %v491
      %514 = vmatprep.subr.bf16.mxu0 0
      %515 = vmatpush1.bf16.msra.mxu0 %v492
      %516 = vmatprep.subr.bf16.mxu0 0
      %517 = vmatpush1.bf16.msra.mxu0 %v493
      %518 = vmatprep.subr.bf16.mxu0 0
      %519 = vmatpush1.bf16.msra.mxu0 0
      %520 = vmatprep.subr.bf16.mxu0 0
      %521 = vmatpush1.bf16.msra.mxu0 0
      %522 = vmatprep.subr.bf16.mxu0 0
      %523 = vmatpush1.bf16.msra.mxu0 0
      %524 = vmatprep.subr.bf16.mxu0 0
      %525 = vmatpush1.bf16.msra.mxu0 0
      %526 = vmatprep.subr.bf16.mxu0 0
      %527 = vmatpush1.bf16.msra.mxu0 0
      %528 = vmatprep.subr.bf16.mxu0 0
      %529 = vmatpush1.bf16.msra.mxu0 0
      %530 = vmatprep.subr.bf16.mxu0 0
      %531 = vmatpush1.bf16.msra.mxu0 0
      %532 = vmatprep.subr.bf16.mxu0 0
      %533 = vmatpush1.bf16.msra.mxu0 0
      %534 = vmatprep.mubr.bf16.mxu0 0
      %535 = vmatmul.mubr.bf16.gmra.mrb[0].mxu0 %v390
      %v536 = vpop.f32.mrb[0].mxu0
      %v537 = vadd.f32 %v260, %v536
      %v538 = vpop.f32.mrb[0].mxu0
      %v539 = vpop.f32.mrb[0].mxu0
      %v540 = vadd.f32 %v260, %v539
      %v541 = vpop.f32.mrb[0].mxu0
      %542 = vmatprep.mubr.bf16.mxu0 0
      %543 = vmatmul.mubr.bf16.gmra.mrb[0].mxu0 %v391
      %v544 = vpop.f32.mrb[0].mxu0
      %v545 = vadd.f32 %v260, %v544
      %v546 = vpop.f32.mrb[0].mxu0
      %v547 = vpop.f32.mrb[0].mxu0
      %v548 = vadd.f32 %v260, %v547
      %v549 = vpop.f32.mrb[0].mxu0
      %550 = vmatprep.mubr.bf16.mxu0 0
      %551 = vmatmul.mubr.bf16.gmra.mrb[0].mxu0 %v392
      %v552 = vpop.f32.mrb[0].mxu0
      %v553 = vadd.f32 %v260, %v552
      %v554 = vpop.f32.mrb[0].mxu0
      %v555 = vpop.f32.mrb[0].mxu0
      %v556 = vadd.f32 %v260, %v555
      %v557 = vpop.f32.mrb[0].mxu0
      %558 = vmatprep.mubr.bf16.mxu0 0
      %559 = vmatmul.mubr.bf16.gmra.mrb[0].mxu0 %v393
      %v560 = vpop.f32.mrb[0].mxu0
      %v561 = vadd.f32 %v260, %v560
      %v562 = vpop.f32.mrb[0].mxu0
      %v563 = vpop.f32.mrb[0].mxu0
      %v564 = vadd.f32 %v260, %v563
      %v565 = vpop.f32.mrb[0].mxu0
      %566 = vmatprep.mubr.bf16.mxu0 0
      %567 = vmatmul.mubr.bf16.gmra.mrb[0].mxu0 %v394
      %v568 = vpop.f32.mrb[0].mxu0
      %v569 = vadd.f32 %v260, %v568
      %v570 = vpop.f32.mrb[0].mxu0
      %v571 = vpop.f32.mrb[0].mxu0
      %v572 = vadd.f32 %v260, %v571
      %v573 = vpop.f32.mrb[0].mxu0
      %574 = vmatprep.mubr.bf16.mxu0 0
      %575 = vmatmul.mubr.bf16.gmra.mrb[0].mxu0 %v395
      %v576 = vpop.f32.mrb[0].mxu0
      %v577 = vadd.f32 %v260, %v576
      %v578 = vpop.f32.mrb[0].mxu0
      %v579 = vpop.f32.mrb[0].mxu0
      %v580 = vadd.f32 %v260, %v579
      %v581 = vpop.f32.mrb[0].mxu0
      %582 = vmatprep.mubr.bf16.mxu0 0
      %583 = vmatmul.mubr.bf16.gmra.mrb[0].mxu0 %v396
      %v584 = vpop.f32.mrb[0].mxu0
      %v585 = vadd.f32 %v260, %v584
      %v586 = vpop.f32.mrb[0].mxu0
      %v587 = vpop.f32.mrb[0].mxu0
      %v588 = vadd.f32 %v260, %v587
      %v589 = vpop.f32.mrb[0].mxu0
      %590 = vmatprep.mubr.bf16.mxu0 0
      %591 = vmatmul.mubr.bf16.gmra.mrb[0].mxu0 %v397
      %v592 = vpop.f32.mrb[0].mxu0
      %v593 = vadd.f32 %v260, %v592
      %v594 = vpop.f32.mrb[0].mxu0
      %v595 = vpop.f32.mrb[0].mxu0
      %v596 = vadd.f32 %v260, %v595
      %v597 = vpop.f32.mrb[0].mxu0
      %598 = vmatprep.mubr.bf16.mxu0 0
      %599 = vmatmul.mubr.bf16.gmra.mrb[0].mxu0 %v398
      %v600 = vpop.f32.mrb[0].mxu0
      %v601 = vadd.f32 %v260, %v600
      %v602 = vpop.f32.mrb[0].mxu0
      %v603 = vpop.f32.mrb[0].mxu0
      %v604 = vadd.f32 %v260, %v603
      %v605 = vpop.f32.mrb[0].mxu0
      %606 = vmatprep.mubr.bf16.mxu0 0
      %607 = vmatmul.mubr.bf16.gmra.mrb[0].mxu0 %v399
      %v608 = vpop.f32.mrb[0].mxu0
      %v609 = vadd.f32 %v260, %v608
      %v610 = vpop.f32.mrb[0].mxu0
      %v611 = vpop.f32.mrb[0].mxu0
      %v612 = vadd.f32 %v260, %v611
      %v613 = vpop.f32.mrb[0].mxu0
      %614 = vmatprep.mubr.bf16.mxu0 0
      %615 = vmatmul.mubr.bf16.gmra.mrb[0].mxu0 %v400
      %v616 = vpop.f32.mrb[0].mxu0
      %v617 = vadd.f32 %v260, %v616
      %v618 = vpop.f32.mrb[0].mxu0
      %v619 = vpop.f32.mrb[0].mxu0
      %v620 = vadd.f32 %v260, %v619
      %v621 = vpop.f32.mrb[0].mxu0
      %622 = vmatprep.mubr.bf16.mxu0 0
      %623 = vmatmul.mubr.bf16.gmra.mrb[0].mxu0 %v401
      %v624 = vpop.f32.mrb[0].mxu0
      %v625 = vadd.f32 %v260, %v624
      %v626 = vpop.f32.mrb[0].mxu0
      %v627 = vpop.f32.mrb[0].mxu0
      %v628 = vadd.f32 %v260, %v627
      %v629 = vpop.f32.mrb[0].mxu0
      %630 = vmatprep.mubr.bf16.mxu0 0
      %631 = vmatmul.mubr.bf16.gmra.mrb[0].mxu0 %v402
      %v632 = vpop.f32.mrb[0].mxu0
      %v633 = vadd.f32 %v260, %v632
      %v634 = vpop.f32.mrb[0].mxu0
      %v635 = vpop.f32.mrb[0].mxu0
      %v636 = vadd.f32 %v260, %v635
      %v637 = vpop.f32.mrb[0].mxu0
      %638 = vmatprep.mubr.bf16.mxu0 0
      %639 = vmatmul.mubr.bf16.gmra.mrb[0].mxu0 %v403
      %v640 = vpop.f32.mrb[0].mxu0
      %v641 = vadd.f32 %v260, %v640
      %v642 = vpop.f32.mrb[0].mxu0
      %v643 = vpop.f32.mrb[0].mxu0
      %v644 = vadd.f32 %v260, %v643
      %v645 = vpop.f32.mrb[0].mxu0
      %646 = vmatprep.mubr.bf16.mxu0 0
      %647 = vmatmul.mubr.bf16.gmra.mrb[0].mxu0 %v404
      %v648 = vpop.f32.mrb[0].mxu0
      %v649 = vadd.f32 %v260, %v648
      %v650 = vpop.f32.mrb[0].mxu0
      %v651 = vpop.f32.mrb[0].mxu0
      %v652 = vadd.f32 %v260, %v651
      %v653 = vpop.f32.mrb[0].mxu0
      %654 = vmatprep.mubr.bf16.mxu0 0
      %655 = vmatmul.mubr.bf16.gmra.mrb[0].mxu0 %v405
      %v656 = vpop.f32.mrb[0].mxu0
      %v657 = vadd.f32 %v260, %v656
      %v658 = vpop.f32.mrb[0].mxu0
      %v659 = vpop.f32.mrb[0].mxu0
      %v660 = vadd.f32 %v260, %v659
      %v661 = vpop.f32.mrb[0].mxu0
      %662 = vmatprep.mubr.bf16.mxu0 0
      %663 = vmatmul.mubr.bf16.gmra.mrb[0].mxu0 %v406
      %v664 = vpop.f32.mrb[0].mxu0
      %v665 = vadd.f32 %v260, %v664
      %v666 = vpop.f32.mrb[0].mxu0
      %v667 = vpop.f32.mrb[0].mxu0
      %v668 = vadd.f32 %v260, %v667
      %v669 = vpop.f32.mrb[0].mxu0
      %670 = vmatprep.mubr.bf16.mxu0 0
      %671 = vmatmul.mubr.bf16.gmra.mrb[0].mxu0 %v407
      %v672 = vpop.f32.mrb[0].mxu0
      %v673 = vadd.f32 %v260, %v672
      %v674 = vpop.f32.mrb[0].mxu0
      %v675 = vpop.f32.mrb[0].mxu0
      %v676 = vadd.f32 %v260, %v675
      %v677 = vpop.f32.mrb[0].mxu0
      %678 = vmatprep.mubr.bf16.mxu0 0
      %679 = vmatmul.mubr.bf16.gmra.mrb[0].mxu0 %v408
      %v680 = vpop.f32.mrb[0].mxu0
      %v681 = vadd.f32 %v260, %v680
      %v682 = vpop.f32.mrb[0].mxu0
      %v683 = vpop.f32.mrb[0].mxu0
      %v684 = vadd.f32 %v260, %v683
      %v685 = vpop.f32.mrb[0].mxu0
      %686 = vmatprep.mubr.bf16.mxu0 0
      %687 = vmatmul.mubr.bf16.gmra.mrb[0].mxu0 %v409
      %v688 = vpop.f32.mrb[0].mxu0
      %v689 = vadd.f32 %v260, %v688
      %v690 = vpop.f32.mrb[0].mxu0
      %v691 = vpop.f32.mrb[0].mxu0
      %v692 = vadd.f32 %v260, %v691
      %v693 = vpop.f32.mrb[0].mxu0
      %694 = vmatprep.mubr.bf16.mxu0 0
      %695 = vmatmul.mubr.bf16.gmra.mrb[0].mxu0 %v410
      %v696 = vpop.f32.mrb[0].mxu0
      %v697 = vadd.f32 %v260, %v696
      %v698 = vpop.f32.mrb[0].mxu0
      %v699 = vpop.f32.mrb[0].mxu0
      %v700 = vadd.f32 %v260, %v699
      %v701 = vpop.f32.mrb[0].mxu0
      %702 = vmatprep.mubr.bf16.mxu0 0
      %703 = vmatmul.mubr.bf16.gmra.mrb[0].mxu0 %v411
      %v704 = vpop.f32.mrb[0].mxu0
      %v705 = vadd.f32 %v260, %v704
      %v706 = vpop.f32.mrb[0].mxu0
      %v707 = vpop.f32.mrb[0].mxu0
      %v708 = vadd.f32 %v260, %v707
      %v709 = vpop.f32.mrb[0].mxu0
      %710 = vmatprep.mubr.bf16.mxu0 0
      %711 = vmatmul.mubr.bf16.gmra.mrb[0].mxu0 %v412
      %v712 = vpop.f32.mrb[0].mxu0
      %v713 = vadd.f32 %v260, %v712
      %v714 = vpop.f32.mrb[0].mxu0
      %v715 = vpop.f32.mrb[0].mxu0
      %v716 = vadd.f32 %v260, %v715
      %v717 = vpop.f32.mrb[0].mxu0
      %718 = vmatprep.mubr.bf16.mxu0 0
      %719 = vmatmul.mubr.bf16.gmra.mrb[0].mxu0 %v413
      %v720 = vpop.f32.mrb[0].mxu0
      %v721 = vadd.f32 %v260, %v720
      %v722 = vpop.f32.mrb[0].mxu0
      %v723 = vpop.f32.mrb[0].mxu0
      %v724 = vadd.f32 %v260, %v723
      %v725 = vpop.f32.mrb[0].mxu0
      %726 = vmatprep.mubr.bf16.mxu0 0
      %727 = vmatmul.mubr.bf16.gmra.mrb[0].mxu0 %v414
      %v728 = vpop.f32.mrb[0].mxu0
      %v729 = vadd.f32 %v260, %v728
      %v730 = vpop.f32.mrb[0].mxu0
      %v731 = vpop.f32.mrb[0].mxu0
      %v732 = vadd.f32 %v260, %v731
      %v733 = vpop.f32.mrb[0].mxu0
      %734 = vmatprep.mubr.bf16.mxu0 0
      %735 = vmatmul.mubr.bf16.gmra.mrb[0].mxu0 %v415
      %v736 = vpop.f32.mrb[0].mxu0
      %v737 = vadd.f32 %v260, %v736
      %v738 = vpop.f32.mrb[0].mxu0
      %v739 = vpop.f32.mrb[0].mxu0
      %v740 = vadd.f32 %v260, %v739
      %v741 = vpop.f32.mrb[0].mxu0
      %742 = vmatprep.mubr.bf16.mxu0 0
      %743 = vmatmul.mubr.bf16.gmra.mrb[0].mxu0 %v416
      %v744 = vpop.f32.mrb[0].mxu0
      %v745 = vadd.f32 %v260, %v744
      %v746 = vpop.f32.mrb[0].mxu0
      %v747 = vpop.f32.mrb[0].mxu0
      %v748 = vadd.f32 %v260, %v747
      %v749 = vpop.f32.mrb[0].mxu0
      %750 = vmatprep.mubr.bf16.mxu0 0
      %751 = vmatmul.mubr.bf16.gmra.mrb[0].mxu0 %v417
      %v752 = vpop.f32.mrb[0].mxu0
      %v753 = vadd.f32 %v260, %v752
      %v754 = vpop.f32.mrb[0].mxu0
      %v755 = vpop.f32.mrb[0].mxu0
      %v756 = vadd.f32 %v260, %v755
      %v757 = vpop.f32.mrb[0].mxu0
      %758 = vmatprep.mubr.bf16.mxu0 0
      %759 = vmatmul.mubr.bf16.gmra.mrb[0].mxu0 %v418
      %v760 = vpop.f32.mrb[0].mxu0
      %v761 = vadd.f32 %v260, %v760
      %v762 = vpop.f32.mrb[0].mxu0
      %v763 = vpop.f32.mrb[0].mxu0
      %v764 = vadd.f32 %v260, %v763
      %v765 = vpop.f32.mrb[0].mxu0
      %766 = vmatprep.mubr.bf16.mxu0 0
      %767 = vmatmul.mubr.bf16.gmra.mrb[0].mxu0 %v419
      %v768 = vpop.f32.mrb[0].mxu0
      %v769 = vadd.f32 %v260, %v768
      %v770 = vpop.f32.mrb[0].mxu0
      %v771 = vpop.f32.mrb[0].mxu0
      %v772 = vadd.f32 %v260, %v771
      %v773 = vpop.f32.mrb[0].mxu0
      %774 = vmatprep.mubr.bf16.mxu0 0
      %775 = vmatmul.mubr.bf16.gmra.mrb[0].mxu0 %v420
      %v776 = vpop.f32.mrb[0].mxu0
      %v777 = vadd.f32 %v260, %v776
      %v778 = vpop.f32.mrb[0].mxu0
      %v779 = vpop.f32.mrb[0].mxu0
      %v780 = vadd.f32 %v260, %v779
      %v781 = vpop.f32.mrb[0].mxu0
      %782 = vmatprep.mubr.bf16.mxu0 0
      %783 = vmatmul.mubr.bf16.gmra.mrb[0].mxu0 %v421
      %v784 = vpop.f32.mrb[0].mxu0
      %v785 = vadd.f32 %v260, %v784
      %v786 = vpop.f32.mrb[0].mxu0
      %v787 = vpop.f32.mrb[0].mxu0
      %v788 = vadd.f32 %v260, %v787
      %v789 = vpop.f32.mrb[0].mxu0
      %790 = vdwg.mxu0
      %v791 = vmax.f32 %v537, 0.0
      %v792 = vmax.f32 %v540, 0.0
      %v793 = vmax.f32 %v545, 0.0
      %v794 = vmax.f32 %v548, 0.0
      %v795 = vmax.f32 %v553, 0.0
      %v796 = vmax.f32 %v556, 0.0
      %v797 = vmax.f32 %v561, 0.0
      %v798 = vmax.f32 %v564, 0.0
      %v799 = vmax.f32 %v569, 0.0
      %v800 = vmax.f32 %v572, 0.0
      %v801 = vmax.f32 %v577, 0.0
      %v802 = vmax.f32 %v580, 0.0
      %v803 = vmax.f32 %v585, 0.0
      %v804 = vmax.f32 %v588, 0.0
      %v805 = vmax.f32 %v593, 0.0
      %v806 = vmax.f32 %v596, 0.0
      %v807 = vmax.f32 %v601, 0.0
      %v808 = vmax.f32 %v604, 0.0
      %v809 = vmax.f32 %v609, 0.0
      %v810 = vmax.f32 %v612, 0.0
      %v811 = vmax.f32 %v617, 0.0
      %v812 = vmax.f32 %v620, 0.0
      %v813 = vmax.f32 %v625, 0.0
      %v814 = vmax.f32 %v628, 0.0
      %v815 = vmax.f32 %v633, 0.0
      %v816 = vmax.f32 %v636, 0.0
      %v817 = vmax.f32 %v641, 0.0
      %v818 = vmax.f32 %v644, 0.0
      %v819 = vmax.f32 %v649, 0.0
      %v820 = vmax.f32 %v652, 0.0
      %v821 = vmax.f32 %v657, 0.0
      %v822 = vmax.f32 %v660, 0.0
      %v823 = vmax.f32 %v665, 0.0
      %v824 = vmax.f32 %v668, 0.0
      %v825 = vmax.f32 %v673, 0.0
      %v826 = vmax.f32 %v676, 0.0
      %v827 = vmax.f32 %v681, 0.0
      %v828 = vmax.f32 %v684, 0.0
      %v829 = vmax.f32 %v689, 0.0
      %v830 = vmax.f32 %v692, 0.0
      %v831 = vmax.f32 %v697, 0.0
      %v832 = vmax.f32 %v700, 0.0
      %v833 = vmax.f32 %v705, 0.0
      %v834 = vmax.f32 %v708, 0.0
      %v835 = vmax.f32 %v713, 0.0
      %v836 = vmax.f32 %v716, 0.0
      %v837 = vmax.f32 %v721, 0.0
      %v838 = vmax.f32 %v724, 0.0
      %v839 = vmax.f32 %v729, 0.0
      %v840 = vmax.f32 %v732, 0.0
      %v841 = vmax.f32 %v737, 0.0
      %v842 = vmax.f32 %v740, 0.0
      %v843 = vmax.f32 %v745, 0.0
      %v844 = vmax.f32 %v748, 0.0
      %v845 = vmax.f32 %v753, 0.0
      %v846 = vmax.f32 %v756, 0.0
      %v847 = vmax.f32 %v761, 0.0
      %v848 = vmax.f32 %v764, 0.0
      %v849 = vmax.f32 %v769, 0.0
      %v850 = vmax.f32 %v772, 0.0
      %v851 = vmax.f32 %v777, 0.0
      %v852 = vmax.f32 %v780, 0.0
      %v853 = vmax.f32 %v785, 0.0
      %v854 = vmax.f32 %v788, 0.0
      %v855 = vpack.c.bf16 %v792, %v791
      %v856 = vpack.c.bf16 %v794, %v793
      %v857 = vpack.c.bf16 %v796, %v795
      %v858 = vpack.c.bf16 %v798, %v797
      %v859 = vpack.c.bf16 %v800, %v799
      %v860 = vpack.c.bf16 %v802, %v801
      %v861 = vpack.c.bf16 %v804, %v803
      %v862 = vpack.c.bf16 %v806, %v805
      %v863 = vpack.c.bf16 %v808, %v807
      %v864 = vpack.c.bf16 %v810, %v809
      %v865 = vpack.c.bf16 %v812, %v811
      %v866 = vpack.c.bf16 %v814, %v813
      %v867 = vpack.c.bf16 %v816, %v815
      %v868 = vpack.c.bf16 %v818, %v817
      %v869 = vpack.c.bf16 %v820, %v819
      %v870 = vpack.c.bf16 %v822, %v821
      %v871 = vpack.c.bf16 %v824, %v823
      %v872 = vpack.c.bf16 %v826, %v825
      %v873 = vpack.c.bf16 %v828, %v827
      %v874 = vpack.c.bf16 %v830, %v829
      %v875 = vpack.c.bf16 %v832, %v831
      %v876 = vpack.c.bf16 %v834, %v833
      %v877 = vpack.c.bf16 %v836, %v835
      %v878 = vpack.c.bf16 %v838, %v837
      %v879 = vpack.c.bf16 %v840, %v839
      %v880 = vpack.c.bf16 %v842, %v841
      %v881 = vpack.c.bf16 %v844, %v843
      %v882 = vpack.c.bf16 %v846, %v845
      %v883 = vpack.c.bf16 %v848, %v847
      %v884 = vpack.c.bf16 %v850, %v849
      %v885 = vpack.c.bf16 %v852, %v851
      %v886 = vpack.c.bf16 %v854, %v853
      %v919 = vunpack.c.l.b16 %v855
      %v920 = vunpack.c.h.b16 %v855
      %v921 = vunpack.c.l.b16 %v856
      %v922 = vunpack.c.h.b16 %v856
      %v923 = vunpack.c.l.b16 %v857
      %v924 = vunpack.c.h.b16 %v857
      %v925 = vunpack.c.l.b16 %v858
      %v926 = vunpack.c.h.b16 %v858
      %v927 = vunpack.c.l.b16 %v859
      %v928 = vunpack.c.h.b16 %v859
      %v929 = vunpack.c.l.b16 %v860
      %v930 = vunpack.c.h.b16 %v860
      %v931 = vunpack.c.l.b16 %v861
      %v932 = vunpack.c.h.b16 %v861
      %v933 = vunpack.c.l.b16 %v862
      %v934 = vunpack.c.h.b16 %v862
      %v935 = vunpack.c.l.b16 %v863
      %v936 = vunpack.c.h.b16 %v863
      %v937 = vunpack.c.l.b16 %v864
      %v938 = vunpack.c.h.b16 %v864
      %v939 = vunpack.c.l.b16 %v865
      %v940 = vunpack.c.h.b16 %v865
      %v941 = vunpack.c.l.b16 %v866
      %v942 = vunpack.c.h.b16 %v866
      %v943 = vunpack.c.l.b16 %v867
      %v944 = vunpack.c.h.b16 %v867
      %v945 = vunpack.c.l.b16 %v868
      %v946 = vunpack.c.h.b16 %v868
      %v947 = vunpack.c.l.b16 %v869
      %v948 = vunpack.c.h.b16 %v869
      %v949 = vunpack.c.l.b16 %v870
      %v950 = vunpack.c.h.b16 %v870
      %v951 = vunpack.c.l.b16 %v871
      %v952 = vunpack.c.h.b16 %v871
      %v953 = vunpack.c.l.b16 %v872
      %v954 = vunpack.c.h.b16 %v872
      %v955 = vunpack.c.l.b16 %v873
      %v956 = vunpack.c.h.b16 %v873
      %v957 = vunpack.c.l.b16 %v874
      %v958 = vunpack.c.h.b16 %v874
      %v959 = vunpack.c.l.b16 %v875
      %v960 = vunpack.c.h.b16 %v875
      %v961 = vunpack.c.l.b16 %v876
      %v962 = vunpack.c.h.b16 %v876
      %v963 = vunpack.c.l.b16 %v877
      %v964 = vunpack.c.h.b16 %v877
      %v965 = vunpack.c.l.b16 %v878
      %v966 = vunpack.c.h.b16 %v878
      %v967 = vunpack.c.l.b16 %v879
      %v968 = vunpack.c.h.b16 %v879
      %v969 = vunpack.c.l.b16 %v880
      %v970 = vunpack.c.h.b16 %v880
      %v971 = vunpack.c.l.b16 %v881
      %v972 = vunpack.c.h.b16 %v881
      %v973 = vunpack.c.l.b16 %v882
      %v974 = vunpack.c.h.b16 %v882
      %v975 = vunpack.c.l.b16 %v883
      %v976 = vunpack.c.h.b16 %v883
      %v977 = vunpack.c.l.b16 %v884
      %v978 = vunpack.c.h.b16 %v884
      %v979 = vunpack.c.l.b16 %v885
      %v980 = vunpack.c.h.b16 %v885
      %v981 = vunpack.c.l.b16 %v886
      %v982 = vunpack.c.h.b16 %v886
      %v983 = vpack.c.b16 %v919, %v919
      %v984 = vpack.c.b16 %v920, %v920
      %v985 = vpack.c.b16 %v921, %v921
      %v986 = vpack.c.b16 %v922, %v922
      %v987 = vpack.c.b16 %v923, %v923
      %v988 = vpack.c.b16 %v924, %v924
      %v989 = vpack.c.b16 %v925, %v925
      %v990 = vpack.c.b16 %v926, %v926
      %v991 = vpack.c.b16 %v927, %v927
      %v992 = vpack.c.b16 %v928, %v928
      %v993 = vpack.c.b16 %v929, %v929
      %v994 = vpack.c.b16 %v930, %v930
      %v995 = vpack.c.b16 %v931, %v931
      %v996 = vpack.c.b16 %v932, %v932
      %v997 = vpack.c.b16 %v933, %v933
      %v998 = vpack.c.b16 %v934, %v934
      %v999 = vpack.c.b16 %v935, %v935
      %v1000 = vpack.c.b16 %v936, %v936
      %v1001 = vpack.c.b16 %v937, %v937
      %v1002 = vpack.c.b16 %v938, %v938
      %v1003 = vpack.c.b16 %v939, %v939
      %v1004 = vpack.c.b16 %v940, %v940
      %v1005 = vpack.c.b16 %v941, %v941
      %v1006 = vpack.c.b16 %v942, %v942
      %v1007 = vpack.c.b16 %v943, %v943
      %v1008 = vpack.c.b16 %v944, %v944
      %v1009 = vpack.c.b16 %v945, %v945
      %v1010 = vpack.c.b16 %v946, %v946
      %v1011 = vpack.c.b16 %v947, %v947
      %v1012 = vpack.c.b16 %v948, %v948
      %v1013 = vpack.c.b16 %v949, %v949
      %v1014 = vpack.c.b16 %v950, %v950
      %v1015 = vpack.c.b16 %v951, %v951
      %v1016 = vpack.c.b16 %v952, %v952
      %v1017 = vpack.c.b16 %v953, %v953
      %v1018 = vpack.c.b16 %v954, %v954
      %v1019 = vpack.c.b16 %v955, %v955
      %v1020 = vpack.c.b16 %v956, %v956
      %v1021 = vpack.c.b16 %v957, %v957
      %v1022 = vpack.c.b16 %v958, %v958
      %v1023 = vpack.c.b16 %v959, %v959
      %v1024 = vpack.c.b16 %v960, %v960
      %v1025 = vpack.c.b16 %v961, %v961
      %v1026 = vpack.c.b16 %v962, %v962
      %v1027 = vpack.c.b16 %v963, %v963
      %v1028 = vpack.c.b16 %v964, %v964
      %v1029 = vpack.c.b16 %v965, %v965
      %v1030 = vpack.c.b16 %v966, %v966
      %v1031 = vpack.c.b16 %v967, %v967
      %v1032 = vpack.c.b16 %v968, %v968
      %v1033 = vpack.c.b16 %v969, %v969
      %v1034 = vpack.c.b16 %v970, %v970
      %v1035 = vpack.c.b16 %v971, %v971
      %v1036 = vpack.c.b16 %v972, %v972
      %v1037 = vpack.c.b16 %v973, %v973
      %v1038 = vpack.c.b16 %v974, %v974
      %v1039 = vpack.c.b16 %v975, %v975
      %v1040 = vpack.c.b16 %v976, %v976
      %v1041 = vpack.c.b16 %v977, %v977
      %v1042 = vpack.c.b16 %v978, %v978
      %v1043 = vpack.c.b16 %v979, %v979
      %v1044 = vpack.c.b16 %v980, %v980
      %v1045 = vpack.c.b16 %v981, %v981
      %v1046 = vpack.c.b16 %v982, %v982
      %1111 = vst [vmem:[%s172] sm:$0xf] %v983
      %1112 = vst [vmem:[%s172 + $0x4] sm:$0xf] %v984
      %1113 = vst [vmem:[%s172 + $0x8] sm:$0xf] %v985
      %1114 = vst [vmem:[%s172 + $0xc] sm:$0xf] %v986
      %1115 = vst [vmem:[%s172 + $0x10] sm:$0xf] %v987
      %1116 = vst [vmem:[%s172 + $0x14] sm:$0xf] %v988
      %1117 = vst [vmem:[%s172 + $0x18] sm:$0xf] %v989
      %1118 = vst [vmem:[%s172 + $0x1c] sm:$0xf] %v990
      %1119 = vst [vmem:[%s172 + $0x20] sm:$0xf] %v991
      %1120 = vst [vmem:[%s172 + $0x24] sm:$0xf] %v992
      %1121 = vst [vmem:[%s172 + $0x28] sm:$0xf] %v993
      %1122 = vst [vmem:[%s172 + $0x2c] sm:$0xf] %v994
      %1123 = vst [vmem:[%s172 + $0x30] sm:$0xf] %v995
      %1124 = vst [vmem:[%s172 + $0x34] sm:$0xf] %v996
      %1125 = vst [vmem:[%s172 + $0x38] sm:$0xf] %v997
      %1126 = vst [vmem:[%s172 + $0x3c] sm:$0xf] %v998
      %1127 = vst [vmem:[%s172 + $0x40] sm:$0xf] %v999
      %1128 = vst [vmem:[%s172 + $0x44] sm:$0xf] %v1000
      %1129 = vst [vmem:[%s172 + $0x48] sm:$0xf] %v1001
      %1130 = vst [vmem:[%s172 + $0x4c] sm:$0xf] %v1002
      %1131 = vst [vmem:[%s172 + $0x50] sm:$0xf] %v1003
      %1132 = vst [vmem:[%s172 + $0x54] sm:$0xf] %v1004
      %1133 = vst [vmem:[%s172 + $0x58] sm:$0xf] %v1005
      %1134 = vst [vmem:[%s172 + $0x5c] sm:$0xf] %v1006
      %1135 = vst [vmem:[%s172 + $0x60] sm:$0xf] %v1007
      %1136 = vst [vmem:[%s172 + $0x64] sm:$0xf] %v1008
      %1137 = vst [vmem:[%s172 + $0x68] sm:$0xf] %v1009
      %1138 = vst [vmem:[%s172 + $0x6c] sm:$0xf] %v1010
      %1139 = vst [vmem:[%s172 + $0x70] sm:$0xf] %v1011
      %1140 = vst [vmem:[%s172 + $0x74] sm:$0xf] %v1012
      %1141 = vst [vmem:[%s172 + $0x78] sm:$0xf] %v1013
      %1142 = vst [vmem:[%s172 + $0x7c] sm:$0xf] %v1014
      %1143 = vst [vmem:[%s172 + $0x80] sm:$0xf] %v1015
      %1144 = vst [vmem:[%s172 + $0x84] sm:$0xf] %v1016
      %1145 = vst [vmem:[%s172 + $0x88] sm:$0xf] %v1017
      %1146 = vst [vmem:[%s172 + $0x8c] sm:$0xf] %v1018
      %1147 = vst [vmem:[%s172 + $0x90] sm:$0xf] %v1019
      %1148 = vst [vmem:[%s172 + $0x94] sm:$0xf] %v1020
      %1149 = vst [vmem:[%s172 + $0x98] sm:$0xf] %v1021
      %1150 = vst [vmem:[%s172 + $0x9c] sm:$0xf] %v1022
      %1151 = vst [vmem:[%s172 + $0xa0] sm:$0xf] %v1023
      %1152 = vst [vmem:[%s172 + $0xa4] sm:$0xf] %v1024
      %1153 = vst [vmem:[%s172 + $0xa8] sm:$0xf] %v1025
      %1154 = vst [vmem:[%s172 + $0xac] sm:$0xf] %v1026
      %1155 = vst [vmem:[%s172 + $0xb0] sm:$0xf] %v1027
      %1156 = vst [vmem:[%s172 + $0xb4] sm:$0xf] %v1028
      %1157 = vst [vmem:[%s172 + $0xb8] sm:$0xf] %v1029
      %1158 = vst [vmem:[%s172 + $0xbc] sm:$0xf] %v1030
      %1159 = vst [vmem:[%s172 + $0xc0] sm:$0xf] %v1031
      %1160 = vst [vmem:[%s172 + $0xc4] sm:$0xf] %v1032
      %1161 = vst [vmem:[%s172 + $0xc8] sm:$0xf] %v1033
      %1162 = vst [vmem:[%s172 + $0xcc] sm:$0xf] %v1034
      %1163 = vst [vmem:[%s172 + $0xd0] sm:$0xf] %v1035
      %1164 = vst [vmem:[%s172 + $0xd4] sm:$0xf] %v1036
      %1165 = vst [vmem:[%s172 + $0xd8] sm:$0xf] %v1037
      %1166 = vst [vmem:[%s172 + $0xdc] sm:$0xf] %v1038
      %1167 = vst [vmem:[%s172 + $0xe0] sm:$0xf] %v1039
      %1168 = vst [vmem:[%s172 + $0xe4] sm:$0xf] %v1040
      %1169 = vst [vmem:[%s172 + $0xe8] sm:$0xf] %v1041
      %1170 = vst [vmem:[%s172 + $0xec] sm:$0xf] %v1042
      %1171 = vst [vmem:[%s172 + $0xf0] sm:$0xf] %v1043
      %1172 = vst [vmem:[%s172 + $0xf4] sm:$0xf] %v1044
      %1173 = vst [vmem:[%s172 + $0xf8] sm:$0xf] %v1045
      %1174 = vst [vmem:[%s172 + $0xfc] sm:$0xf] %v1046
      %s1175 = smul.u32 64, %s14
      %p1176 = scmp.lt.s32.totalorder %s1175, 127
      %s1177 = scalar_select %p1176, %s1175, 127
      %s1178 = smul.addr %s1177, 4
      %s1179 = scalar_lea.vmem %s3, %s1178
      // Predicated region
      $region33: #{bottleneck_forward.2} parent=31 // pred_check
        %p1180 = pneg %p100
      $region34: #{bottleneck_forward.2} parent=31 // pred_check_branch
        %1182 = sbr.rel (%p1180) target = $region36
      $region35: #{bottleneck_forward.2} parent=31 // pred_region
        %s1183 = smul.u32 64, %s14
      $region36: #{bottleneck_forward.2} parent=31 // pred_fallthru
        _
    $region32: #{bottleneck_forward.2} parent=5 // pred_fallthru
      _
    %p1184 = scmp.le.s32.totalorder 2, %s9
    // Predicated region
    $region37: #{bottleneck_forward.2} parent=5 // pred_check
      %p1185 = pneg %p1184
    $region38: #{bottleneck_forward.2} parent=5 // pred_check_branch
      %1187 = sbr.rel (%p1185) target = $region40
    $region39: #{bottleneck_forward.2} parent=5 // pred_region
      %s1188 = ssub.s32 %s9, 2
      // Predicated region
      $region41: #{bottleneck_forward.2} parent=39 // pred_check
        %p1189 = pneg %p106
      $region42: #{bottleneck_forward.2} parent=39 // pred_check_branch
        %1191 = sbr.rel (%p1189) target = $region44
      $region43: #{bottleneck_forward.2} parent=39 // pred_region
        %s1192 = smul.u32 64, %s15
        %p1193 = scmp.lt.s32.totalorder %s1192, 127
        %s1194 = scalar_select %p1193, %s1192, 127
        %s1195 = smul.addr %s1194, 4
        %s1196 = scalar_lea.vmem %s3, %s1195
      $region44: #{bottleneck_forward.2} parent=39 // pred_fallthru
        _
    $region40: #{bottleneck_forward.2} parent=5 // pred_fallthru
      _
  $region6: #{bottleneck_forward.2} parent=0 // loop_footer
    %s13 = sadd.s32 1, %s9
  $region7: #{bottleneck_forward.2} parent=0 // loop_footer_branch
    %8 = sbr.rel target = $region3
  $region8: #{bottleneck_forward.2} parent=0 // loop_exit
    _

// kernel: bottleneck_forward.3
$region0: #{bottleneck_forward.3}
  #allocation0 [shape = 'u32[]', space=smem, size = 0x4, offset = 0x4, fixed_abs, tag = 'smem constant byte address 0x4 - core index']
  #allocation1 [shape = 'u32[144,128]{1,0:T(1,128)}', space=vmem, size = 0x12000, scoped, tag = 'internal scratch']
  %s0 = inlined_call_operand.vmem [shape: bf16[2,10,104,128], index: 0, kind: input, shape index: {}, may-alias: {0,1,2}]
  %s1 = inlined_call_operand.vmem [shape: bf16[2,10,104,128], index: 1, kind: input, shape index: {}, may-alias: {0,1,2}]
  %s2 = inlined_call_operand.vmem [shape: bf16[2,10,104,128], index: 2, kind: input, shape index: {}, may-alias: {0,1,2}]
  %s3 = inlined_call_operand.vmem [shape: bf16[3456,128], index: 3, kind: input, shape index: {}]
  %s4 = inlined_call_operand.vmem [shape: f32[1,128], index: 4, kind: input, shape index: {}]
  %s5 = inlined_call_operand.vmem [shape: bf16[128,128], index: 5, kind: input, shape index: {}]
  %s6 = inlined_call_operand.vmem [shape: f32[1,128], index: 6, kind: input, shape index: {}]
  %s7 = inlined_call_operand.vmem [shape: f32[2,8,80,128], index: 7, kind: input, shape index: {}, may-alias: {7,8}]
  %s8 = inlined_call_operand.vmem [shape: f32[2,8,80,128], index: 8, kind: output, shape index: {}, may-alias: {7,8}]
  %s9 = sld [smem:[#allocation0]]
  $region65: #{bottleneck_forward.3} parent=0
    _
  %s11 = ssub.s32 1, %s9
  %s12 = scalar_select 0, %s11, %s9
  loop: start=0, step=1, limit=18
  $region2: #{bottleneck_forward.3} parent=0 // loop_pre_header
    _
  $region3: #{bottleneck_forward.3} parent=0 // loop_header
    %s14 = sphi 0, %s18
    %p15 = scmp.ge.s32.totalorder %s14, 18
    %s21 = sphi 0, %s33
    %s22 = sphi 0, %s29
    %s23 = sphi 0, %s21
    %s24 = sphi 0, %s22
    %s25 = sphi 0, %s23
    %s26 = sphi 0, %s24
    %s38 = sphi 0, %s40
    %s41 = sphi 0, %s38
    %s42 = sphi 0, %s41
    %s58 = sphi 0, %s42
    %s68 = sphi 0, %s70
    %s71 = sphi 0, %s68
    %s72 = sphi 0, %s71
    %s88 = sphi 0, %s72
    %s98 = sphi 0, %s100
    %s101 = sphi 0, %s98
    %s102 = sphi 0, %s101
    %s118 = sphi 0, %s102
    %s122 = sphi 0, %s122
    %s124 = sphi 0, %s122
    %s125 = sphi 0, %s124
    %s139 = sphi 0, %s125
    %s143 = sphi 0, %s143
    %s145 = sphi 0, %s143
    %s146 = sphi 0, %s145
    %s160 = sphi 0, %s146
    %s164 = sphi 0, %s164
    %s166 = sphi 0, %s164
    %s167 = sphi 0, %s166
    %s181 = sphi 0, %s167
    %s185 = sphi 0, %s185
    %s187 = sphi 0, %s185
    %s188 = sphi 0, %s187
    %s202 = sphi 0, %s188
    %s210 = sphi 0, %s212
    %s213 = sphi 0, %s210
    %s214 = sphi 0, %s213
    %s230 = sphi 0, %s214
    %s238 = sphi 0, %s240
    %s241 = sphi 0, %s238
    %s242 = sphi 0, %s241
    %s258 = sphi 0, %s242
  $region4: #{bottleneck_forward.3} parent=0 // loop_header_branch
    %17 = sbr.rel (%p15) target = $region8
  $region5: #{bottleneck_forward.3} parent=0 // loop_body
    %s19 = ssub.s32 %s14, 1
    %s20 = ssub.s32 %s14, 2
    %s27 = sadd.s32 1, %s22
    %p28 = scmp.ge.s32.totalorder %s27, 8
    %s29 = scalar_select %p28, 0, %s27
    %s30 = sadd.s32 1, %s21
    %s31 = scalar_select %p28, %s30, %s21
    %p32 = scmp.ge.s32.totalorder %s31, 2
    %s33 = scalar_select %p32, 0, %s31
    %s34 = ssub.s32 %s21, %s33
    %s35 = ssub.s32 %s22, %s29
    %s36 = sor.u32 %s34, %s35
    %p37 = scmp.eq.s32.totalorder %s36, 0
    %s39 = sadd.s32 %s38, 1
    %s40 = scalar_select %p37, %s38, %s39
    %p43 = pneg %p37
    %p44 = scmp.eq.s32.totalorder %s14, 15
    %p45 = por %p43, %p44
    %p46 = scmp.ne.s32.totalorder %s38, %s41
    %p47 = scmp.eq.s32.totalorder %s14, 0
    %p48 = por %p46, %p47
    %p49 = scmp.ne.s32.totalorder %s38, %s41
    %p50 = scmp.eq.s32.totalorder %s19, 15
    %p51 = por %p49, %p50
    %p52 = scmp.ne.s32.totalorder %s41, %s42
    %p53 = scmp.eq.s32.totalorder %s19, 0
    %p54 = por %p52, %p53
    %p55 = scmp.ne.s32.totalorder %s41, %s42
    %p56 = scmp.eq.s32.totalorder %s20, 15
    %p57 = por %p55, %p56
    %p59 = scmp.ne.s32.totalorder %s42, %s58
    %p60 = scmp.eq.s32.totalorder %s20, 0
    %p61 = por %p59, %p60
    %s62 = sadd.s32 %s22, 1
    %s63 = sadd.s32 %s29, 1
    %s64 = ssub.s32 %s21, %s33
    %s65 = ssub.s32 %s62, %s63
    %s66 = sor.u32 %s64, %s65
    %p67 = scmp.eq.s32.totalorder %s66, 0
    %s69 = sadd.s32 %s68, 1
    %s70 = scalar_select %p67, %s68, %s69
    %p73 = pneg %p67
    %p74 = scmp.eq.s32.totalorder %s14, 15
    %p75 = por %p73, %p74
    %p76 = scmp.ne.s32.totalorder %s68, %s71
    %p77 = scmp.eq.s32.totalorder %s14, 0
    %p78 = por %p76, %p77
    %p79 = scmp.ne.s32.totalorder %s68, %s71
    %p80 = scmp.eq.s32.totalorder %s19, 15
    %p81 = por %p79, %p80
    %p82 = scmp.ne.s32.totalorder %s71, %s72
    %p83 = scmp.eq.s32.totalorder %s19, 0
    %p84 = por %p82, %p83
    %p85 = scmp.ne.s32.totalorder %s71, %s72
    %p86 = scmp.eq.s32.totalorder %s20, 15
    %p87 = por %p85, %p86
    %p89 = scmp.ne.s32.totalorder %s72, %s88
    %p90 = scmp.eq.s32.totalorder %s20, 0
    %p91 = por %p89, %p90
    %s92 = sadd.s32 %s22, 2
    %s93 = sadd.s32 %s29, 2
    %s94 = ssub.s32 %s21, %s33
    %s95 = ssub.s32 %s92, %s93
    %s96 = sor.u32 %s94, %s95
    %p97 = scmp.eq.s32.totalorder %s96, 0
    %s99 = sadd.s32 %s98, 1
    %s100 = scalar_select %p97, %s98, %s99
    %p103 = pneg %p97
    %p104 = scmp.eq.s32.totalorder %s14, 15
    %p105 = por %p103, %p104
    %p106 = scmp.ne.s32.totalorder %s98, %s101
    %p107 = scmp.eq.s32.totalorder %s14, 0
    %p108 = por %p106, %p107
    %p109 = scmp.ne.s32.totalorder %s98, %s101
    %p110 = scmp.eq.s32.totalorder %s19, 15
    %p111 = por %p109, %p110
    %p112 = scmp.ne.s32.totalorder %s101, %s102
    %p113 = scmp.eq.s32.totalorder %s19, 0
    %p114 = por %p112, %p113
    %p115 = scmp.ne.s32.totalorder %s101, %s102
    %p116 = scmp.eq.s32.totalorder %s20, 15
    %p117 = por %p115, %p116
    %p119 = scmp.ne.s32.totalorder %s102, %s118
    %p120 = scmp.eq.s32.totalorder %s20, 0
    %p121 = por %p119, %p120
    %s123 = sadd.s32 %s122, 1
    %p126 = scmp.eq.s32.totalorder %s14, 15
    %p127 = scmp.ne.s32.totalorder %s122, %s124
    %p128 = scmp.eq.s32.totalorder %s14, 0
    %p129 = por %p127, %p128
    %p130 = scmp.ne.s32.totalorder %s122, %s124
    %p131 = scmp.eq.s32.totalorder %s19, 15
    %p132 = por %p130, %p131
    %p133 = scmp.ne.s32.totalorder %s124, %s125
    %p134 = scmp.eq.s32.totalorder %s19, 0
    %p135 = por %p133, %p134
    %p136 = scmp.ne.s32.totalorder %s124, %s125
    %p137 = scmp.eq.s32.totalorder %s20, 15
    %p138 = por %p136, %p137
    %p140 = scmp.ne.s32.totalorder %s125, %s139
    %p141 = scmp.eq.s32.totalorder %s20, 0
    %p142 = por %p140, %p141
    %s144 = sadd.s32 %s143, 1
    %p147 = scmp.eq.s32.totalorder %s14, 15
    %p148 = scmp.ne.s32.totalorder %s143, %s145
    %p149 = scmp.eq.s32.totalorder %s14, 0
    %p150 = por %p148, %p149
    %p151 = scmp.ne.s32.totalorder %s143, %s145
    %p152 = scmp.eq.s32.totalorder %s19, 15
    %p153 = por %p151, %p152
    %p154 = scmp.ne.s32.totalorder %s145, %s146
    %p155 = scmp.eq.s32.totalorder %s19, 0
    %p156 = por %p154, %p155
    %p157 = scmp.ne.s32.totalorder %s145, %s146
    %p158 = scmp.eq.s32.totalorder %s20, 15
    %p159 = por %p157, %p158
    %p161 = scmp.ne.s32.totalorder %s146, %s160
    %p162 = scmp.eq.s32.totalorder %s20, 0
    %p163 = por %p161, %p162
    %s165 = sadd.s32 %s164, 1
    %p168 = scmp.eq.s32.totalorder %s14, 15
    %p169 = scmp.ne.s32.totalorder %s164, %s166
    %p170 = scmp.eq.s32.totalorder %s14, 0
    %p171 = por %p169, %p170
    %p172 = scmp.ne.s32.totalorder %s164, %s166
    %p173 = scmp.eq.s32.totalorder %s19, 15
    %p174 = por %p172, %p173
    %p175 = scmp.ne.s32.totalorder %s166, %s167
    %p176 = scmp.eq.s32.totalorder %s19, 0
    %p177 = por %p175, %p176
    %p178 = scmp.ne.s32.totalorder %s166, %s167
    %p179 = scmp.eq.s32.totalorder %s20, 15
    %p180 = por %p178, %p179
    %p182 = scmp.ne.s32.totalorder %s167, %s181
    %p183 = scmp.eq.s32.totalorder %s20, 0
    %p184 = por %p182, %p183
    %s186 = sadd.s32 %s185, 1
    %p189 = scmp.eq.s32.totalorder %s14, 15
    %p190 = scmp.ne.s32.totalorder %s185, %s187
    %p191 = scmp.eq.s32.totalorder %s14, 0
    %p192 = por %p190, %p191
    %p193 = scmp.ne.s32.totalorder %s185, %s187
    %p194 = scmp.eq.s32.totalorder %s19, 15
    %p195 = por %p193, %p194
    %p196 = scmp.ne.s32.totalorder %s187, %s188
    %p197 = scmp.eq.s32.totalorder %s19, 0
    %p198 = por %p196, %p197
    %p199 = scmp.ne.s32.totalorder %s187, %s188
    %p200 = scmp.eq.s32.totalorder %s20, 15
    %p201 = por %p199, %p200
    %p203 = scmp.ne.s32.totalorder %s188, %s202
    %p204 = scmp.eq.s32.totalorder %s20, 0
    %p205 = por %p203, %p204
    %s206 = ssub.s32 %s21, %s33
    %s207 = ssub.s32 %s22, %s29
    %s208 = sor.u32 %s206, %s207
    %p209 = scmp.eq.s32.totalorder %s208, 0
    %s211 = sadd.s32 %s210, 1
    %s212 = scalar_select %p209, %s210, %s211
    %p215 = pneg %p209
    %p216 = scmp.eq.s32.totalorder %s14, 15
    %p217 = por %p215, %p216
    %p218 = scmp.ne.s32.totalorder %s210, %s213
    %p219 = scmp.eq.s32.totalorder %s14, 0
    %p220 = por %p218, %p219
    %p221 = scmp.ne.s32.totalorder %s210, %s213
    %p222 = scmp.eq.s32.totalorder %s19, 15
    %p223 = por %p221, %p222
    %p224 = scmp.ne.s32.totalorder %s213, %s214
    %p225 = scmp.eq.s32.totalorder %s19, 0
    %p226 = por %p224, %p225
    %p227 = scmp.ne.s32.totalorder %s213, %s214
    %p228 = scmp.eq.s32.totalorder %s20, 15
    %p229 = por %p227, %p228
    %p231 = scmp.ne.s32.totalorder %s214, %s230
    %p232 = scmp.eq.s32.totalorder %s20, 0
    %p233 = por %p231, %p232
    %s234 = ssub.s32 %s21, %s33
    %s235 = ssub.s32 %s22, %s29
    %s236 = sor.u32 %s234, %s235
    %p237 = scmp.eq.s32.totalorder %s236, 0
    %s239 = sadd.s32 %s238, 1
    %s240 = scalar_select %p237, %s238, %s239
    %p243 = pneg %p237
    %p244 = scmp.eq.s32.totalorder %s14, 15
    %p245 = por %p243, %p244
    %p246 = scmp.ne.s32.totalorder %s238, %s241
    %p247 = scmp.eq.s32.totalorder %s14, 0
    %p248 = por %p246, %p247
    %p249 = scmp.ne.s32.totalorder %s238, %s241
    %p250 = scmp.eq.s32.totalorder %s19, 15
    %p251 = por %p249, %p250
    %p252 = scmp.ne.s32.totalorder %s241, %s242
    %p253 = scmp.eq.s32.totalorder %s19, 0
    %p254 = por %p252, %p253
    %p255 = scmp.ne.s32.totalorder %s241, %s242
    %p256 = scmp.eq.s32.totalorder %s20, 15
    %p257 = por %p255, %p256
    %p259 = scmp.ne.s32.totalorder %s242, %s258
    %p260 = scmp.eq.s32.totalorder %s20, 0
    %p261 = por %p259, %p260
    %p262 = scmp.le.s32.totalorder 1, %s14
    %p263 = scmp.lt.s32.totalorder %s14, 17
    %p264 = pnand %p262, %p263
    %p265 = pneg %p264
    // Predicated region
    $region9: #{bottleneck_forward.3} parent=5 // pred_check
      _
    $region10: #{bottleneck_forward.3} parent=5 // pred_check_branch
      %267 = sbr.rel (%p264) target = $region12
    $region11: #{bottleneck_forward.3} parent=5 // pred_region
      %s268 = ssub.s32 %s14, 1
      // Predicated region
      $region13: #{bottleneck_forward.3} parent=11 // pred_check
        %p269 = pneg %p135
      $region14: #{bottleneck_forward.3} parent=11 // pred_check_branch
        %271 = sbr.rel (%p269) target = $region16
      $region15: #{bottleneck_forward.3} parent=11 // pred_region
        _
      $region16: #{bottleneck_forward.3} parent=11 // pred_fallthru
        _
      // Predicated region
      $region17: #{bottleneck_forward.3} parent=11 // pred_check
        %p272 = pneg %p156
      $region18: #{bottleneck_forward.3} parent=11 // pred_check_branch
        %274 = sbr.rel (%p272) target = $region20
      $region19: #{bottleneck_forward.3} parent=11 // pred_region
        _
      $region20: #{bottleneck_forward.3} parent=11 // pred_fallthru
        _
      // Predicated region
      $region21: #{bottleneck_forward.3} parent=11 // pred_check
        %p275 = pneg %p177
      $region22: #{bottleneck_forward.3} parent=11 // pred_check_branch
        %277 = sbr.rel (%p275) target = $region24
      $region23: #{bottleneck_forward.3} parent=11 // pred_region
        _
      $region24: #{bottleneck_forward.3} parent=11 // pred_fallthru
        _
      // Predicated region
      $region25: #{bottleneck_forward.3} parent=11 // pred_check
        %p278 = pneg %p198
      $region26: #{bottleneck_forward.3} parent=11 // pred_check_branch
        %280 = sbr.rel (%p278) target = $region28
      $region27: #{bottleneck_forward.3} parent=11 // pred_region
        _
      $region28: #{bottleneck_forward.3} parent=11 // pred_fallthru
        _
    $region12: #{bottleneck_forward.3} parent=5 // pred_fallthru
      _
    %p281 = scmp.lt.s32.totalorder %s14, 16
    // Predicated region
    $region29: #{bottleneck_forward.3} parent=5 // pred_check
      %p282 = pneg %p281
    $region30: #{bottleneck_forward.3} parent=5 // pred_check_branch
      %284 = sbr.rel (%p282) target = $region32
    $region31: #{bottleneck_forward.3} parent=5 // pred_region
      // Predicated region
      $region33: #{bottleneck_forward.3} parent=31 // pred_check
        %p285 = pneg %p48
      $region34: #{bottleneck_forward.3} parent=31 // pred_check_branch
        %287 = sbr.rel (%p285) target = $region36
      $region35: #{bottleneck_forward.3} parent=31 // pred_region
        %p288 = scmp.lt.s32.totalorder %s21, 1
        %s289 = scalar_select %p288, %s21, 1
        %p290 = scmp.lt.s32.totalorder %s22, 9
        %s291 = scalar_select %p290, %s22, 9
        %s292 = smul.addr %s291, 13
        %s293 = smul.addr %s289, 130
        %s294 = sadd.s32 %s292, %s293
        %s295 = smul.addr %s294, 4
        %s296 = scalar_lea.vmem %s0, %s295
      $region36: #{bottleneck_forward.3} parent=31 // pred_fallthru
        _
      // Predicated region
      $region37: #{bottleneck_forward.3} parent=31 // pred_check
        %p297 = pneg %p78
      $region38: #{bottleneck_forward.3} parent=31 // pred_check_branch
        %299 = sbr.rel (%p297) target = $region40
      $region39: #{bottleneck_forward.3} parent=31 // pred_region
        %s300 = sadd.s32 %s22, 1
        %p301 = scmp.lt.s32.totalorder %s21, 1
        %s302 = scalar_select %p301, %s21, 1
        %p303 = scmp.lt.s32.totalorder %s300, 9
        %s304 = scalar_select %p303, %s300, 9
        %s305 = smul.addr %s304, 13
        %s306 = smul.addr %s302, 130
        %s307 = sadd.s32 %s305, %s306
        %s308 = smul.addr %s307, 4
        %s309 = scalar_lea.vmem %s1, %s308
        %s310 = sadd.s32 %s22, 1
      $region40: #{bottleneck_forward.3} parent=31 // pred_fallthru
        _
      // Predicated region
      $region41: #{bottleneck_forward.3} parent=31 // pred_check
        %p311 = pneg %p108
      $region42: #{bottleneck_forward.3} parent=31 // pred_check_branch
        %313 = sbr.rel (%p311) target = $region44
      $region43: #{bottleneck_forward.3} parent=31 // pred_region
        %s314 = sadd.s32 %s22, 2
        %p315 = scmp.lt.s32.totalorder %s21, 1
        %s316 = scalar_select %p315, %s21, 1
        %p317 = scmp.lt.s32.totalorder %s314, 9
        %s318 = scalar_select %p317, %s314, 9
        %s319 = smul.addr %s318, 13
        %s320 = smul.addr %s316, 130
        %s321 = sadd.s32 %s319, %s320
        %s322 = smul.addr %s321, 4
        %s323 = scalar_lea.vmem %s2, %s322
        %s324 = sadd.s32 %s22, 2
      $region44: #{bottleneck_forward.3} parent=31 // pred_fallthru
        _
      // Predicated region
      $region45: #{bottleneck_forward.3} parent=31 // pred_check
        %p325 = pneg %p220
      $region46: #{bottleneck_forward.3} parent=31 // pred_check_branch
        %327 = sbr.rel (%p325) target = $region48
      $region47: #{bottleneck_forward.3} parent=31 // pred_region
        %p328 = scmp.lt.s32.totalorder %s21, 1
        %s329 = scalar_select %p328, %s21, 1
        %p330 = scmp.lt.s32.totalorder %s22, 7
        %s331 = scalar_select %p330, %s22, 7
        %s332 = smul.addr %s331, 10
        %s333 = smul.addr %s329, 80
        %s334 = sadd.s32 %s332, %s333
        %s335 = smul.addr %s334, 8
        %s336 = scalar_lea.vmem %s7, %s335
      $region48: #{bottleneck_forward.3} parent=31 // pred_fallthru
        _
    $region32: #{bottleneck_forward.3} parent=5 // pred_fallthru
      _
    %p337 = scmp.le.s32.totalorder 1, %s14
    %p338 = scmp.lt.s32.totalorder %s14, 17
    %p339 = pnand %p337, %p338
    %p340 = pneg %p339
    // Predicated region
    $region49: #{bottleneck_forward.3} parent=5 // pred_check
      _
    $region50: #{bottleneck_forward.3} parent=5 // pred_check_branch
      %342 = sbr.rel (%p339) target = $region52
    $region51: #{bottleneck_forward.3} parent=5 // pred_region
      %s343 = ssub.s32 %s14, 1
      %p344 = scmp.lt.s32.totalorder %s23, 1
      %s345 = scalar_select %p344, %s23, 1
      %p346 = scmp.lt.s32.totalorder %s24, 9
      %s347 = scalar_select %p346, %s24, 9
      %s348 = smul.addr %s347, 13
      %s349 = smul.addr %s345, 130
      %s350 = sadd.s32 %s348, %s349
      %s351 = smul.addr %s350, 4
      %s352 = scalar_lea.vmem %s0, %s351
      %p353 = pneg %p54
      %p354 = pneg %p51
      %s355 = sadd.s32 %s24, 1
      %p356 = scmp.lt.s32.totalorder %s23, 1
      %s357 = scalar_select %p356, %s23, 1
      %p358 = scmp.lt.s32.totalorder %s355, 9
      %s359 = scalar_select %p358, %s355, 9
      %s360 = smul.addr %s359, 13
      %s361 = smul.addr %s357, 130
      %s362 = sadd.s32 %s360, %s361
      %s363 = smul.addr %s362, 4
      %s364 = scalar_lea.vmem %s1, %s363
      %p365 = pneg %p84
      %p366 = pneg %p81
      %s367 = sadd.s32 %s24, 2
      %p368 = scmp.lt.s32.totalorder %s23, 1
      %s369 = scalar_select %p368, %s23, 1
      %p370 = scmp.lt.s32.totalorder %s367, 9
      %s371 = scalar_select %p370, %s367, 9
      %s372 = smul.addr %s371, 13
      %s373 = smul.addr %s369, 130
      %s374 = sadd.s32 %s372, %s373
      %s375 = smul.addr %s374, 4
      %s376 = scalar_lea.vmem %s2, %s375
      %p377 = pneg %p114
      %p378 = pneg %p111
      %p379 = pneg %p135
      %p380 = pneg %p132
      %p381 = pneg %p156
      %p382 = pneg %p153
      %p383 = pneg %p177
      %p384 = pneg %p174
      %p385 = pneg %p198
      %p386 = pneg %p195
      %p387 = scmp.lt.s32.totalorder %s23, 1
      %s388 = scalar_select %p387, %s23, 1
      %p389 = scmp.lt.s32.totalorder %s24, 7
      %s390 = scalar_select %p389, %s24, 7
      %s391 = smul.addr %s390, 10
      %s392 = smul.addr %s388, 80
      %s393 = sadd.s32 %s391, %s392
      %s394 = smul.addr %s393, 8
      %s395 = scalar_lea.vmem %s7, %s394
      %p396 = pneg %p226
      %p397 = pneg %p223
      %p398 = pneg %p254
      %p399 = pneg %p251
      %p400 = scmp.lt.s32.totalorder %s23, 1
      %s401 = scalar_select %p400, %s23, 1
      %p402 = scmp.lt.s32.totalorder %s24, 7
      %s403 = scalar_select %p402, %s24, 7
      %s404 = smul.addr %s403, 10
      %s405 = smul.addr %s401, 80
      %s406 = sadd.s32 %s404, %s405
      %s407 = smul.addr %s406, 8
      %s408 = scalar_lea.vmem %s8, %s407
      %p409 = scmp.lt.s32.totalorder %s23, 1
      %s410 = scalar_select %p409, %s23, 1
      %p411 = scmp.lt.s32.totalorder %s24, 9
      %s412 = scalar_select %p411, %s24, 9
      %s413 = smul.addr %s412, 13
      %s414 = smul.addr %s410, 130
      %s415 = sadd.s32 %s413, %s414
      %s416 = smul.addr %s415, 4
      %s417 = scalar_lea.vmem %s0, %s416
      %s418 = sadd.s32 %s24, 1
      %p419 = scmp.lt.s32.totalorder %s23, 1
      %s420 = scalar_select %p419, %s23, 1
      %p421 = scmp.lt.s32.totalorder %s418, 9
      %s422 = scalar_select %p421, %s418, 9
      %s423 = smul.addr %s422, 13
      %s424 = smul.addr %s420, 130
      %s425 = sadd.s32 %s423, %s424
      %s426 = smul.addr %s425, 4
      %s427 = scalar_lea.vmem %s1, %s426
      %s428 = sadd.s32 %s24, 1
      %s429 = sadd.s32 %s24, 2
      %p430 = scmp.lt.s32.totalorder %s23, 1
      %s431 = scalar_select %p430, %s23, 1
      %p432 = scmp.lt.s32.totalorder %s429, 9
      %s433 = scalar_select %p432, %s429, 9
      %s434 = smul.addr %s433, 13
      %s435 = smul.addr %s431, 130
      %s436 = sadd.s32 %s434, %s435
      %s437 = smul.addr %s436, 4
      %s438 = scalar_lea.vmem %s2, %s437
      %s439 = sadd.s32 %s24, 2
      %p440 = scmp.lt.s32.totalorder %s23, 1
      %s441 = scalar_select %p440, %s23, 1
      %p442 = scmp.lt.s32.totalorder %s24, 7
      %s443 = scalar_select %p442, %s24, 7
      %s444 = smul.addr %s443, 10
      %s445 = smul.addr %s441, 80
      %s446 = sadd.s32 %s444, %s445
      %s447 = smul.addr %s446, 8
      %s448 = scalar_lea.vmem %s7, %s447
      %p449 = scmp.lt.s32.totalorder %s23, 1
      %s450 = scalar_select %p449, %s23, 1
      %p451 = scmp.lt.s32.totalorder %s24, 7
      %s452 = scalar_select %p451, %s24, 7
      %s453 = smul.addr %s452, 10
      %s454 = smul.addr %s450, 80
      %s455 = sadd.s32 %s453, %s454
      %s456 = smul.addr %s455, 8
      %s457 = scalar_lea.vmem %s8, %s456
      %v459 = vld [vmem:[%s417] sm:$0xf]
      %v460 = vld [vmem:[%s417 + $0x4] sm:$0xf]
      %v461 = vld [vmem:[%s417 + $0x8] sm:$0xf]
      %v462 = vld [vmem:[%s417 + $0xc] sm:$0xf]
      %v463 = vld [vmem:[%s417 + $0x10] sm:$0xf]
      %v464 = vld [vmem:[%s417 + $0x14] sm:$0xf]
      %v465 = vld [vmem:[%s417 + $0x18] sm:$0xf]
      %v466 = vld [vmem:[%s417 + $0x1c] sm:$0xf]
      %v467 = vld [vmem:[%s417 + $0x20] sm:$0xf]
      %v468 = vld [vmem:[%s417 + $0x24] sm:$0xf]
      %v469 = vld [vmem:[%s417 + $0x28] sm:$0x1]
      %v470 = vld [vmem:[%s417] sm:$0xe]
      %v471 = vld [vmem:[%s417 + $0x4] sm:$0xe]
      %v472 = vld [vmem:[%s417 + $0x28] sm:$0xf]
      %v473 = vld [vmem:[%s417 + $0x2c] sm:$0x1]
      %v474 = vld [vmem:[%s417 + $0x2c] sm:$0x3]
      %v475 = vld [vmem:[%s417 + $0x4] sm:$0xc]
      %v476 = vld [vmem:[%s417 + $0x8] sm:$0xc]
      %v477 = vld [vmem:[%s417 + $0xc] sm:$0xf]
      %v478 = vld [vmem:[%s417 + $0x10] sm:$0xf]
      %v479 = vld [vmem:[%s417 + $0x14] sm:$0xf]
      %v480 = vld [vmem:[%s417 + $0x18] sm:$0xf]
      %v481 = vld [vmem:[%s417 + $0x1c] sm:$0xf]
      %v482 = vld [vmem:[%s417 + $0x20] sm:$0xf]
      %v483 = vld [vmem:[%s417 + $0x24] sm:$0xf]
      %v484 = vld [vmem:[%s417 + $0x28] sm:$0xf]
      %v485 = vld [vmem:[%s417 + $0x2c] sm:$0xf]
      %v486 = vld [vmem:[%s417 + $0x30] sm:$0x3]
      %v487 = vld [vmem:[%s417 + $0x30] sm:$0x7]
      %v488 = vld [vmem:[%s417 + $0x8] sm:$0x8]
      %v489 = vld [vmem:[%s427] sm:$0xf]
      %v490 = vld [vmem:[%s427 + $0x4] sm:$0xf]
      %v491 = vld [vmem:[%s427 + $0x8] sm:$0xf]
      %v492 = vld [vmem:[%s427 + $0xc] sm:$0xf]
      %v493 = vld [vmem:[%s427 + $0x10] sm:$0xf]
      %v494 = vld [vmem:[%s427 + $0x14] sm:$0xf]
      %v495 = vld [vmem:[%s427 + $0x18] sm:$0xf]
      %v496 = vld [vmem:[%s427 + $0x1c] sm:$0xf]
      %v497 = vld [vmem:[%s427 + $0x20] sm:$0xf]
      %v498 = vld [vmem:[%s427 + $0x24] sm:$0xf]
      %v499 = vld [vmem:[%s427 + $0x28] sm:$0x1]
      %v500 = vld [vmem:[%s427] sm:$0xe]
      %v501 = vld [vmem:[%s427 + $0x4] sm:$0xe]
      %v502 = vld [vmem:[%s427 + $0x28] sm:$0xf]
      %v503 = vld [vmem:[%s427 + $0x2c] sm:$0x1]
      %v504 = vld [vmem:[%s427 + $0x2c] sm:$0x3]
      %v505 = vld [vmem:[%s427 + $0x4] sm:$0xc]
      %v506 = vld [vmem:[%s427 + $0x8] sm:$0xc]
      %v507 = vld [vmem:[%s427 + $0xc] sm:$0xf]
      %v508 = vld [vmem:[%s427 + $0x10] sm:$0xf]
      %v509 = vld [vmem:[%s427 + $0x14] sm:$0xf]
      %v510 = vld [vmem:[%s427 + $0x18] sm:$0xf]
      %v511 = vld [vmem:[%s427 + $0x1c] sm:$0xf]
      %v512 = vld [vmem:[%s427 + $0x20] sm:$0xf]
      %v513 = vld [vmem:[%s427 + $0x24] sm:$0xf]
      %v514 = vld [vmem:[%s427 + $0x28] sm:$0xf]
      %v515 = vld [vmem:[%s427 + $0x2c] sm:$0xf]
      %v516 = vld [vmem:[%s427 + $0x30] sm:$0x3]
      %v517 = vld [vmem:[%s427 + $0x30] sm:$0x7]
      %v518 = vld [vmem:[%s427 + $0x8] sm:$0x8]
      %v519 = vld [vmem:[%s438] sm:$0xf]
      %v520 = vld [vmem:[%s438 + $0x4] sm:$0xf]
      %v521 = vld [vmem:[%s438 + $0x8] sm:$0xf]
      %v522 = vld [vmem:[%s438 + $0xc] sm:$0xf]
      %v523 = vld [vmem:[%s438 + $0x10] sm:$0xf]
      %v524 = vld [vmem:[%s438 + $0x14] sm:$0xf]
      %v525 = vld [vmem:[%s438 + $0x18] sm:$0xf]
      %v526 = vld [vmem:[%s438 + $0x1c] sm:$0xf]
      %v527 = vld [vmem:[%s438 + $0x20] sm:$0xf]
      %v528 = vld [vmem:[%s438 + $0x24] sm:$0xf]
      %v529 = vld [vmem:[%s438 + $0x28] sm:$0x1]
      %v530 = vld [vmem:[%s438] sm:$0xe]
      %v531 = vld [vmem:[%s438 + $0x4] sm:$0xe]
      %v532 = vld [vmem:[%s438 + $0x28] sm:$0xf]
      %v533 = vld [vmem:[%s438 + $0x2c] sm:$0x1]
      %v534 = vld [vmem:[%s438 + $0x2c] sm:$0x3]
      %v535 = vld [vmem:[%s438 + $0x4] sm:$0xc]
      %v536 = vld [vmem:[%s438 + $0x8] sm:$0xc]
      %v537 = vld [vmem:[%s438 + $0xc] sm:$0xf]
      %v538 = vld [vmem:[%s438 + $0x10] sm:$0xf]
      %v539 = vld [vmem:[%s438 + $0x14] sm:$0xf]
      %v540 = vld [vmem:[%s438 + $0x18] sm:$0xf]
      %v541 = vld [vmem:[%s438 + $0x1c] sm:$0xf]
      %v542 = vld [vmem:[%s438 + $0x20] sm:$0xf]
      %v543 = vld [vmem:[%s438 + $0x24] sm:$0xf]
      %v544 = vld [vmem:[%s438 + $0x28] sm:$0xf]
      %v545 = vld [vmem:[%s438 + $0x2c] sm:$0xf]
      %v546 = vld [vmem:[%s438 + $0x30] sm:$0x3]
      %v547 = vld [vmem:[%s438 + $0x30] sm:$0x7]
      %v548 = vld [vmem:[%s438 + $0x8] sm:$0x8]
      %v559 = vunpack.c.l.b16 %v459
      %v560 = vunpack.c.l.b16 %v460
      %v561 = vunpack.c.l.b16 %v461
      %v562 = vunpack.c.l.b16 %v462
      %v563 = vunpack.c.l.b16 %v463
      %v564 = vunpack.c.l.b16 %v464
      %v565 = vunpack.c.l.b16 %v465
      %v566 = vunpack.c.l.b16 %v466
      %v567 = vunpack.c.l.b16 %v467
      %v568 = vunpack.c.l.b16 %v468
      %v569 = vpack.c.b16 %v560, %v559
      %v570 = vpack.c.b16 %v562, %v561
      %v571 = vpack.c.b16 %v564, %v563
      %v572 = vpack.c.b16 %v566, %v565
      %v573 = vpack.c.b16 %v568, %v567
      %v580 = vunpack.c.l.b16 %v469
      %v581 = vpack.c.b16 %v580, %v580
      %vm582 = vsmask.f32 7424
      %v584 = vshrl.u32 %v569, 16
      %v586 = vshll.u32 %v569, 16
      %v588 = vrot.slane %v586, 1
      %v589 = vor.u32 %v584, %v588
      %v591 = vshll.u32 %v570, 16
      %v593 = vrot.slane %v591, 1
      %v594 = vsel %vm582, %v589, %v593
      %v595 = vshrl.u32 %v570, 16
      %v597 = vor.u32 %v595, %v593
      %v599 = vshll.u32 %v571, 16
      %v601 = vrot.slane %v599, 1
      %v602 = vsel %vm582, %v597, %v601
      %v603 = vshrl.u32 %v571, 16
      %v605 = vor.u32 %v603, %v601
      %v607 = vshll.u32 %v572, 16
      %v609 = vrot.slane %v607, 1
      %v610 = vsel %vm582, %v605, %v609
      %v611 = vshrl.u32 %v572, 16
      %v613 = vor.u32 %v611, %v609
      %v615 = vshll.u32 %v573, 16
      %v617 = vrot.slane %v615, 1
      %v618 = vsel %vm582, %v613, %v617
      %v619 = vshrl.u32 %v573, 16
      %v621 = vor.u32 %v619, %v617
      %v623 = vshll.u32 %v581, 16
      %v625 = vrot.slane %v623, 1
      %v626 = vsel %vm582, %v621, %v625
      %v633 = vunpack.c.l.b16 %v470
      %v634 = vpack.c.b16 %v560, %v633
      %vm635 = vcmask 1046528
      %v636 = vrot.slane %v634, 1
      %v637 = vrot.slane %v570, 1
      %v638 = vsel %vm635, %v636, %v637
      %v639 = vrot.slane %v571, 1
      %v640 = vsel %vm635, %v637, %v639
      %v641 = vrot.slane %v572, 1
      %v642 = vsel %vm635, %v639, %v641
      %v643 = vrot.slane %v573, 1
      %v644 = vsel %vm635, %v641, %v643
      %v645 = vrot.slane %v581, 1
      %v646 = vsel %vm635, %v643, %v645
      %v655 = vunpack.c.l.b16 %v471
      %v656 = vunpack.c.l.b16 %v472
      %v657 = vunpack.c.l.b16 %v473
      %v658 = vpack.c.b16 %v561, %v655
      %v659 = vpack.c.b16 %v563, %v562
      %v660 = vpack.c.b16 %v565, %v564
      %v661 = vpack.c.b16 %v567, %v566
      %v662 = vpack.c.b16 %v656, %v568
      %v663 = vpack.c.b16 %v657, %v657
      %v664 = vrot.slane %v658, 1
      %v665 = vrot.slane %v659, 1
      %v666 = vsel %vm635, %v664, %v665
      %v667 = vrot.slane %v660, 1
      %v668 = vsel %vm635, %v665, %v667
      %v669 = vrot.slane %v661, 1
      %v670 = vsel %vm635, %v667, %v669
      %v671 = vrot.slane %v662, 1
      %v672 = vsel %vm635, %v669, %v671
      %v673 = vrot.slane %v663, 1
      %v674 = vsel %vm635, %v671, %v673
      %v681 = vunpack.c.l.b16 %v474
      %v682 = vpack.c.b16 %v681, %v681
      %vm683 = vsmask.f32 6400
      %v685 = vshrl.u32 %v658, 16
      %v687 = vrot.slane %v685, 1
      %v688 = vshll.u32 %v658, 16
      %v690 = vrot.slane %v688, 2
      %v691 = vor.u32 %v687, %v690
      %v693 = vshrl.u32 %v659, 16
      %v695 = vrot.slane %v693, 1
      %v696 = vshll.u32 %v659, 16
      %v698 = vrot.slane %v696, 2
      %v699 = vor.u32 %v695, %v698
      %v700 = vsel %vm683, %v691, %v699
      %v702 = vshrl.u32 %v660, 16
      %v704 = vrot.slane %v702, 1
      %v705 = vshll.u32 %v660, 16
      %v707 = vrot.slane %v705, 2
      %v708 = vor.u32 %v704, %v707
      %v709 = vsel %vm683, %v699, %v708
      %v711 = vshrl.u32 %v661, 16
      %v713 = vrot.slane %v711, 1
      %v714 = vshll.u32 %v661, 16
      %v716 = vrot.slane %v714, 2
      %v717 = vor.u32 %v713, %v716
      %v718 = vsel %vm683, %v708, %v717
      %v720 = vshrl.u32 %v662, 16
      %v722 = vrot.slane %v720, 1
      %v723 = vshll.u32 %v662, 16
      %v725 = vrot.slane %v723, 2
      %v726 = vor.u32 %v722, %v725
      %v727 = vsel %vm683, %v717, %v726
      %v729 = vshrl.u32 %v682, 16
      %v731 = vrot.slane %v729, 1
      %v732 = vshll.u32 %v682, 16
      %v734 = vrot.slane %v732, 2
      %v735 = vor.u32 %v731, %v734
      %v736 = vsel %vm683, %v726, %v735
      %v743 = vunpack.c.l.b16 %v475
      %v744 = vpack.c.b16 %v561, %v743
      %vm745 = vcmask 1045504
      %v746 = vrot.slane %v744, 2
      %v747 = vrot.slane %v659, 2
      %v748 = vsel %vm745, %v746, %v747
      %v749 = vrot.slane %v660, 2
      %v750 = vsel %vm745, %v747, %v749
      %v751 = vrot.slane %v661, 2
      %v752 = vsel %vm745, %v749, %v751
      %v753 = vrot.slane %v662, 2
      %v754 = vsel %vm745, %v751, %v753
      %v755 = vrot.slane %v682, 2
      %v756 = vsel %vm745, %v753, %v755
      %v773 = vunpack.c.l.b16 %v476
      %v774 = vunpack.c.l.b16 %v477
      %v775 = vunpack.c.l.b16 %v478
      %v776 = vunpack.c.l.b16 %v479
      %v777 = vunpack.c.l.b16 %v480
      %v778 = vunpack.c.l.b16 %v481
      %v779 = vunpack.c.l.b16 %v482
      %v780 = vunpack.c.l.b16 %v483
      %v781 = vunpack.c.l.b16 %v484
      %v782 = vunpack.c.l.b16 %v485
      %v783 = vunpack.c.l.b16 %v486
      %v784 = vpack.c.b16 %v774, %v773
      %v785 = vpack.c.b16 %v776, %v775
      %v786 = vpack.c.b16 %v778, %v777
      %v787 = vpack.c.b16 %v780, %v779
      %v788 = vpack.c.b16 %v782, %v781
      %v789 = vpack.c.b16 %v783, %v783
      %v790 = vrot.slane %v784, 2
      %v791 = vrot.slane %v785, 2
      %v792 = vsel %vm745, %v790, %v791
      %v793 = vrot.slane %v786, 2
      %v794 = vsel %vm745, %v791, %v793
      %v795 = vrot.slane %v787, 2
      %v796 = vsel %vm745, %v793, %v795
      %v797 = vrot.slane %v788, 2
      %v798 = vsel %vm745, %v795, %v797
      %v799 = vrot.slane %v789, 2
      %v800 = vsel %vm745, %v797, %v799
      %v807 = vunpack.c.l.b16 %v487
      %v808 = vpack.c.b16 %v807, %v807
      %vm809 = vsmask.f32 5376
      %v811 = vshrl.u32 %v784, 16
      %v813 = vrot.slane %v811, 2
      %v814 = vshll.u32 %v784, 16
      %v816 = vrot.slane %v814, 3
      %v817 = vor.u32 %v813, %v816
      %v819 = vshrl.u32 %v785, 16
      %v821 = vrot.slane %v819, 2
      %v822 = vshll.u32 %v785, 16
      %v824 = vrot.slane %v822, 3
      %v825 = vor.u32 %v821, %v824
      %v826 = vsel %vm809, %v817, %v825
      %v828 = vshrl.u32 %v786, 16
      %v830 = vrot.slane %v828, 2
      %v831 = vshll.u32 %v786, 16
      %v833 = vrot.slane %v831, 3
      %v834 = vor.u32 %v830, %v833
      %v835 = vsel %vm809, %v825, %v834
      %v837 = vshrl.u32 %v787, 16
      %v839 = vrot.slane %v837, 2
      %v840 = vshll.u32 %v787, 16
      %v842 = vrot.slane %v840, 3
      %v843 = vor.u32 %v839, %v842
      %v844 = vsel %vm809, %v834, %v843
      %v846 = vshrl.u32 %v788, 16
      %v848 = vrot.slane %v846, 2
      %v849 = vshll.u32 %v788, 16
      %v851 = vrot.slane %v849, 3
      %v852 = vor.u32 %v848, %v851
      %v853 = vsel %vm809, %v843, %v852
      %v855 = vshrl.u32 %v808, 16
      %v857 = vrot.slane %v855, 2
      %v858 = vshll.u32 %v808, 16
      %v860 = vrot.slane %v858, 3
      %v861 = vor.u32 %v857, %v860
      %v862 = vsel %vm809, %v852, %v861
      %v869 = vunpack.c.l.b16 %v488
      %v870 = vpack.c.b16 %v774, %v869
      %vm871 = vcmask 1044480
      %v872 = vrot.slane %v870, 3
      %v873 = vrot.slane %v785, 3
      %v874 = vsel %vm871, %v872, %v873
      %v875 = vrot.slane %v786, 3
      %v876 = vsel %vm871, %v873, %v875
      %v877 = vrot.slane %v787, 3
      %v878 = vsel %vm871, %v875, %v877
      %v879 = vrot.slane %v788, 3
      %v880 = vsel %vm871, %v877, %v879
      %v881 = vrot.slane %v808, 3
      %v882 = vsel %vm871, %v879, %v881
      %v898 = vunpack.c.l.b16 %v489
      %v899 = vunpack.c.l.b16 %v490
      %v900 = vunpack.c.l.b16 %v491
      %v901 = vunpack.c.l.b16 %v492
      %v902 = vunpack.c.l.b16 %v493
      %v903 = vunpack.c.l.b16 %v494
      %v904 = vunpack.c.l.b16 %v495
      %v905 = vunpack.c.l.b16 %v496
      %v906 = vunpack.c.l.b16 %v497
      %v907 = vunpack.c.l.b16 %v498
      %v908 = vpack.c.b16 %v899, %v898
      %v909 = vpack.c.b16 %v901, %v900
      %v910 = vpack.c.b16 %v903, %v902
      %v911 = vpack.c.b16 %v905, %v904
      %v912 = vpack.c.b16 %v907, %v906
      %v919 = vunpack.c.l.b16 %v499
      %v920 = vpack.c.b16 %v919, %v919
      %v922 = vshrl.u32 %v908, 16
      %v924 = vshll.u32 %v908, 16
      %v926 = vrot.slane %v924, 1
      %v927 = vor.u32 %v922, %v926
      %v929 = vshll.u32 %v909, 16
      %v931 = vrot.slane %v929, 1
      %v932 = vsel %vm582, %v927, %v931
      %v933 = vshrl.u32 %v909, 16
      %v935 = vor.u32 %v933, %v931
      %v937 = vshll.u32 %v910, 16
      %v939 = vrot.slane %v937, 1
      %v940 = vsel %vm582, %v935, %v939
      %v941 = vshrl.u32 %v910, 16
      %v943 = vor.u32 %v941, %v939
      %v945 = vshll.u32 %v911, 16
      %v947 = vrot.slane %v945, 1
      %v948 = vsel %vm582, %v943, %v947
      %v949 = vshrl.u32 %v911, 16
      %v951 = vor.u32 %v949, %v947
      %v953 = vshll.u32 %v912, 16
      %v955 = vrot.slane %v953, 1
      %v956 = vsel %vm582, %v951, %v955
      %v957 = vshrl.u32 %v912, 16
      %v959 = vor.u32 %v957, %v955
      %v961 = vshll.u32 %v920, 16
      %v963 = vrot.slane %v961, 1
      %v964 = vsel %vm582, %v959, %v963
      %v971 = vunpack.c.l.b16 %v500
      %v972 = vpack.c.b16 %v899, %v971
      %v973 = vrot.slane %v972, 1
      %v974 = vrot.slane %v909, 1
      %v975 = vsel %vm635, %v973, %v974
      %v976 = vrot.slane %v910, 1
      %v977 = vsel %vm635, %v974, %v976
      %v978 = vrot.slane %v911, 1
      %v979 = vsel %vm635, %v976, %v978
      %v980 = vrot.slane %v912, 1
      %v981 = vsel %vm635, %v978, %v980
      %v982 = vrot.slane %v920, 1
      %v983 = vsel %vm635, %v980, %v982
      %v992 = vunpack.c.l.b16 %v501
      %v993 = vunpack.c.l.b16 %v502
      %v994 = vunpack.c.l.b16 %v503
      %v995 = vpack.c.b16 %v900, %v992
      %v996 = vpack.c.b16 %v902, %v901
      %v997 = vpack.c.b16 %v904, %v903
      %v998 = vpack.c.b16 %v906, %v905
      %v999 = vpack.c.b16 %v993, %v907
      %v1000 = vpack.c.b16 %v994, %v994
      %v1001 = vrot.slane %v995, 1
      %v1002 = vrot.slane %v996, 1
      %v1003 = vsel %vm635, %v1001, %v1002
      %v1004 = vrot.slane %v997, 1
      %v1005 = vsel %vm635, %v1002, %v1004
      %v1006 = vrot.slane %v998, 1
      %v1007 = vsel %vm635, %v1004, %v1006
      %v1008 = vrot.slane %v999, 1
      %v1009 = vsel %vm635, %v1006, %v1008
      %v1010 = vrot.slane %v1000, 1
      %v1011 = vsel %vm635, %v1008, %v1010
      %v1018 = vunpack.c.l.b16 %v504
      %v1019 = vpack.c.b16 %v1018, %v1018
      %v1021 = vshrl.u32 %v995, 16
      %v1023 = vrot.slane %v1021, 1
      %v1024 = vshll.u32 %v995, 16
      %v1026 = vrot.slane %v1024, 2
      %v1027 = vor.u32 %v1023, %v1026
      %v1029 = vshrl.u32 %v996, 16
      %v1031 = vrot.slane %v1029, 1
      %v1032 = vshll.u32 %v996, 16
      %v1034 = vrot.slane %v1032, 2
      %v1035 = vor.u32 %v1031, %v1034
      %v1036 = vsel %vm683, %v1027, %v1035
      %v1038 = vshrl.u32 %v997, 16
      %v1040 = vrot.slane %v1038, 1
      %v1041 = vshll.u32 %v997, 16
      %v1043 = vrot.slane %v1041, 2
      %v1044 = vor.u32 %v1040, %v1043
      %v1045 = vsel %vm683, %v1035, %v1044
      %v1047 = vshrl.u32 %v998, 16
      %v1049 = vrot.slane %v1047, 1
      %v1050 = vshll.u32 %v998, 16
      %v1052 = vrot.slane %v1050, 2
      %v1053 = vor.u32 %v1049, %v1052
      %v1054 = vsel %vm683, %v1044, %v1053
      %v1056 = vshrl.u32 %v999, 16
      %v1058 = vrot.slane %v1056, 1
      %v1059 = vshll.u32 %v999, 16
      %v1061 = vrot.slane %v1059, 2
      %v1062 = vor.u32 %v1058, %v1061
      %v1063 = vsel %vm683, %v1053, %v1062
      %v1065 = vshrl.u32 %v1019, 16
      %v1067 = vrot.slane %v1065, 1
      %v1068 = vshll.u32 %v1019, 16
      %v1070 = vrot.slane %v1068, 2
      %v1071 = vor.u32 %v1067, %v1070
      %v1072 = vsel %vm683, %v1062, %v1071
      %v1079 = vunpack.c.l.b16 %v505
      %v1080 = vpack.c.b16 %v900, %v1079
      %v1081 = vrot.slane %v1080, 2
      %v1082 = vrot.slane %v996, 2
      %v1083 = vsel %vm745, %v1081, %v1082
      %v1084 = vrot.slane %v997, 2
      %v1085 = vsel %vm745, %v1082, %v1084
      %v1086 = vrot.slane %v998, 2
      %v1087 = vsel %vm745, %v1084, %v1086
      %v1088 = vrot.slane %v999, 2
      %v1089 = vsel %vm745, %v1086, %v1088
      %v1090 = vrot.slane %v1019, 2
      %v1091 = vsel %vm745, %v1088, %v1090
      %v1108 = vunpack.c.l.b16 %v506
      %v1109 = vunpack.c.l.b16 %v507
      %v1110 = vunpack.c.l.b16 %v508
      %v1111 = vunpack.c.l.b16 %v509
      %v1112 = vunpack.c.l.b16 %v510
      %v1113 = vunpack.c.l.b16 %v511
      %v1114 = vunpack.c.l.b16 %v512
      %v1115 = vunpack.c.l.b16 %v513
      %v1116 = vunpack.c.l.b16 %v514
      %v1117 = vunpack.c.l.b16 %v515
      %v1118 = vunpack.c.l.b16 %v516
      %v1119 = vpack.c.b16 %v1109, %v1108
      %v1120 = vpack.c.b16 %v1111, %v1110
      %v1121 = vpack.c.b16 %v1113, %v1112
      %v1122 = vpack.c.b16 %v1115, %v1114
      %v1123 = vpack.c.b16 %v1117, %v1116
      %v1124 = vpack.c.b16 %v1118, %v1118
      %v1125 = vrot.slane %v1119, 2
      %v1126 = vrot.slane %v1120, 2
      %v1127 = vsel %vm745, %v1125, %v1126
      %v1128 = vrot.slane %v1121, 2
      %v1129 = vsel %vm745, %v1126, %v1128
      %v1130 = vrot.slane %v1122, 2
      %v1131 = vsel %vm745, %v1128, %v1130
      %v1132 = vrot.slane %v1123, 2
      %v1133 = vsel %vm745, %v1130, %v1132
      %v1134 = vrot.slane %v1124, 2
      %v1135 = vsel %vm745, %v1132, %v1134
      %v1142 = vunpack.c.l.b16 %v517
      %v1143 = vpack.c.b16 %v1142, %v1142
      %v1145 = vunpack.c.l.b16 %v518
      %v1146 = vpack.c.b16 %v1109, %v1145
      %v1148 = vshrl.u32 %v1146, 16
      %v1150 = vshll.u32 %v1146, 16
      %v1152 = vrot.slane %v1150, 1
      %v1153 = vor.u32 %v1148, %v1152
      %v1155 = vshll.u32 %v1120, 16
      %v1157 = vrot.slane %v1155, 1
      %v1158 = vsel %vm582, %v1153, %v1157
      %v1159 = vshrl.u32 %v1120, 16
      %v1161 = vor.u32 %v1159, %v1157
      %v1163 = vshll.u32 %v1121, 16
      %v1165 = vrot.slane %v1163, 1
      %v1166 = vsel %vm582, %v1161, %v1165
      %v1167 = vshrl.u32 %v1121, 16
      %v1169 = vor.u32 %v1167, %v1165
      %v1171 = vshll.u32 %v1122, 16
      %v1173 = vrot.slane %v1171, 1
      %v1174 = vsel %vm582, %v1169, %v1173
      %v1175 = vshrl.u32 %v1122, 16
      %v1177 = vor.u32 %v1175, %v1173
      %v1179 = vshll.u32 %v1123, 16
      %v1181 = vrot.slane %v1179, 1
      %v1182 = vsel %vm582, %v1177, %v1181
      %v1183 = vshrl.u32 %v1123, 16
      %v1185 = vor.u32 %v1183, %v1181
      %v1187 = vshll.u32 %v1143, 16
      %v1189 = vrot.slane %v1187, 1
      %v1190 = vsel %vm582, %v1185, %v1189
      %v1191 = vshrl.u32 %v1143, 16
      %v1193 = vor.u32 %v1191, %v1189
      %v1204 = vunpack.c.l.b16 %v519
      %v1205 = vunpack.c.l.b16 %v520
      %v1206 = vunpack.c.l.b16 %v521
      %v1207 = vunpack.c.l.b16 %v522
      %v1208 = vunpack.c.l.b16 %v523
      %v1209 = vunpack.c.l.b16 %v524
      %v1210 = vunpack.c.l.b16 %v525
      %v1211 = vunpack.c.l.b16 %v526
      %v1212 = vunpack.c.l.b16 %v527
      %v1213 = vunpack.c.l.b16 %v528
      %v1214 = vpack.c.b16 %v1205, %v1204
      %v1215 = vpack.c.b16 %v1207, %v1206
      %v1216 = vpack.c.b16 %v1209, %v1208
      %v1217 = vpack.c.b16 %v1211, %v1210
      %v1218 = vpack.c.b16 %v1213, %v1212
      %vm1219 = vsmask.f32 2304
      %v1221 = vshrl.u32 %v1214, 16
      %v1223 = vrot.slane %v1221, 5
      %v1224 = vshll.u32 %v1214, 16
      %v1226 = vrot.slane %v1224, 6
      %v1227 = vor.u32 %v1223, %v1226
      %v1229 = vshrl.u32 %v1215, 16
      %v1231 = vrot.slane %v1229, 5
      %v1232 = vshll.u32 %v1215, 16
      %v1234 = vrot.slane %v1232, 6
      %v1235 = vor.u32 %v1231, %v1234
      %v1236 = vsel %vm1219, %v1227, %v1235
      %v1238 = vshrl.u32 %v1216, 16
      %v1240 = vrot.slane %v1238, 5
      %v1241 = vshll.u32 %v1216, 16
      %v1243 = vrot.slane %v1241, 6
      %v1244 = vor.u32 %v1240, %v1243
      %v1245 = vsel %vm1219, %v1235, %v1244
      %v1247 = vshrl.u32 %v1217, 16
      %v1249 = vrot.slane %v1247, 5
      %v1250 = vshll.u32 %v1217, 16
      %v1252 = vrot.slane %v1250, 6
      %v1253 = vor.u32 %v1249, %v1252
      %v1254 = vsel %vm1219, %v1244, %v1253
      %v1256 = vshrl.u32 %v1218, 16
      %v1258 = vrot.slane %v1256, 5
      %v1259 = vshll.u32 %v1218, 16
      %v1261 = vrot.slane %v1259, 6
      %v1262 = vor.u32 %v1258, %v1261
      %v1263 = vsel %vm1219, %v1253, %v1262
      %v1265 = vunpack.c.l.b16 %v529
      %v1266 = vpack.c.b16 %v1265, %v1265
      %vm1267 = vcmask 1041408
      %v1268 = vrot.slane %v1214, 6
      %v1269 = vrot.slane %v1215, 6
      %v1270 = vsel %vm1267, %v1268, %v1269
      %v1271 = vrot.slane %v1216, 6
      %v1272 = vsel %vm1267, %v1269, %v1271
      %v1273 = vrot.slane %v1217, 6
      %v1274 = vsel %vm1267, %v1271, %v1273
      %v1275 = vrot.slane %v1218, 6
      %v1276 = vsel %vm1267, %v1273, %v1275
      %v1277 = vrot.slane %v1266, 6
      %v1278 = vsel %vm1267, %v1275, %v1277
      %v1280 = vunpack.c.l.b16 %v530
      %v1281 = vpack.c.b16 %v1205, %v1280
      %vm1282 = vsmask.f32 1280
      %v1284 = vshrl.u32 %v1281, 16
      %v1286 = vrot.slane %v1284, 6
      %v1287 = vshll.u32 %v1281, 16
      %v1289 = vrot.slane %v1287, 7
      %v1290 = vor.u32 %v1286, %v1289
      %v1291 = vrot.slane %v1229, 6
      %v1292 = vrot.slane %v1232, 7
      %v1293 = vor.u32 %v1291, %v1292
      %v1294 = vsel %vm1282, %v1290, %v1293
      %v1295 = vrot.slane %v1238, 6
      %v1296 = vrot.slane %v1241, 7
      %v1297 = vor.u32 %v1295, %v1296
      %v1298 = vsel %vm1282, %v1293, %v1297
      %v1299 = vrot.slane %v1247, 6
      %v1300 = vrot.slane %v1250, 7
      %v1301 = vor.u32 %v1299, %v1300
      %v1302 = vsel %vm1282, %v1297, %v1301
      %v1303 = vrot.slane %v1256, 6
      %v1304 = vrot.slane %v1259, 7
      %v1305 = vor.u32 %v1303, %v1304
      %v1306 = vsel %vm1282, %v1301, %v1305
      %v1308 = vshrl.u32 %v1266, 16
      %v1310 = vrot.slane %v1308, 6
      %v1311 = vshll.u32 %v1266, 16
      %v1313 = vrot.slane %v1311, 7
      %v1314 = vor.u32 %v1310, %v1313
      %v1315 = vsel %vm1282, %v1305, %v1314
      %v1319 = vunpack.c.l.b16 %v531
      %v1320 = vunpack.c.l.b16 %v532
      %v1321 = vunpack.c.l.b16 %v533
      %v1322 = vpack.c.b16 %v1206, %v1319
      %v1323 = vpack.c.b16 %v1208, %v1207
      %v1324 = vpack.c.b16 %v1210, %v1209
      %v1325 = vpack.c.b16 %v1212, %v1211
      %v1326 = vpack.c.b16 %v1320, %v1213
      %v1327 = vpack.c.b16 %v1321, %v1321
      %v1329 = vshrl.u32 %v1322, 16
      %v1331 = vrot.slane %v1329, 6
      %v1332 = vshll.u32 %v1322, 16
      %v1334 = vrot.slane %v1332, 7
      %v1335 = vor.u32 %v1331, %v1334
      %v1337 = vshrl.u32 %v1323, 16
      %v1339 = vrot.slane %v1337, 6
      %v1340 = vshll.u32 %v1323, 16
      %v1342 = vrot.slane %v1340, 7
      %v1343 = vor.u32 %v1339, %v1342
      %v1344 = vsel %vm1282, %v1335, %v1343
      %v1346 = vshrl.u32 %v1324, 16
      %v1348 = vrot.slane %v1346, 6
      %v1349 = vshll.u32 %v1324, 16
      %v1351 = vrot.slane %v1349, 7
      %v1352 = vor.u32 %v1348, %v1351
      %v1353 = vsel %vm1282, %v1343, %v1352
      %v1355 = vshrl.u32 %v1325, 16
      %v1357 = vrot.slane %v1355, 6
      %v1358 = vshll.u32 %v1325, 16
      %v1360 = vrot.slane %v1358, 7
      %v1361 = vor.u32 %v1357, %v1360
      %v1362 = vsel %vm1282, %v1352, %v1361
      %v1364 = vshrl.u32 %v1326, 16
      %v1366 = vrot.slane %v1364, 6
      %v1367 = vshll.u32 %v1326, 16
      %v1369 = vrot.slane %v1367, 7
      %v1370 = vor.u32 %v1366, %v1369
      %v1371 = vsel %vm1282, %v1361, %v1370
      %v1373 = vshrl.u32 %v1327, 16
      %v1375 = vrot.slane %v1373, 6
      %v1376 = vshll.u32 %v1327, 16
      %v1378 = vrot.slane %v1376, 7
      %v1379 = vor.u32 %v1375, %v1378
      %v1380 = vsel %vm1282, %v1370, %v1379
      %v1382 = vunpack.c.l.b16 %v534
      %v1383 = vpack.c.b16 %v1382, %v1382
      %vm1384 = vcmask 1040384
      %v1385 = vrot.slane %v1322, 7
      %v1386 = vrot.slane %v1323, 7
      %v1387 = vsel %vm1384, %v1385, %v1386
      %v1388 = vrot.slane %v1324, 7
      %v1389 = vsel %vm1384, %v1386, %v1388
      %v1390 = vrot.slane %v1325, 7
      %v1391 = vsel %vm1384, %v1388, %v1390
      %v1392 = vrot.slane %v1326, 7
      %v1393 = vsel %vm1384, %v1390, %v1392
      %v1394 = vrot.slane %v1383, 7
      %v1395 = vsel %vm1384, %v1392, %v1394
      %v1397 = vunpack.c.l.b16 %v535
      %v1398 = vpack.c.b16 %v1206, %v1397
      %vm1399 = vsmask.f32 256
      %v1401 = vshrl.u32 %v1398, 16
      %v1403 = vrot.slane %v1401, 7
      %v1404 = vshll.u32 %v1398, 16
      %v1406 = vor.u32 %v1403, %v1404
      %v1407 = vrot.slane %v1337, 7
      %v1408 = vor.u32 %v1407, %v1340
      %v1409 = vsel %vm1399, %v1403, %v1408
      %v1410 = vrot.slane %v1346, 7
      %v1411 = vor.u32 %v1410, %v1349
      %v1412 = vsel %vm1399, %v1407, %v1411
      %v1413 = vrot.slane %v1355, 7
      %v1414 = vor.u32 %v1413, %v1358
      %v1415 = vsel %vm1399, %v1410, %v1414
      %v1416 = vrot.slane %v1364, 7
      %v1417 = vor.u32 %v1416, %v1367
      %v1418 = vsel %vm1399, %v1413, %v1417
      %v1420 = vshrl.u32 %v1383, 16
      %v1422 = vrot.slane %v1420, 7
      %v1423 = vshll.u32 %v1383, 16
      %v1425 = vor.u32 %v1422, %v1423
      %v1426 = vsel %vm1399, %v1416, %v1425
      %v1438 = vunpack.c.l.b16 %v536
      %v1439 = vunpack.c.l.b16 %v537
      %v1440 = vunpack.c.l.b16 %v538
      %v1441 = vunpack.c.l.b16 %v539
      %v1442 = vunpack.c.l.b16 %v540
      %v1443 = vunpack.c.l.b16 %v541
      %v1444 = vunpack.c.l.b16 %v542
      %v1445 = vunpack.c.l.b16 %v543
      %v1446 = vunpack.c.l.b16 %v544
      %v1447 = vunpack.c.l.b16 %v545
      %v1448 = vunpack.c.l.b16 %v546
      %v1449 = vpack.c.b16 %v1439, %v1438
      %v1450 = vpack.c.b16 %v1441, %v1440
      %v1451 = vpack.c.b16 %v1443, %v1442
      %v1452 = vpack.c.b16 %v1445, %v1444
      %v1453 = vpack.c.b16 %v1447, %v1446
      %v1454 = vpack.c.b16 %v1448, %v1448
      %v1456 = vshrl.u32 %v1449, 16
      %v1458 = vrot.slane %v1456, 7
      %v1459 = vshll.u32 %v1449, 16
      %v1461 = vor.u32 %v1458, %v1459
      %v1463 = vshrl.u32 %v1450, 16
      %v1465 = vrot.slane %v1463, 7
      %v1466 = vshll.u32 %v1450, 16
      %v1468 = vor.u32 %v1465, %v1466
      %v1469 = vsel %vm1399, %v1458, %v1468
      %v1471 = vshrl.u32 %v1451, 16
      %v1473 = vrot.slane %v1471, 7
      %v1474 = vshll.u32 %v1451, 16
      %v1476 = vor.u32 %v1473, %v1474
      %v1477 = vsel %vm1399, %v1465, %v1476
      %v1479 = vshrl.u32 %v1452, 16
      %v1481 = vrot.slane %v1479, 7
      %v1482 = vshll.u32 %v1452, 16
      %v1484 = vor.u32 %v1481, %v1482
      %v1485 = vsel %vm1399, %v1473, %v1484
      %v1487 = vshrl.u32 %v1453, 16
      %v1489 = vrot.slane %v1487, 7
      %v1490 = vshll.u32 %v1453, 16
      %v1492 = vor.u32 %v1489, %v1490
      %v1493 = vsel %vm1399, %v1481, %v1492
      %v1495 = vshrl.u32 %v1454, 16
      %v1497 = vrot.slane %v1495, 7
      %v1498 = vshll.u32 %v1454, 16
      %v1500 = vor.u32 %v1497, %v1498
      %v1501 = vsel %vm1399, %v1489, %v1500
      %v1503 = vunpack.c.l.b16 %v547
      %v1504 = vpack.c.b16 %v1503, %v1503
      %v1506 = vunpack.c.l.b16 %v548
      %v1507 = vpack.c.b16 %v1439, %v1506
      %v1509 = vshrl.u32 %v1507, 16
      %v1511 = vshll.u32 %v1507, 16
      %v1513 = vrot.slane %v1511, 1
      %v1514 = vor.u32 %v1509, %v1513
      %v1515 = vrot.slane %v1466, 1
      %v1516 = vsel %vm582, %v1514, %v1515
      %v1517 = vor.u32 %v1463, %v1515
      %v1518 = vrot.slane %v1474, 1
      %v1519 = vsel %vm582, %v1517, %v1518
      %v1520 = vor.u32 %v1471, %v1518
      %v1521 = vrot.slane %v1482, 1
      %v1522 = vsel %vm582, %v1520, %v1521
      %v1523 = vor.u32 %v1479, %v1521
      %v1524 = vrot.slane %v1490, 1
      %v1525 = vsel %vm582, %v1523, %v1524
      %v1526 = vor.u32 %v1487, %v1524
      %v1528 = vshll.u32 %v1504, 16
      %v1530 = vrot.slane %v1528, 1
      %v1531 = vsel %vm582, %v1526, %v1530
      %v1532 = vshrl.u32 %v1504, 16
      %v1534 = vor.u32 %v1532, %v1530
      %v1536 = vshrl.u32 %v1119, 16
      %v1538 = vrot.slane %v1536, 2
      %v1539 = vshll.u32 %v1119, 16
      %v1541 = vrot.slane %v1539, 3
      %v1542 = vor.u32 %v1538, %v1541
      %v1543 = vrot.slane %v1159, 2
      %v1544 = vrot.slane %v1155, 3
      %v1545 = vor.u32 %v1543, %v1544
      %v1546 = vsel %vm809, %v1542, %v1545
      %v1548 = vshrl.u32 %v1158, 16
      %v1550 = vrot.slane %v1548, 2
      %v1551 = vshll.u32 %v1158, 16
      %v1553 = vrot.slane %v1551, 3
      %v1554 = vor.u32 %v1550, %v1553
      %v1556 = vshrl.u32 %v1166, 16
      %v1558 = vrot.slane %v1556, 2
      %v1559 = vshll.u32 %v1166, 16
      %v1561 = vrot.slane %v1559, 3
      %v1562 = vor.u32 %v1558, %v1561
      %v1563 = vsel %vm809, %v1554, %v1562
      %v1565 = vshrl.u32 %v1227, 16
      %v1567 = vrot.slane %v1565, 2
      %v1568 = vshll.u32 %v1227, 16
      %v1570 = vrot.slane %v1568, 3
      %v1571 = vor.u32 %v1567, %v1570
      %v1573 = vshrl.u32 %v1236, 16
      %v1575 = vrot.slane %v1573, 2
      %v1576 = vshll.u32 %v1236, 16
      %v1578 = vrot.slane %v1576, 3
      %v1579 = vor.u32 %v1575, %v1578
      %v1580 = vsel %vm809, %v1571, %v1579
      %v1582 = vshrl.u32 %v1268, 16
      %v1584 = vrot.slane %v1582, 2
      %v1585 = vshll.u32 %v1268, 16
      %v1587 = vrot.slane %v1585, 3
      %v1588 = vor.u32 %v1584, %v1587
      %v1590 = vshrl.u32 %v1270, 16
      %v1592 = vrot.slane %v1590, 2
      %v1593 = vshll.u32 %v1270, 16
      %v1595 = vrot.slane %v1593, 3
      %v1596 = vor.u32 %v1592, %v1595
      %v1597 = vsel %vm809, %v1588, %v1596
      %v1599 = vshrl.u32 %v1290, 16
      %v1601 = vrot.slane %v1599, 2
      %v1602 = vshll.u32 %v1290, 16
      %v1604 = vrot.slane %v1602, 3
      %v1605 = vor.u32 %v1601, %v1604
      %v1607 = vshrl.u32 %v1294, 16
      %v1609 = vrot.slane %v1607, 2
      %v1610 = vshll.u32 %v1294, 16
      %v1612 = vrot.slane %v1610, 3
      %v1613 = vor.u32 %v1609, %v1612
      %v1614 = vsel %vm809, %v1605, %v1613
      %v1616 = vshrl.u32 %v1335, 16
      %v1618 = vrot.slane %v1616, 2
      %v1619 = vshll.u32 %v1335, 16
      %v1621 = vrot.slane %v1619, 3
      %v1622 = vor.u32 %v1618, %v1621
      %v1624 = vshrl.u32 %v1344, 16
      %v1626 = vrot.slane %v1624, 2
      %v1627 = vshll.u32 %v1344, 16
      %v1629 = vrot.slane %v1627, 3
      %v1630 = vor.u32 %v1626, %v1629
      %v1631 = vsel %vm809, %v1622, %v1630
      %v1633 = vshrl.u32 %v1385, 16
      %v1635 = vrot.slane %v1633, 2
      %v1636 = vshll.u32 %v1385, 16
      %v1638 = vrot.slane %v1636, 3
      %v1639 = vor.u32 %v1635, %v1638
      %v1641 = vshrl.u32 %v1387, 16
      %v1643 = vrot.slane %v1641, 2
      %v1644 = vshll.u32 %v1387, 16
      %v1646 = vrot.slane %v1644, 3
      %v1647 = vor.u32 %v1643, %v1646
      %v1648 = vsel %vm809, %v1639, %v1647
      %v1650 = vshrl.u32 %v1406, 16
      %v1652 = vrot.slane %v1650, 2
      %v1653 = vshll.u32 %v1406, 16
      %v1655 = vrot.slane %v1653, 3
      %v1656 = vor.u32 %v1652, %v1655
      %v1658 = vshrl.u32 %v1409, 16
      %v1660 = vrot.slane %v1658, 2
      %v1661 = vshll.u32 %v1409, 16
      %v1663 = vrot.slane %v1661, 3
      %v1664 = vor.u32 %v1660, %v1663
      %v1665 = vsel %vm809, %v1656, %v1664
      %v1667 = vshrl.u32 %v1461, 16
      %v1669 = vrot.slane %v1667, 2
      %v1670 = vshll.u32 %v1461, 16
      %v1672 = vrot.slane %v1670, 3
      %v1673 = vor.u32 %v1669, %v1672
      %v1675 = vshrl.u32 %v1469, 16
      %v1677 = vrot.slane %v1675, 2
      %v1678 = vshll.u32 %v1469, 16
      %v1680 = vrot.slane %v1678, 3
      %v1681 = vor.u32 %v1677, %v1680
      %v1682 = vsel %vm809, %v1673, %v1681
      %v1683 = vrot.slane %v1456, 2
      %v1684 = vrot.slane %v1459, 3
      %v1685 = vor.u32 %v1683, %v1684
      %v1686 = vrot.slane %v1463, 2
      %v1687 = vrot.slane %v1466, 3
      %v1688 = vor.u32 %v1686, %v1687
      %v1689 = vsel %vm809, %v1685, %v1688
      %v1691 = vshrl.u32 %v1516, 16
      %v1693 = vrot.slane %v1691, 2
      %v1694 = vshll.u32 %v1516, 16
      %v1696 = vrot.slane %v1694, 3
      %v1697 = vor.u32 %v1693, %v1696
      %v1699 = vshrl.u32 %v1519, 16
      %v1701 = vrot.slane %v1699, 2
      %v1702 = vshll.u32 %v1519, 16
      %v1704 = vrot.slane %v1702, 3
      %v1705 = vor.u32 %v1701, %v1704
      %v1706 = vsel %vm809, %v1697, %v1705
      %v1707 = vrot.slane %v1167, 2
      %v1708 = vrot.slane %v1163, 3
      %v1709 = vor.u32 %v1707, %v1708
      %v1710 = vsel %vm809, %v1545, %v1709
      %v1712 = vshrl.u32 %v1174, 16
      %v1714 = vrot.slane %v1712, 2
      %v1715 = vshll.u32 %v1174, 16
      %v1717 = vrot.slane %v1715, 3
      %v1718 = vor.u32 %v1714, %v1717
      %v1719 = vsel %vm809, %v1562, %v1718
      %v1721 = vshrl.u32 %v1245, 16
      %v1723 = vrot.slane %v1721, 2
      %v1724 = vshll.u32 %v1245, 16
      %v1726 = vrot.slane %v1724, 3
      %v1727 = vor.u32 %v1723, %v1726
      %v1728 = vsel %vm809, %v1579, %v1727
      %v1730 = vshrl.u32 %v1272, 16
      %v1732 = vrot.slane %v1730, 2
      %v1733 = vshll.u32 %v1272, 16
      %v1735 = vrot.slane %v1733, 3
      %v1736 = vor.u32 %v1732, %v1735
      %v1737 = vsel %vm809, %v1596, %v1736
      %v1739 = vshrl.u32 %v1298, 16
      %v1741 = vrot.slane %v1739, 2
      %v1742 = vshll.u32 %v1298, 16
      %v1744 = vrot.slane %v1742, 3
      %v1745 = vor.u32 %v1741, %v1744
      %v1746 = vsel %vm809, %v1613, %v1745
      %v1748 = vshrl.u32 %v1353, 16
      %v1750 = vrot.slane %v1748, 2
      %v1751 = vshll.u32 %v1353, 16
      %v1753 = vrot.slane %v1751, 3
      %v1754 = vor.u32 %v1750, %v1753
      %v1755 = vsel %vm809, %v1630, %v1754
      %v1757 = vshrl.u32 %v1389, 16
      %v1759 = vrot.slane %v1757, 2
      %v1760 = vshll.u32 %v1389, 16
      %v1762 = vrot.slane %v1760, 3
      %v1763 = vor.u32 %v1759, %v1762
      %v1764 = vsel %vm809, %v1647, %v1763
      %v1766 = vshrl.u32 %v1412, 16
      %v1768 = vrot.slane %v1766, 2
      %v1769 = vshll.u32 %v1412, 16
      %v1771 = vrot.slane %v1769, 3
      %v1772 = vor.u32 %v1768, %v1771
      %v1773 = vsel %vm809, %v1664, %v1772
      %v1775 = vshrl.u32 %v1477, 16
      %v1777 = vrot.slane %v1775, 2
      %v1778 = vshll.u32 %v1477, 16
      %v1780 = vrot.slane %v1778, 3
      %v1781 = vor.u32 %v1777, %v1780
      %v1782 = vsel %vm809, %v1681, %v1781
      %v1783 = vrot.slane %v1471, 2
      %v1784 = vrot.slane %v1474, 3
      %v1785 = vor.u32 %v1783, %v1784
      %v1786 = vsel %vm809, %v1688, %v1785
      %v1788 = vshrl.u32 %v1522, 16
      %v1790 = vrot.slane %v1788, 2
      %v1791 = vshll.u32 %v1522, 16
      %v1793 = vrot.slane %v1791, 3
      %v1794 = vor.u32 %v1790, %v1793
      %v1795 = vsel %vm809, %v1705, %v1794
      %v1796 = vrot.slane %v1175, 2
      %v1797 = vrot.slane %v1171, 3
      %v1798 = vor.u32 %v1796, %v1797
      %v1799 = vsel %vm809, %v1709, %v1798
      %v1801 = vshrl.u32 %v1182, 16
      %v1803 = vrot.slane %v1801, 2
      %v1804 = vshll.u32 %v1182, 16
      %v1806 = vrot.slane %v1804, 3
      %v1807 = vor.u32 %v1803, %v1806
      %v1808 = vsel %vm809, %v1718, %v1807
      %v1810 = vshrl.u32 %v1254, 16
      %v1812 = vrot.slane %v1810, 2
      %v1813 = vshll.u32 %v1254, 16
      %v1815 = vrot.slane %v1813, 3
      %v1816 = vor.u32 %v1812, %v1815
      %v1817 = vsel %vm809, %v1727, %v1816
      %v1819 = vshrl.u32 %v1274, 16
      %v1821 = vrot.slane %v1819, 2
      %v1822 = vshll.u32 %v1274, 16
      %v1824 = vrot.slane %v1822, 3
      %v1825 = vor.u32 %v1821, %v1824
      %v1826 = vsel %vm809, %v1736, %v1825
      %v1828 = vshrl.u32 %v1302, 16
      %v1830 = vrot.slane %v1828, 2
      %v1831 = vshll.u32 %v1302, 16
      %v1833 = vrot.slane %v1831, 3
      %v1834 = vor.u32 %v1830, %v1833
      %v1835 = vsel %vm809, %v1745, %v1834
      %v1837 = vshrl.u32 %v1362, 16
      %v1839 = vrot.slane %v1837, 2
      %v1840 = vshll.u32 %v1362, 16
      %v1842 = vrot.slane %v1840, 3
      %v1843 = vor.u32 %v1839, %v1842
      %v1844 = vsel %vm809, %v1754, %v1843
      %v1846 = vshrl.u32 %v1391, 16
      %v1848 = vrot.slane %v1846, 2
      %v1849 = vshll.u32 %v1391, 16
      %v1851 = vrot.slane %v1849, 3
      %v1852 = vor.u32 %v1848, %v1851
      %v1853 = vsel %vm809, %v1763, %v1852
      %v1855 = vshrl.u32 %v1415, 16
      %v1857 = vrot.slane %v1855, 2
      %v1858 = vshll.u32 %v1415, 16
      %v1860 = vrot.slane %v1858, 3
      %v1861 = vor.u32 %v1857, %v1860
      %v1862 = vsel %vm809, %v1772, %v1861
      %v1864 = vshrl.u32 %v1485, 16
      %v1866 = vrot.slane %v1864, 2
      %v1867 = vshll.u32 %v1485, 16
      %v1869 = vrot.slane %v1867, 3
      %v1870 = vor.u32 %v1866, %v1869
      %v1871 = vsel %vm809, %v1781, %v1870
      %v1872 = vrot.slane %v1479, 2
      %v1873 = vrot.slane %v1482, 3
      %v1874 = vor.u32 %v1872, %v1873
      %v1875 = vsel %vm809, %v1785, %v1874
      %v1877 = vshrl.u32 %v1525, 16
      %v1879 = vrot.slane %v1877, 2
      %v1880 = vshll.u32 %v1525, 16
      %v1882 = vrot.slane %v1880, 3
      %v1883 = vor.u32 %v1879, %v1882
      %v1884 = vsel %vm809, %v1794, %v1883
      %v1885 = vrot.slane %v1183, 2
      %v1886 = vrot.slane %v1179, 3
      %v1887 = vor.u32 %v1885, %v1886
      %v1888 = vsel %vm809, %v1798, %v1887
      %v1890 = vshrl.u32 %v1190, 16
      %v1892 = vrot.slane %v1890, 2
      %v1893 = vshll.u32 %v1190, 16
      %v1895 = vrot.slane %v1893, 3
      %v1896 = vor.u32 %v1892, %v1895
      %v1897 = vsel %vm809, %v1807, %v1896
      %v1899 = vshrl.u32 %v1263, 16
      %v1901 = vrot.slane %v1899, 2
      %v1902 = vshll.u32 %v1263, 16
      %v1904 = vrot.slane %v1902, 3
      %v1905 = vor.u32 %v1901, %v1904
      %v1906 = vsel %vm809, %v1816, %v1905
      %v1908 = vshrl.u32 %v1276, 16
      %v1910 = vrot.slane %v1908, 2
      %v1911 = vshll.u32 %v1276, 16
      %v1913 = vrot.slane %v1911, 3
      %v1914 = vor.u32 %v1910, %v1913
      %v1915 = vsel %vm809, %v1825, %v1914
      %v1917 = vshrl.u32 %v1306, 16
      %v1919 = vrot.slane %v1917, 2
      %v1920 = vshll.u32 %v1306, 16
      %v1922 = vrot.slane %v1920, 3
      %v1923 = vor.u32 %v1919, %v1922
      %v1924 = vsel %vm809, %v1834, %v1923
      %v1926 = vshrl.u32 %v1371, 16
      %v1928 = vrot.slane %v1926, 2
      %v1929 = vshll.u32 %v1371, 16
      %v1931 = vrot.slane %v1929, 3
      %v1932 = vor.u32 %v1928, %v1931
      %v1933 = vsel %vm809, %v1843, %v1932
      %v1935 = vshrl.u32 %v1393, 16
      %v1937 = vrot.slane %v1935, 2
      %v1938 = vshll.u32 %v1393, 16
      %v1940 = vrot.slane %v1938, 3
      %v1941 = vor.u32 %v1937, %v1940
      %v1942 = vsel %vm809, %v1852, %v1941
      %v1944 = vshrl.u32 %v1418, 16
      %v1946 = vrot.slane %v1944, 2
      %v1947 = vshll.u32 %v1418, 16
      %v1949 = vrot.slane %v1947, 3
      %v1950 = vor.u32 %v1946, %v1949
      %v1951 = vsel %vm809, %v1861, %v1950
      %v1953 = vshrl.u32 %v1493, 16
      %v1955 = vrot.slane %v1953, 2
      %v1956 = vshll.u32 %v1493, 16
      %v1958 = vrot.slane %v1956, 3
      %v1959 = vor.u32 %v1955, %v1958
      %v1960 = vsel %vm809, %v1870, %v1959
      %v1961 = vrot.slane %v1487, 2
      %v1962 = vrot.slane %v1490, 3
      %v1963 = vor.u32 %v1961, %v1962
      %v1964 = vsel %vm809, %v1874, %v1963
      %v1966 = vshrl.u32 %v1531, 16
      %v1968 = vrot.slane %v1966, 2
      %v1969 = vshll.u32 %v1531, 16
      %v1971 = vrot.slane %v1969, 3
      %v1972 = vor.u32 %v1968, %v1971
      %v1973 = vsel %vm809, %v1883, %v1972
      %v1974 = vrot.slane %v1191, 2
      %v1975 = vrot.slane %v1187, 3
      %v1976 = vor.u32 %v1974, %v1975
      %v1977 = vsel %vm809, %v1887, %v1976
      %v1979 = vshrl.u32 %v1193, 16
      %v1981 = vrot.slane %v1979, 2
      %v1982 = vshll.u32 %v1193, 16
      %v1984 = vrot.slane %v1982, 3
      %v1985 = vor.u32 %v1981, %v1984
      %v1986 = vsel %vm809, %v1896, %v1985
      %v1988 = vshrl.u32 %v1262, 16
      %v1990 = vrot.slane %v1988, 2
      %v1991 = vshll.u32 %v1262, 16
      %v1993 = vrot.slane %v1991, 3
      %v1994 = vor.u32 %v1990, %v1993
      %v1995 = vsel %vm809, %v1905, %v1994
      %v1997 = vshrl.u32 %v1278, 16
      %v1999 = vrot.slane %v1997, 2
      %v2000 = vshll.u32 %v1278, 16
      %v2002 = vrot.slane %v2000, 3
      %v2003 = vor.u32 %v1999, %v2002
      %v2004 = vsel %vm809, %v1914, %v2003
      %v2006 = vshrl.u32 %v1315, 16
      %v2008 = vrot.slane %v2006, 2
      %v2009 = vshll.u32 %v1315, 16
      %v2011 = vrot.slane %v2009, 3
      %v2012 = vor.u32 %v2008, %v2011
      %v2013 = vsel %vm809, %v1923, %v2012
      %v2015 = vshrl.u32 %v1380, 16
      %v2017 = vrot.slane %v2015, 2
      %v2018 = vshll.u32 %v1380, 16
      %v2020 = vrot.slane %v2018, 3
      %v2021 = vor.u32 %v2017, %v2020
      %v2022 = vsel %vm809, %v1932, %v2021
      %v2024 = vshrl.u32 %v1395, 16
      %v2026 = vrot.slane %v2024, 2
      %v2027 = vshll.u32 %v1395, 16
      %v2029 = vrot.slane %v2027, 3
      %v2030 = vor.u32 %v2026, %v2029
      %v2031 = vsel %vm809, %v1941, %v2030
      %v2033 = vshrl.u32 %v1426, 16
      %v2035 = vrot.slane %v2033, 2
      %v2036 = vshll.u32 %v1426, 16
      %v2038 = vrot.slane %v2036, 3
      %v2039 = vor.u32 %v2035, %v2038
      %v2040 = vsel %vm809, %v1950, %v2039
      %v2042 = vshrl.u32 %v1501, 16
      %v2044 = vrot.slane %v2042, 2
      %v2045 = vshll.u32 %v1501, 16
      %v2047 = vrot.slane %v2045, 3
      %v2048 = vor.u32 %v2044, %v2047
      %v2049 = vsel %vm809, %v1959, %v2048
      %v2050 = vrot.slane %v1532, 2
      %v2051 = vrot.slane %v1528, 3
      %v2052 = vor.u32 %v2050, %v2051
      %v2053 = vsel %vm809, %v1963, %v2052
      %v2055 = vshrl.u32 %v1534, 16
      %v2057 = vrot.slane %v2055, 2
      %v2058 = vshll.u32 %v1534, 16
      %v2060 = vrot.slane %v2058, 3
      %v2061 = vor.u32 %v2057, %v2060
      %v2062 = vsel %vm809, %v1972, %v2061
      %v2118 = vld [vmem:[%s3] sm:$0xf]
      %v2119 = vld [vmem:[%s3 + $0x4] sm:$0xf]
      %v2120 = vld [vmem:[%s3 + $0x8] sm:$0xf]
      %v2121 = vld [vmem:[%s3 + $0xc] sm:$0xf]
      %v2122 = vld [vmem:[%s3 + $0x10] sm:$0xf]
      %v2123 = vld [vmem:[%s3 + $0x14] sm:$0xf]
      %v2124 = vld [vmem:[%s3 + $0x18] sm:$0xf]
      %v2125 = vld [vmem:[%s3 + $0x1c] sm:$0xf]
      %v2126 = vld [vmem:[%s3 + $0x20] sm:$0xf]
      %v2127 = vld [vmem:[%s3 + $0x24] sm:$0xf]
      %v2128 = vld [vmem:[%s3 + $0x28] sm:$0xf]
      %v2129 = vld [vmem:[%s3 + $0x2c] sm:$0xf]
      %v2130 = vld [vmem:[%s3 + $0x30] sm:$0xf]
      %v2131 = vld [vmem:[%s3 + $0x34] sm:$0xf]
      %v2132 = vld [vmem:[%s3 + $0x38] sm:$0xf]
      %v2133 = vld [vmem:[%s3 + $0x3c] sm:$0xf]
      %v2134 = vld [vmem:[%s3 + $0x40] sm:$0xf]
      %v2135 = vld [vmem:[%s3 + $0x44] sm:$0xf]
      %v2136 = vld [vmem:[%s3 + $0x48] sm:$0xf]
      %v2137 = vld [vmem:[%s3 + $0x4c] sm:$0xf]
      %v2138 = vld [vmem:[%s3 + $0x50] sm:$0xf]
      %v2139 = vld [vmem:[%s3 + $0x54] sm:$0xf]
      %v2140 = vld [vmem:[%s3 + $0x58] sm:$0xf]
      %v2141 = vld [vmem:[%s3 + $0x5c] sm:$0xf]
      %v2142 = vld [vmem:[%s3 + $0x60] sm:$0xf]
      %v2143 = vld [vmem:[%s3 + $0x64] sm:$0xf]
      %v2144 = vld [vmem:[%s3 + $0x68] sm:$0xf]
      %v2145 = vld [vmem:[%s3 + $0x6c] sm:$0xf]
      %v2146 = vld [vmem:[%s3 + $0x70] sm:$0xf]
      %v2147 = vld [vmem:[%s3 + $0x74] sm:$0xf]
      %v2148 = vld [vmem:[%s3 + $0x78] sm:$0xf]
      %v2149 = vld [vmem:[%s3 + $0x7c] sm:$0xf]
      %v2150 = vld [vmem:[%s3 + $0x80] sm:$0xf]
      %v2151 = vld [vmem:[%s3 + $0x84] sm:$0xf]
      %v2152 = vld [vmem:[%s3 + $0x88] sm:$0xf]
      %v2153 = vld [vmem:[%s3 + $0x8c] sm:$0xf]
      %v2154 = vld [vmem:[%s3 + $0x90] sm:$0xf]
      %v2155 = vld [vmem:[%s3 + $0x94] sm:$0xf]
      %v2156 = vld [vmem:[%s3 + $0x98] sm:$0xf]
      %v2157 = vld [vmem:[%s3 + $0x9c] sm:$0xf]
      %v2158 = vld [vmem:[%s3 + $0xa0] sm:$0xf]
      %v2159 = vld [vmem:[%s3 + $0xa4] sm:$0xf]
      %v2160 = vld [vmem:[%s3 + $0xa8] sm:$0xf]
      %v2161 = vld [vmem:[%s3 + $0xac] sm:$0xf]
      %v2162 = vld [vmem:[%s3 + $0xb0] sm:$0xf]
      %v2163 = vld [vmem:[%s3 + $0xb4] sm:$0xf]
      %v2164 = vld [vmem:[%s3 + $0xb8] sm:$0xf]
      %v2165 = vld [vmem:[%s3 + $0xbc] sm:$0xf]
      %v2166 = vld [vmem:[%s3 + $0xc0] sm:$0xf]
      %v2167 = vld [vmem:[%s3 + $0xc4] sm:$0xf]
      %v2168 = vld [vmem:[%s3 + $0xc8] sm:$0xf]
      %v2169 = vld [vmem:[%s3 + $0xcc] sm:$0xf]
      %v2170 = vld [vmem:[%s3 + $0xd0] sm:$0xf]
      %v2171 = vld [vmem:[%s3 + $0xd4] sm:$0xf]
      %v2172 = vld [vmem:[%s3 + $0xd8] sm:$0xf]
      %v2173 = vld [vmem:[%s3 + $0xdc] sm:$0xf]
      %v2174 = vld [vmem:[%s3 + $0xe0] sm:$0xf]
      %v2175 = vld [vmem:[%s3 + $0xe4] sm:$0xf]
      %v2176 = vld [vmem:[%s3 + $0xe8] sm:$0xf]
      %v2177 = vld [vmem:[%s3 + $0xec] sm:$0xf]
      %v2178 = vld [vmem:[%s3 + $0xf0] sm:$0xf]
      %v2179 = vld [vmem:[%s3 + $0xf4] sm:$0xf]
      %v2180 = vld [vmem:[%s3 + $0xf8] sm:$0xf]
      %v2181 = vld [vmem:[%s3 + $0xfc] sm:$0xf]
      %v2182 = vld [vmem:[%s3 + $0x100] sm:$0xf]
      %v2183 = vld [vmem:[%s3 + $0x104] sm:$0xf]
      %v2184 = vld [vmem:[%s3 + $0x108] sm:$0xf]
      %v2185 = vld [vmem:[%s3 + $0x10c] sm:$0xf]
      %v2186 = vld [vmem:[%s3 + $0x110] sm:$0xf]
      %v2187 = vld [vmem:[%s3 + $0x114] sm:$0xf]
      %v2188 = vld [vmem:[%s3 + $0x118] sm:$0xf]
      %v2189 = vld [vmem:[%s3 + $0x11c] sm:$0xf]
      %v2190 = vld [vmem:[%s3 + $0x120] sm:$0xf]
      %v2191 = vld [vmem:[%s3 + $0x124] sm:$0xf]
      %v2192 = vld [vmem:[%s3 + $0x128] sm:$0xf]
      %v2193 = vld [vmem:[%s3 + $0x12c] sm:$0xf]
      %v2194 = vld [vmem:[%s3 + $0x130] sm:$0xf]
      %v2195 = vld [vmem:[%s3 + $0x134] sm:$0xf]
      %v2196 = vld [vmem:[%s3 + $0x138] sm:$0xf]
      %v2197 = vld [vmem:[%s3 + $0x13c] sm:$0xf]
      %v2198 = vld [vmem:[%s3 + $0x140] sm:$0xf]
      %v2199 = vld [vmem:[%s3 + $0x144] sm:$0xf]
      %v2200 = vld [vmem:[%s3 + $0x148] sm:$0xf]
      %v2201 = vld [vmem:[%s3 + $0x14c] sm:$0xf]
      %v2202 = vld [vmem:[%s3 + $0x150] sm:$0xf]
      %v2203 = vld [vmem:[%s3 + $0x154] sm:$0xf]
      %v2204 = vld [vmem:[%s3 + $0x158] sm:$0xf]
      %v2205 = vld [vmem:[%s3 + $0x15c] sm:$0xf]
      %v2206 = vld [vmem:[%s3 + $0x160] sm:$0xf]
      %v2207 = vld [vmem:[%s3 + $0x164] sm:$0xf]
      %v2208 = vld [vmem:[%s3 + $0x168] sm:$0xf]
      %v2209 = vld [vmem:[%s3 + $0x16c] sm:$0xf]
      %v2210 = vld [vmem:[%s3 + $0x170] sm:$0xf]
      %v2211 = vld [vmem:[%s3 + $0x174] sm:$0xf]
      %v2212 = vld [vmem:[%s3 + $0x178] sm:$0xf]
      %v2213 = vld [vmem:[%s3 + $0x17c] sm:$0xf]
      %v2214 = vld [vmem:[%s3 + $0x180] sm:$0xf]
      %v2215 = vld [vmem:[%s3 + $0x184] sm:$0xf]
      %v2216 = vld [vmem:[%s3 + $0x188] sm:$0xf]
      %v2217 = vld [vmem:[%s3 + $0x18c] sm:$0xf]
      %v2218 = vld [vmem:[%s3 + $0x190] sm:$0xf]
      %v2219 = vld [vmem:[%s3 + $0x194] sm:$0xf]
      %v2220 = vld [vmem:[%s3 + $0x198] sm:$0xf]
      %v2221 = vld [vmem:[%s3 + $0x19c] sm:$0xf]
      %v2222 = vld [vmem:[%s3 + $0x1a0] sm:$0xf]
      %v2223 = vld [vmem:[%s3 + $0x1a4] sm:$0xf]
      %v2224 = vld [vmem:[%s3 + $0x1a8] sm:$0xf]
      %v2225 = vld [vmem:[%s3 + $0x1ac] sm:$0xf]
      %v2226 = vld [vmem:[%s3 + $0x1b0] sm:$0xf]
      %v2227 = vld [vmem:[%s3 + $0x1b4] sm:$0xf]
      %v2228 = vld [vmem:[%s3 + $0x1b8] sm:$0xf]
      %v2229 = vld [vmem:[%s3 + $0x1bc] sm:$0xf]
      %v2230 = vld [vmem:[%s3 + $0x1c0] sm:$0xf]
      %v2231 = vld [vmem:[%s3 + $0x1c4] sm:$0xf]
      %v2232 = vld [vmem:[%s3 + $0x1c8] sm:$0xf]
      %v2233 = vld [vmem:[%s3 + $0x1cc] sm:$0xf]
      %v2234 = vld [vmem:[%s3 + $0x1d0] sm:$0xf]
      %v2235 = vld [vmem:[%s3 + $0x1d4] sm:$0xf]
      %v2236 = vld [vmem:[%s3 + $0x1d8] sm:$0xf]
      %v2237 = vld [vmem:[%s3 + $0x1dc] sm:$0xf]
      %v2238 = vld [vmem:[%s3 + $0x1e0] sm:$0xf]
      %v2239 = vld [vmem:[%s3 + $0x1e4] sm:$0xf]
      %v2240 = vld [vmem:[%s3 + $0x1e8] sm:$0xf]
      %v2241 = vld [vmem:[%s3 + $0x1ec] sm:$0xf]
      %v2242 = vld [vmem:[%s3 + $0x1f0] sm:$0xf]
      %v2243 = vld [vmem:[%s3 + $0x1f4] sm:$0xf]
      %v2244 = vld [vmem:[%s3 + $0x1f8] sm:$0xf]
      %v2245 = vld [vmem:[%s3 + $0x1fc] sm:$0xf]
      %v2246 = vld [vmem:[%s3 + $0x200] sm:$0xf]
      %v2247 = vld [vmem:[%s3 + $0x204] sm:$0xf]
      %v2248 = vld [vmem:[%s3 + $0x208] sm:$0xf]
      %v2249 = vld [vmem:[%s3 + $0x20c] sm:$0xf]
      %v2250 = vld [vmem:[%s3 + $0x210] sm:$0xf]
      %v2251 = vld [vmem:[%s3 + $0x214] sm:$0xf]
      %v2252 = vld [vmem:[%s3 + $0x218] sm:$0xf]
      %v2253 = vld [vmem:[%s3 + $0x21c] sm:$0xf]
      %v2254 = vld [vmem:[%s3 + $0x220] sm:$0xf]
      %v2255 = vld [vmem:[%s3 + $0x224] sm:$0xf]
      %v2256 = vld [vmem:[%s3 + $0x228] sm:$0xf]
      %v2257 = vld [vmem:[%s3 + $0x22c] sm:$0xf]
      %v2258 = vld [vmem:[%s3 + $0x230] sm:$0xf]
      %v2259 = vld [vmem:[%s3 + $0x234] sm:$0xf]
      %v2260 = vld [vmem:[%s3 + $0x238] sm:$0xf]
      %v2261 = vld [vmem:[%s3 + $0x23c] sm:$0xf]
      %v2262 = vld [vmem:[%s3 + $0x240] sm:$0xf]
      %v2263 = vld [vmem:[%s3 + $0x244] sm:$0xf]
      %v2264 = vld [vmem:[%s3 + $0x248] sm:$0xf]
      %v2265 = vld [vmem:[%s3 + $0x24c] sm:$0xf]
      %v2266 = vld [vmem:[%s3 + $0x250] sm:$0xf]
      %v2267 = vld [vmem:[%s3 + $0x254] sm:$0xf]
      %v2268 = vld [vmem:[%s3 + $0x258] sm:$0xf]
      %v2269 = vld [vmem:[%s3 + $0x25c] sm:$0xf]
      %v2270 = vld [vmem:[%s3 + $0x260] sm:$0xf]
      %v2271 = vld [vmem:[%s3 + $0x264] sm:$0xf]
      %v2272 = vld [vmem:[%s3 + $0x268] sm:$0xf]
      %v2273 = vld [vmem:[%s3 + $0x26c] sm:$0xf]
      %v2274 = vld [vmem:[%s3 + $0x270] sm:$0xf]
      %v2275 = vld [vmem:[%s3 + $0x274] sm:$0xf]
      %v2276 = vld [vmem:[%s3 + $0x278] sm:$0xf]
      %v2277 = vld [vmem:[%s3 + $0x27c] sm:$0xf]
      %v2278 = vld [vmem:[%s3 + $0x280] sm:$0xf]
      %v2279 = vld [vmem:[%s3 + $0x284] sm:$0xf]
      %v2280 = vld [vmem:[%s3 + $0x288] sm:$0xf]
      %v2281 = vld [vmem:[%s3 + $0x28c] sm:$0xf]
      %v2282 = vld [vmem:[%s3 + $0x290] sm:$0xf]
      %v2283 = vld [vmem:[%s3 + $0x294] sm:$0xf]
      %v2284 = vld [vmem:[%s3 + $0x298] sm:$0xf]
      %v2285 = vld [vmem:[%s3 + $0x29c] sm:$0xf]
      %v2286 = vld [vmem:[%s3 + $0x2a0] sm:$0xf]
      %v2287 = vld [vmem:[%s3 + $0x2a4] sm:$0xf]
      %v2288 = vld [vmem:[%s3 + $0x2a8] sm:$0xf]
      %v2289 = vld [vmem:[%s3 + $0x2ac] sm:$0xf]
      %v2290 = vld [vmem:[%s3 + $0x2b0] sm:$0xf]
      %v2291 = vld [vmem:[%s3 + $0x2b4] sm:$0xf]
      %v2292 = vld [vmem:[%s3 + $0x2b8] sm:$0xf]
      %v2293 = vld [vmem:[%s3 + $0x2bc] sm:$0xf]
      %v2294 = vld [vmem:[%s3 + $0x2c0] sm:$0xf]
      %v2295 = vld [vmem:[%s3 + $0x2c4] sm:$0xf]
      %v2296 = vld [vmem:[%s3 + $0x2c8] sm:$0xf]
      %v2297 = vld [vmem:[%s3 + $0x2cc] sm:$0xf]
      %v2298 = vld [vmem:[%s3 + $0x2d0] sm:$0xf]
      %v2299 = vld [vmem:[%s3 + $0x2d4] sm:$0xf]
      %v2300 = vld [vmem:[%s3 + $0x2d8] sm:$0xf]
      %v2301 = vld [vmem:[%s3 + $0x2dc] sm:$0xf]
      %v2302 = vld [vmem:[%s3 + $0x2e0] sm:$0xf]
      %v2303 = vld [vmem:[%s3 + $0x2e4] sm:$0xf]
      %v2304 = vld [vmem:[%s3 + $0x2e8] sm:$0xf]
      %v2305 = vld [vmem:[%s3 + $0x2ec] sm:$0xf]
      %v2306 = vld [vmem:[%s3 + $0x2f0] sm:$0xf]
      %v2307 = vld [vmem:[%s3 + $0x2f4] sm:$0xf]
      %v2308 = vld [vmem:[%s3 + $0x2f8] sm:$0xf]
      %v2309 = vld [vmem:[%s3 + $0x2fc] sm:$0xf]
      %v2310 = vld [vmem:[%s3 + $0x300] sm:$0xf]
      %v2311 = vld [vmem:[%s3 + $0x304] sm:$0xf]
      %v2312 = vld [vmem:[%s3 + $0x308] sm:$0xf]
      %v2313 = vld [vmem:[%s3 + $0x30c] sm:$0xf]
      %v2314 = vld [vmem:[%s3 + $0x310] sm:$0xf]
      %v2315 = vld [vmem:[%s3 + $0x314] sm:$0xf]
      %v2316 = vld [vmem:[%s3 + $0x318] sm:$0xf]
      %v2317 = vld [vmem:[%s3 + $0x31c] sm:$0xf]
      %v2318 = vld [vmem:[%s3 + $0x320] sm:$0xf]
      %v2319 = vld [vmem:[%s3 + $0x324] sm:$0xf]
      %v2320 = vld [vmem:[%s3 + $0x328] sm:$0xf]
      %v2321 = vld [vmem:[%s3 + $0x32c] sm:$0xf]
      %v2322 = vld [vmem:[%s3 + $0x330] sm:$0xf]
      %v2323 = vld [vmem:[%s3 + $0x334] sm:$0xf]
      %v2324 = vld [vmem:[%s3 + $0x338] sm:$0xf]
      %v2325 = vld [vmem:[%s3 + $0x33c] sm:$0xf]
      %v2326 = vld [vmem:[%s3 + $0x340] sm:$0xf]
      %v2327 = vld [vmem:[%s3 + $0x344] sm:$0xf]
      %v2328 = vld [vmem:[%s3 + $0x348] sm:$0xf]
      %v2329 = vld [vmem:[%s3 + $0x34c] sm:$0xf]
      %v2330 = vld [vmem:[%s3 + $0x350] sm:$0xf]
      %v2331 = vld [vmem:[%s3 + $0x354] sm:$0xf]
      %v2332 = vld [vmem:[%s3 + $0x358] sm:$0xf]
      %v2333 = vld [vmem:[%s3 + $0x35c] sm:$0xf]
      %v2334 = vld [vmem:[%s3 + $0x360] sm:$0xf]
      %v2335 = vld [vmem:[%s3 + $0x364] sm:$0xf]
      %v2336 = vld [vmem:[%s3 + $0x368] sm:$0xf]
      %v2337 = vld [vmem:[%s3 + $0x36c] sm:$0xf]
      %v2338 = vld [vmem:[%s3 + $0x370] sm:$0xf]
      %v2339 = vld [vmem:[%s3 + $0x374] sm:$0xf]
      %v2340 = vld [vmem:[%s3 + $0x378] sm:$0xf]
      %v2341 = vld [vmem:[%s3 + $0x37c] sm:$0xf]
      %v2342 = vld [vmem:[%s3 + $0x380] sm:$0xf]
      %v2343 = vld [vmem:[%s3 + $0x384] sm:$0xf]
      %v2344 = vld [vmem:[%s3 + $0x388] sm:$0xf]
      %v2345 = vld [vmem:[%s3 + $0x38c] sm:$0xf]
      %v2346 = vld [vmem:[%s3 + $0x390] sm:$0xf]
      %v2347 = vld [vmem:[%s3 + $0x394] sm:$0xf]
      %v2348 = vld [vmem:[%s3 + $0x398] sm:$0xf]
      %v2349 = vld [vmem:[%s3 + $0x39c] sm:$0xf]
      %v2350 = vld [vmem:[%s3 + $0x3a0] sm:$0xf]
      %v2351 = vld [vmem:[%s3 + $0x3a4] sm:$0xf]
      %v2352 = vld [vmem:[%s3 + $0x3a8] sm:$0xf]
      %v2353 = vld [vmem:[%s3 + $0x3ac] sm:$0xf]
      %v2354 = vld [vmem:[%s3 + $0x3b0] sm:$0xf]
      %v2355 = vld [vmem:[%s3 + $0x3b4] sm:$0xf]
      %v2356 = vld [vmem:[%s3 + $0x3b8] sm:$0xf]
      %v2357 = vld [vmem:[%s3 + $0x3bc] sm:$0xf]
      %v2358 = vld [vmem:[%s3 + $0x3c0] sm:$0xf]
      %v2359 = vld [vmem:[%s3 + $0x3c4] sm:$0xf]
      %v2360 = vld [vmem:[%s3 + $0x3c8] sm:$0xf]
      %v2361 = vld [vmem:[%s3 + $0x3cc] sm:$0xf]
      %v2362 = vld [vmem:[%s3 + $0x3d0] sm:$0xf]
      %v2363 = vld [vmem:[%s3 + $0x3d4] sm:$0xf]
      %v2364 = vld [vmem:[%s3 + $0x3d8] sm:$0xf]
      %v2365 = vld [vmem:[%s3 + $0x3dc] sm:$0xf]
      %v2366 = vld [vmem:[%s3 + $0x3e0] sm:$0xf]
      %v2367 = vld [vmem:[%s3 + $0x3e4] sm:$0xf]
      %v2368 = vld [vmem:[%s3 + $0x3e8] sm:$0xf]
      %v2369 = vld [vmem:[%s3 + $0x3ec] sm:$0xf]
      %v2370 = vld [vmem:[%s3 + $0x3f0] sm:$0xf]
      %v2371 = vld [vmem:[%s3 + $0x3f4] sm:$0xf]
      %v2372 = vld [vmem:[%s3 + $0x3f8] sm:$0xf]
      %v2373 = vld [vmem:[%s3 + $0x3fc] sm:$0xf]
      %v2374 = vld [vmem:[%s3 + $0x400] sm:$0xf]
      %v2375 = vld [vmem:[%s3 + $0x404] sm:$0xf]
      %v2376 = vld [vmem:[%s3 + $0x408] sm:$0xf]
      %v2377 = vld [vmem:[%s3 + $0x40c] sm:$0xf]
      %v2378 = vld [vmem:[%s3 + $0x410] sm:$0xf]
      %v2379 = vld [vmem:[%s3 + $0x414] sm:$0xf]
      %v2380 = vld [vmem:[%s3 + $0x418] sm:$0xf]
      %v2381 = vld [vmem:[%s3 + $0x41c] sm:$0xf]
      %v2382 = vld [vmem:[%s3 + $0x420] sm:$0xf]
      %v2383 = vld [vmem:[%s3 + $0x424] sm:$0xf]
      %v2384 = vld [vmem:[%s3 + $0x428] sm:$0xf]
      %v2385 = vld [vmem:[%s3 + $0x42c] sm:$0xf]
      %v2386 = vld [vmem:[%s3 + $0x430] sm:$0xf]
      %v2387 = vld [vmem:[%s3 + $0x434] sm:$0xf]
      %v2388 = vld [vmem:[%s3 + $0x438] sm:$0xf]
      %v2389 = vld [vmem:[%s3 + $0x43c] sm:$0xf]
      %v2390 = vld [vmem:[%s3 + $0x440] sm:$0xf]
      %v2391 = vld [vmem:[%s3 + $0x444] sm:$0xf]
      %v2392 = vld [vmem:[%s3 + $0x448] sm:$0xf]
      %v2393 = vld [vmem:[%s3 + $0x44c] sm:$0xf]
      %v2394 = vld [vmem:[%s3 + $0x450] sm:$0xf]
      %v2395 = vld [vmem:[%s3 + $0x454] sm:$0xf]
      %v2396 = vld [vmem:[%s3 + $0x458] sm:$0xf]
      %v2397 = vld [vmem:[%s3 + $0x45c] sm:$0xf]
      %v2398 = vld [vmem:[%s3 + $0x460] sm:$0xf]
      %v2399 = vld [vmem:[%s3 + $0x464] sm:$0xf]
      %v2400 = vld [vmem:[%s3 + $0x468] sm:$0xf]
      %v2401 = vld [vmem:[%s3 + $0x46c] sm:$0xf]
      %v2402 = vld [vmem:[%s3 + $0x470] sm:$0xf]
      %v2403 = vld [vmem:[%s3 + $0x474] sm:$0xf]
      %v2404 = vld [vmem:[%s3 + $0x478] sm:$0xf]
      %v2405 = vld [vmem:[%s3 + $0x47c] sm:$0xf]
      %v2406 = vld [vmem:[%s3 + $0x480] sm:$0xf]
      %v2407 = vld [vmem:[%s3 + $0x484] sm:$0xf]
      %v2408 = vld [vmem:[%s3 + $0x488] sm:$0xf]
      %v2409 = vld [vmem:[%s3 + $0x48c] sm:$0xf]
      %v2410 = vld [vmem:[%s3 + $0x490] sm:$0xf]
      %v2411 = vld [vmem:[%s3 + $0x494] sm:$0xf]
      %v2412 = vld [vmem:[%s3 + $0x498] sm:$0xf]
      %v2413 = vld [vmem:[%s3 + $0x49c] sm:$0xf]
      %v2414 = vld [vmem:[%s3 + $0x4a0] sm:$0xf]
      %v2415 = vld [vmem:[%s3 + $0x4a4] sm:$0xf]
      %v2416 = vld [vmem:[%s3 + $0x4a8] sm:$0xf]
      %v2417 = vld [vmem:[%s3 + $0x4ac] sm:$0xf]
      %v2418 = vld [vmem:[%s3 + $0x4b0] sm:$0xf]
      %v2419 = vld [vmem:[%s3 + $0x4b4] sm:$0xf]
      %v2420 = vld [vmem:[%s3 + $0x4b8] sm:$0xf]
      %v2421 = vld [vmem:[%s3 + $0x4bc] sm:$0xf]
      %v2422 = vld [vmem:[%s3 + $0x4c0] sm:$0xf]
      %v2423 = vld [vmem:[%s3 + $0x4c4] sm:$0xf]
      %v2424 = vld [vmem:[%s3 + $0x4c8] sm:$0xf]
      %v2425 = vld [vmem:[%s3 + $0x4cc] sm:$0xf]
      %v2426 = vld [vmem:[%s3 + $0x4d0] sm:$0xf]
      %v2427 = vld [vmem:[%s3 + $0x4d4] sm:$0xf]
      %v2428 = vld [vmem:[%s3 + $0x4d8] sm:$0xf]
      %v2429 = vld [vmem:[%s3 + $0x4dc] sm:$0xf]
      %v2430 = vld [vmem:[%s3 + $0x4e0] sm:$0xf]
      %v2431 = vld [vmem:[%s3 + $0x4e4] sm:$0xf]
      %v2432 = vld [vmem:[%s3 + $0x4e8] sm:$0xf]
      %v2433 = vld [vmem:[%s3 + $0x4ec] sm:$0xf]
      %v2434 = vld [vmem:[%s3 + $0x4f0] sm:$0xf]
      %v2435 = vld [vmem:[%s3 + $0x4f4] sm:$0xf]
      %v2436 = vld [vmem:[%s3 + $0x4f8] sm:$0xf]
      %v2437 = vld [vmem:[%s3 + $0x4fc] sm:$0xf]
      %v2438 = vld [vmem:[%s3 + $0x500] sm:$0xf]
      %v2439 = vld [vmem:[%s3 + $0x504] sm:$0xf]
      %v2440 = vld [vmem:[%s3 + $0x508] sm:$0xf]
      %v2441 = vld [vmem:[%s3 + $0x50c] sm:$0xf]
      %v2442 = vld [vmem:[%s3 + $0x510] sm:$0xf]
      %v2443 = vld [vmem:[%s3 + $0x514] sm:$0xf]
      %v2444 = vld [vmem:[%s3 + $0x518] sm:$0xf]
      %v2445 = vld [vmem:[%s3 + $0x51c] sm:$0xf]
      %v2446 = vld [vmem:[%s3 + $0x520] sm:$0xf]
      %v2447 = vld [vmem:[%s3 + $0x524] sm:$0xf]
      %v2448 = vld [vmem:[%s3 + $0x528] sm:$0xf]
      %v2449 = vld [vmem:[%s3 + $0x52c] sm:$0xf]
      %v2450 = vld [vmem:[%s3 + $0x530] sm:$0xf]
      %v2451 = vld [vmem:[%s3 + $0x534] sm:$0xf]
      %v2452 = vld [vmem:[%s3 + $0x538] sm:$0xf]
      %v2453 = vld [vmem:[%s3 + $0x53c] sm:$0xf]
      %v2454 = vld [vmem:[%s3 + $0x540] sm:$0xf]
      %v2455 = vld [vmem:[%s3 + $0x544] sm:$0xf]
      %v2456 = vld [vmem:[%s3 + $0x548] sm:$0xf]
      %v2457 = vld [vmem:[%s3 + $0x54c] sm:$0xf]
      %v2458 = vld [vmem:[%s3 + $0x550] sm:$0xf]
      %v2459 = vld [vmem:[%s3 + $0x554] sm:$0xf]
      %v2460 = vld [vmem:[%s3 + $0x558] sm:$0xf]
      %v2461 = vld [vmem:[%s3 + $0x55c] sm:$0xf]
      %v2462 = vld [vmem:[%s3 + $0x560] sm:$0xf]
      %v2463 = vld [vmem:[%s3 + $0x564] sm:$0xf]
      %v2464 = vld [vmem:[%s3 + $0x568] sm:$0xf]
      %v2465 = vld [vmem:[%s3 + $0x56c] sm:$0xf]
      %v2466 = vld [vmem:[%s3 + $0x570] sm:$0xf]
      %v2467 = vld [vmem:[%s3 + $0x574] sm:$0xf]
      %v2468 = vld [vmem:[%s3 + $0x578] sm:$0xf]
      %v2469 = vld [vmem:[%s3 + $0x57c] sm:$0xf]
      %v2470 = vld [vmem:[%s3 + $0x580] sm:$0xf]
      %v2471 = vld [vmem:[%s3 + $0x584] sm:$0xf]
      %v2472 = vld [vmem:[%s3 + $0x588] sm:$0xf]
      %v2473 = vld [vmem:[%s3 + $0x58c] sm:$0xf]
      %v2474 = vld [vmem:[%s3 + $0x590] sm:$0xf]
      %v2475 = vld [vmem:[%s3 + $0x594] sm:$0xf]
      %v2476 = vld [vmem:[%s3 + $0x598] sm:$0xf]
      %v2477 = vld [vmem:[%s3 + $0x59c] sm:$0xf]
      %v2478 = vld [vmem:[%s3 + $0x5a0] sm:$0xf]
      %v2479 = vld [vmem:[%s3 + $0x5a4] sm:$0xf]
      %v2480 = vld [vmem:[%s3 + $0x5a8] sm:$0xf]
      %v2481 = vld [vmem:[%s3 + $0x5ac] sm:$0xf]
      %v2482 = vld [vmem:[%s3 + $0x5b0] sm:$0xf]
      %v2483 = vld [vmem:[%s3 + $0x5b4] sm:$0xf]
      %v2484 = vld [vmem:[%s3 + $0x5b8] sm:$0xf]
      %v2485 = vld [vmem:[%s3 + $0x5bc] sm:$0xf]
      %v2486 = vld [vmem:[%s3 + $0x5c0] sm:$0xf]
      %v2487 = vld [vmem:[%s3 + $0x5c4] sm:$0xf]
      %v2488 = vld [vmem:[%s3 + $0x5c8] sm:$0xf]
      %v2489 = vld [vmem:[%s3 + $0x5cc] sm:$0xf]
      %v2490 = vld [vmem:[%s3 + $0x5d0] sm:$0xf]
      %v2491 = vld [vmem:[%s3 + $0x5d4] sm:$0xf]
      %v2492 = vld [vmem:[%s3 + $0x5d8] sm:$0xf]
      %v2493 = vld [vmem:[%s3 + $0x5dc] sm:$0xf]
      %v2494 = vld [vmem:[%s3 + $0x5e0] sm:$0xf]
      %v2495 = vld [vmem:[%s3 + $0x5e4] sm:$0xf]
      %v2496 = vld [vmem:[%s3 + $0x5e8] sm:$0xf]
      %v2497 = vld [vmem:[%s3 + $0x5ec] sm:$0xf]
      %v2498 = vld [vmem:[%s3 + $0x5f0] sm:$0xf]
      %v2499 = vld [vmem:[%s3 + $0x5f4] sm:$0xf]
      %v2500 = vld [vmem:[%s3 + $0x5f8] sm:$0xf]
      %v2501 = vld [vmem:[%s3 + $0x5fc] sm:$0xf]
      %v2502 = vld [vmem:[%s3 + $0x600] sm:$0xf]
      %v2503 = vld [vmem:[%s3 + $0x604] sm:$0xf]
      %v2504 = vld [vmem:[%s3 + $0x608] sm:$0xf]
      %v2505 = vld [vmem:[%s3 + $0x60c] sm:$0xf]
      %v2506 = vld [vmem:[%s3 + $0x610] sm:$0xf]
      %v2507 = vld [vmem:[%s3 + $0x614] sm:$0xf]
      %v2508 = vld [vmem:[%s3 + $0x618] sm:$0xf]
      %v2509 = vld [vmem:[%s3 + $0x61c] sm:$0xf]
      %v2510 = vld [vmem:[%s3 + $0x620] sm:$0xf]
      %v2511 = vld [vmem:[%s3 + $0x624] sm:$0xf]
      %v2512 = vld [vmem:[%s3 + $0x628] sm:$0xf]
      %v2513 = vld [vmem:[%s3 + $0x62c] sm:$0xf]
      %v2514 = vld [vmem:[%s3 + $0x630] sm:$0xf]
      %v2515 = vld [vmem:[%s3 + $0x634] sm:$0xf]
      %v2516 = vld [vmem:[%s3 + $0x638] sm:$0xf]
      %v2517 = vld [vmem:[%s3 + $0x63c] sm:$0xf]
      %v2518 = vld [vmem:[%s3 + $0x640] sm:$0xf]
      %v2519 = vld [vmem:[%s3 + $0x644] sm:$0xf]
      %v2520 = vld [vmem:[%s3 + $0x648] sm:$0xf]
      %v2521 = vld [vmem:[%s3 + $0x64c] sm:$0xf]
      %v2522 = vld [vmem:[%s3 + $0x650] sm:$0xf]
      %v2523 = vld [vmem:[%s3 + $0x654] sm:$0xf]
      %v2524 = vld [vmem:[%s3 + $0x658] sm:$0xf]
      %v2525 = vld [vmem:[%s3 + $0x65c] sm:$0xf]
      %v2526 = vld [vmem:[%s3 + $0x660] sm:$0xf]
      %v2527 = vld [vmem:[%s3 + $0x664] sm:$0xf]
      %v2528 = vld [vmem:[%s3 + $0x668] sm:$0xf]
      %v2529 = vld [vmem:[%s3 + $0x66c] sm:$0xf]
      %v2530 = vld [vmem:[%s3 + $0x670] sm:$0xf]
      %v2531 = vld [vmem:[%s3 + $0x674] sm:$0xf]
      %v2532 = vld [vmem:[%s3 + $0x678] sm:$0xf]
      %v2533 = vld [vmem:[%s3 + $0x67c] sm:$0xf]
      %v2534 = vld [vmem:[%s3 + $0x680] sm:$0xf]
      %v2535 = vld [vmem:[%s3 + $0x684] sm:$0xf]
      %v2536 = vld [vmem:[%s3 + $0x688] sm:$0xf]
      %v2537 = vld [vmem:[%s3 + $0x68c] sm:$0xf]
      %v2538 = vld [vmem:[%s3 + $0x690] sm:$0xf]
      %v2539 = vld [vmem:[%s3 + $0x694] sm:$0xf]
      %v2540 = vld [vmem:[%s3 + $0x698] sm:$0xf]
      %v2541 = vld [vmem:[%s3 + $0x69c] sm:$0xf]
      %v2542 = vld [vmem:[%s3 + $0x6a0] sm:$0xf]
      %v2543 = vld [vmem:[%s3 + $0x6a4] sm:$0xf]
      %v2544 = vld [vmem:[%s3 + $0x6a8] sm:$0xf]
      %v2545 = vld [vmem:[%s3 + $0x6ac] sm:$0xf]
      %v2546 = vld [vmem:[%s3 + $0x6b0] sm:$0xf]
      %v2547 = vld [vmem:[%s3 + $0x6b4] sm:$0xf]
      %v2548 = vld [vmem:[%s3 + $0x6b8] sm:$0xf]
      %v2549 = vld [vmem:[%s3 + $0x6bc] sm:$0xf]
      %v2550 = vld [vmem:[%s4] sm:$0x1]
      %v2552 = vlaneseq
      %v2553 = vshrl.u32 %v2552, 7
      %v2554 = vsub.s32 0, %v2553
      %v2555 = vrot.slane %v2550, %v2554
      %v2989 = vunpack.c.l.b16 %v2118
      %v2990 = vunpack.c.l.b16 %v2119
      %v2991 = vunpack.c.l.b16 %v2120
      %v2992 = vunpack.c.l.b16 %v2121
      %v2993 = vunpack.c.l.b16 %v2122
      %v2994 = vunpack.c.l.b16 %v2123
      %v2995 = vunpack.c.l.b16 %v2124
      %v2996 = vunpack.c.l.b16 %v2125
      %v2997 = vunpack.c.l.b16 %v2126
      %v2998 = vunpack.c.l.b16 %v2127
      %v2999 = vunpack.c.l.b16 %v2128
      %v3000 = vunpack.c.l.b16 %v2129
      %v3001 = vunpack.c.l.b16 %v2130
      %v3002 = vunpack.c.l.b16 %v2131
      %v3003 = vunpack.c.l.b16 %v2132
      %v3004 = vunpack.c.l.b16 %v2133
      %v3005 = vunpack.c.l.b16 %v2134
      %v3006 = vunpack.c.l.b16 %v2135
      %v3007 = vunpack.c.l.b16 %v2136
      %v3008 = vunpack.c.l.b16 %v2137
      %v3009 = vunpack.c.l.b16 %v2138
      %v3010 = vunpack.c.l.b16 %v2139
      %v3011 = vunpack.c.l.b16 %v2140
      %v3012 = vunpack.c.l.b16 %v2141
      %v3013 = vunpack.c.l.b16 %v2142
      %v3014 = vunpack.c.l.b16 %v2143
      %v3015 = vunpack.c.l.b16 %v2144
      %v3016 = vunpack.c.l.b16 %v2145
      %v3017 = vunpack.c.l.b16 %v2146
      %v3018 = vunpack.c.l.b16 %v2147
      %v3019 = vunpack.c.l.b16 %v2148
      %v3020 = vunpack.c.l.b16 %v2149
      %v3021 = vunpack.c.l.b16 %v2150
      %v3022 = vunpack.c.l.b16 %v2151
      %v3023 = vunpack.c.l.b16 %v2152
      %v3024 = vunpack.c.l.b16 %v2153
      %v3025 = vunpack.c.l.b16 %v2154
      %v3026 = vunpack.c.l.b16 %v2155
      %v3027 = vunpack.c.l.b16 %v2156
      %v3028 = vunpack.c.l.b16 %v2157
      %v3029 = vunpack.c.l.b16 %v2158
      %v3030 = vunpack.c.l.b16 %v2159
      %v3031 = vunpack.c.l.b16 %v2160
      %v3032 = vunpack.c.l.b16 %v2161
      %v3033 = vunpack.c.l.b16 %v2162
      %v3034 = vunpack.c.l.b16 %v2163
      %v3035 = vunpack.c.l.b16 %v2164
      %v3036 = vunpack.c.l.b16 %v2165
      %v3037 = vunpack.c.l.b16 %v2166
      %v3038 = vunpack.c.l.b16 %v2167
      %v3039 = vunpack.c.l.b16 %v2168
      %v3040 = vunpack.c.l.b16 %v2169
      %v3041 = vunpack.c.l.b16 %v2170
      %v3042 = vunpack.c.l.b16 %v2171
      %v3043 = vunpack.c.l.b16 %v2172
      %v3044 = vunpack.c.l.b16 %v2173
      %v3045 = vunpack.c.l.b16 %v2174
      %v3046 = vunpack.c.l.b16 %v2175
      %v3047 = vunpack.c.l.b16 %v2176
      %v3048 = vunpack.c.l.b16 %v2177
      %v3049 = vunpack.c.l.b16 %v2178
      %v3050 = vunpack.c.l.b16 %v2179
      %v3051 = vunpack.c.l.b16 %v2180
      %v3052 = vunpack.c.l.b16 %v2181
      %v3053 = vunpack.c.l.b16 %v2182
      %v3054 = vunpack.c.l.b16 %v2183
      %v3055 = vunpack.c.l.b16 %v2184
      %v3056 = vunpack.c.l.b16 %v2185
      %v3057 = vunpack.c.l.b16 %v2186
      %v3058 = vunpack.c.l.b16 %v2187
      %v3059 = vunpack.c.l.b16 %v2188
      %v3060 = vunpack.c.l.b16 %v2189
      %v3061 = vunpack.c.l.b16 %v2190
      %v3062 = vunpack.c.l.b16 %v2191
      %v3063 = vunpack.c.l.b16 %v2192
      %v3064 = vunpack.c.l.b16 %v2193
      %v3065 = vunpack.c.l.b16 %v2194
      %v3066 = vunpack.c.l.b16 %v2195
      %v3067 = vunpack.c.l.b16 %v2196
      %v3068 = vunpack.c.l.b16 %v2197
      %v3069 = vunpack.c.l.b16 %v2198
      %v3070 = vunpack.c.l.b16 %v2199
      %v3071 = vunpack.c.l.b16 %v2200
      %v3072 = vunpack.c.l.b16 %v2201
      %v3073 = vunpack.c.l.b16 %v2202
      %v3074 = vunpack.c.l.b16 %v2203
      %v3075 = vunpack.c.l.b16 %v2204
      %v3076 = vunpack.c.l.b16 %v2205
      %v3077 = vunpack.c.l.b16 %v2206
      %v3078 = vunpack.c.l.b16 %v2207
      %v3079 = vunpack.c.l.b16 %v2208
      %v3080 = vunpack.c.l.b16 %v2209
      %v3081 = vunpack.c.l.b16 %v2210
      %v3082 = vunpack.c.l.b16 %v2211
      %v3083 = vunpack.c.l.b16 %v2212
      %v3084 = vunpack.c.l.b16 %v2213
      %v3085 = vunpack.c.l.b16 %v2214
      %v3086 = vunpack.c.l.b16 %v2215
      %v3087 = vunpack.c.l.b16 %v2216
      %v3088 = vunpack.c.l.b16 %v2217
      %v3089 = vunpack.c.l.b16 %v2218
      %v3090 = vunpack.c.l.b16 %v2219
      %v3091 = vunpack.c.l.b16 %v2220
      %v3092 = vunpack.c.l.b16 %v2221
      %v3093 = vunpack.c.l.b16 %v2222
      %v3094 = vunpack.c.l.b16 %v2223
      %v3095 = vunpack.c.l.b16 %v2224
      %v3096 = vunpack.c.l.b16 %v2225
      %v3097 = vunpack.c.l.b16 %v2226
      %v3098 = vunpack.c.l.b16 %v2227
      %v3099 = vunpack.c.l.b16 %v2228
      %v3100 = vunpack.c.l.b16 %v2229
      %v3101 = vunpack.c.l.b16 %v2230
      %v3102 = vunpack.c.l.b16 %v2231
      %v3103 = vunpack.c.l.b16 %v2232
      %v3104 = vunpack.c.l.b16 %v2233
      %v3105 = vunpack.c.l.b16 %v2234
      %v3106 = vunpack.c.l.b16 %v2235
      %v3107 = vunpack.c.l.b16 %v2236
      %v3108 = vunpack.c.l.b16 %v2237
      %v3109 = vunpack.c.l.b16 %v2238
      %v3110 = vunpack.c.l.b16 %v2239
      %v3111 = vunpack.c.l.b16 %v2240
      %v3112 = vunpack.c.l.b16 %v2241
      %v3113 = vunpack.c.l.b16 %v2242
      %v3114 = vunpack.c.l.b16 %v2243
      %v3115 = vunpack.c.l.b16 %v2244
      %v3116 = vunpack.c.l.b16 %v2245
      %v3117 = vunpack.c.l.b16 %v2246
      %v3118 = vunpack.c.l.b16 %v2247
      %v3119 = vunpack.c.l.b16 %v2248
      %v3120 = vunpack.c.l.b16 %v2249
      %v3121 = vunpack.c.l.b16 %v2250
      %v3122 = vunpack.c.l.b16 %v2251
      %v3123 = vunpack.c.l.b16 %v2252
      %v3124 = vunpack.c.l.b16 %v2253
      %v3125 = vunpack.c.l.b16 %v2254
      %v3126 = vunpack.c.l.b16 %v2255
      %v3127 = vunpack.c.l.b16 %v2256
      %v3128 = vunpack.c.l.b16 %v2257
      %v3129 = vunpack.c.l.b16 %v2258
      %v3130 = vunpack.c.l.b16 %v2259
      %v3131 = vunpack.c.l.b16 %v2260
      %v3132 = vunpack.c.l.b16 %v2261
      %v3133 = vunpack.c.l.b16 %v2262
      %v3134 = vunpack.c.l.b16 %v2263
      %v3135 = vunpack.c.l.b16 %v2264
      %v3136 = vunpack.c.l.b16 %v2265
      %v3137 = vunpack.c.l.b16 %v2266
      %v3138 = vunpack.c.l.b16 %v2267
      %v3139 = vunpack.c.l.b16 %v2268
      %v3140 = vunpack.c.l.b16 %v2269
      %v3141 = vunpack.c.l.b16 %v2270
      %v3142 = vunpack.c.l.b16 %v2271
      %v3143 = vunpack.c.l.b16 %v2272
      %v3144 = vunpack.c.l.b16 %v2273
      %v3145 = vunpack.c.l.b16 %v2274
      %v3146 = vunpack.c.l.b16 %v2275
      %v3147 = vunpack.c.l.b16 %v2276
      %v3148 = vunpack.c.l.b16 %v2277
      %v3149 = vunpack.c.l.b16 %v2278
      %v3150 = vunpack.c.l.b16 %v2279
      %v3151 = vunpack.c.l.b16 %v2280
      %v3152 = vunpack.c.l.b16 %v2281
      %v3153 = vunpack.c.l.b16 %v2282
      %v3154 = vunpack.c.l.b16 %v2283
      %v3155 = vunpack.c.l.b16 %v2284
      %v3156 = vunpack.c.l.b16 %v2285
      %v3157 = vunpack.c.l.b16 %v2286
      %v3158 = vunpack.c.l.b16 %v2287
      %v3159 = vunpack.c.l.b16 %v2288
      %v3160 = vunpack.c.l.b16 %v2289
      %v3161 = vunpack.c.l.b16 %v2290
      %v3162 = vunpack.c.l.b16 %v2291
      %v3163 = vunpack.c.l.b16 %v2292
      %v3164 = vunpack.c.l.b16 %v2293
      %v3165 = vunpack.c.l.b16 %v2294
      %v3166 = vunpack.c.l.b16 %v2295
      %v3167 = vunpack.c.l.b16 %v2296
      %v3168 = vunpack.c.l.b16 %v2297
      %v3169 = vunpack.c.l.b16 %v2298
      %v3170 = vunpack.c.l.b16 %v2299
      %v3171 = vunpack.c.l.b16 %v2300
      %v3172 = vunpack.c.l.b16 %v2301
      %v3173 = vunpack.c.l.b16 %v2302
      %v3174 = vunpack.c.l.b16 %v2303
      %v3175 = vunpack.c.l.b16 %v2304
      %v3176 = vunpack.c.l.b16 %v2305
      %v3177 = vunpack.c.l.b16 %v2306
      %v3178 = vunpack.c.l.b16 %v2307
      %v3179 = vunpack.c.l.b16 %v2308
      %v3180 = vunpack.c.l.b16 %v2309
      %v3181 = vunpack.c.l.b16 %v2310
      %v3182 = vunpack.c.l.b16 %v2311
      %v3183 = vunpack.c.l.b16 %v2312
      %v3184 = vunpack.c.l.b16 %v2313
      %v3185 = vunpack.c.l.b16 %v2314
      %v3186 = vunpack.c.l.b16 %v2315
      %v3187 = vunpack.c.l.b16 %v2316
      %v3188 = vunpack.c.l.b16 %v2317
      %v3189 = vunpack.c.l.b16 %v2318
      %v3190 = vunpack.c.l.b16 %v2319
      %v3191 = vunpack.c.l.b16 %v2320
      %v3192 = vunpack.c.l.b16 %v2321
      %v3193 = vunpack.c.l.b16 %v2322
      %v3194 = vunpack.c.l.b16 %v2323
      %v3195 = vunpack.c.l.b16 %v2324
      %v3196 = vunpack.c.l.b16 %v2325
      %v3197 = vunpack.c.l.b16 %v2326
      %v3198 = vunpack.c.l.b16 %v2327
      %v3199 = vunpack.c.l.b16 %v2328
      %v3200 = vunpack.c.l.b16 %v2329
      %v3201 = vunpack.c.l.b16 %v2330
      %v3202 = vunpack.c.l.b16 %v2331
      %v3203 = vunpack.c.l.b16 %v2332
      %v3204 = vunpack.c.l.b16 %v2333
      %v3205 = vunpack.c.l.b16 %v2334
      %v3206 = vunpack.c.l.b16 %v2335
      %v3207 = vunpack.c.l.b16 %v2336
      %v3208 = vunpack.c.l.b16 %v2337
      %v3209 = vunpack.c.l.b16 %v2338
      %v3210 = vunpack.c.l.b16 %v2339
      %v3211 = vunpack.c.l.b16 %v2340
      %v3212 = vunpack.c.l.b16 %v2341
      %v3213 = vunpack.c.l.b16 %v2342
      %v3214 = vunpack.c.l.b16 %v2343
      %v3215 = vunpack.c.l.b16 %v2344
      %v3216 = vunpack.c.l.b16 %v2345
      %v3217 = vunpack.c.l.b16 %v2346
      %v3218 = vunpack.c.l.b16 %v2347
      %v3219 = vunpack.c.l.b16 %v2348
      %v3220 = vunpack.c.l.b16 %v2349
      %v3221 = vunpack.c.l.b16 %v2350
      %v3222 = vunpack.c.l.b16 %v2351
      %v3223 = vunpack.c.l.b16 %v2352
      %v3224 = vunpack.c.l.b16 %v2353
      %v3225 = vunpack.c.l.b16 %v2354
      %v3226 = vunpack.c.l.b16 %v2355
      %v3227 = vunpack.c.l.b16 %v2356
      %v3228 = vunpack.c.l.b16 %v2357
      %v3229 = vunpack.c.l.b16 %v2358
      %v3230 = vunpack.c.l.b16 %v2359
      %v3231 = vunpack.c.l.b16 %v2360
      %v3232 = vunpack.c.l.b16 %v2361
      %v3233 = vunpack.c.l.b16 %v2362
      %v3234 = vunpack.c.l.b16 %v2363
      %v3235 = vunpack.c.l.b16 %v2364
      %v3236 = vunpack.c.l.b16 %v2365
      %v3237 = vunpack.c.l.b16 %v2366
      %v3238 = vunpack.c.l.b16 %v2367
      %v3239 = vunpack.c.l.b16 %v2368
      %v3240 = vunpack.c.l.b16 %v2369
      %v3241 = vunpack.c.l.b16 %v2370
      %v3242 = vunpack.c.l.b16 %v2371
      %v3243 = vunpack.c.l.b16 %v2372
      %v3244 = vunpack.c.l.b16 %v2373
      %v3245 = vunpack.c.l.b16 %v2374
      %v3246 = vunpack.c.l.b16 %v2375
      %v3247 = vunpack.c.l.b16 %v2376
      %v3248 = vunpack.c.l.b16 %v2377
      %v3249 = vunpack.c.l.b16 %v2378
      %v3250 = vunpack.c.l.b16 %v2379
      %v3251 = vunpack.c.l.b16 %v2380
      %v3252 = vunpack.c.l.b16 %v2381
      %v3253 = vunpack.c.l.b16 %v2382
      %v3254 = vunpack.c.l.b16 %v2383
      %v3255 = vunpack.c.l.b16 %v2384
      %v3256 = vunpack.c.l.b16 %v2385
      %v3257 = vunpack.c.l.b16 %v2386
      %v3258 = vunpack.c.l.b16 %v2387
      %v3259 = vunpack.c.l.b16 %v2388
      %v3260 = vunpack.c.l.b16 %v2389
      %v3261 = vunpack.c.l.b16 %v2390
      %v3262 = vunpack.c.l.b16 %v2391
      %v3263 = vunpack.c.l.b16 %v2392
      %v3264 = vunpack.c.l.b16 %v2393
      %v3265 = vunpack.c.l.b16 %v2394
      %v3266 = vunpack.c.l.b16 %v2395
      %v3267 = vunpack.c.l.b16 %v2396
      %v3268 = vunpack.c.l.b16 %v2397
      %v3269 = vunpack.c.l.b16 %v2398
      %v3270 = vunpack.c.l.b16 %v2399
      %v3271 = vunpack.c.l.b16 %v2400
      %v3272 = vunpack.c.l.b16 %v2401
      %v3273 = vunpack.c.l.b16 %v2402
      %v3274 = vunpack.c.l.b16 %v2403
      %v3275 = vunpack.c.l.b16 %v2404
      %v3276 = vunpack.c.l.b16 %v2405
      %v3277 = vunpack.c.l.b16 %v2406
      %v3278 = vunpack.c.l.b16 %v2407
      %v3279 = vunpack.c.l.b16 %v2408
      %v3280 = vunpack.c.l.b16 %v2409
      %v3281 = vunpack.c.l.b16 %v2410
      %v3282 = vunpack.c.l.b16 %v2411
      %v3283 = vunpack.c.l.b16 %v2412
      %v3284 = vunpack.c.l.b16 %v2413
      %v3285 = vunpack.c.l.b16 %v2414
      %v3286 = vunpack.c.l.b16 %v2415
      %v3287 = vunpack.c.l.b16 %v2416
      %v3288 = vunpack.c.l.b16 %v2417
      %v3289 = vunpack.c.l.b16 %v2418
      %v3290 = vunpack.c.l.b16 %v2419
      %v3291 = vunpack.c.l.b16 %v2420
      %v3292 = vunpack.c.l.b16 %v2421
      %v3293 = vunpack.c.l.b16 %v2422
      %v3294 = vunpack.c.l.b16 %v2423
      %v3295 = vunpack.c.l.b16 %v2424
      %v3296 = vunpack.c.l.b16 %v2425
      %v3297 = vunpack.c.l.b16 %v2426
      %v3298 = vunpack.c.l.b16 %v2427
      %v3299 = vunpack.c.l.b16 %v2428
      %v3300 = vunpack.c.l.b16 %v2429
      %v3301 = vunpack.c.l.b16 %v2430
      %v3302 = vunpack.c.l.b16 %v2431
      %v3303 = vunpack.c.l.b16 %v2432
      %v3304 = vunpack.c.l.b16 %v2433
      %v3305 = vunpack.c.l.b16 %v2434
      %v3306 = vunpack.c.l.b16 %v2435
      %v3307 = vunpack.c.l.b16 %v2436
      %v3308 = vunpack.c.l.b16 %v2437
      %v3309 = vunpack.c.l.b16 %v2438
      %v3310 = vunpack.c.l.b16 %v2439
      %v3311 = vunpack.c.l.b16 %v2440
      %v3312 = vunpack.c.l.b16 %v2441
      %v3313 = vunpack.c.l.b16 %v2442
      %v3314 = vunpack.c.l.b16 %v2443
      %v3315 = vunpack.c.l.b16 %v2444
      %v3316 = vunpack.c.l.b16 %v2445
      %v3317 = vunpack.c.l.b16 %v2446
      %v3318 = vunpack.c.l.b16 %v2447
      %v3319 = vunpack.c.l.b16 %v2448
      %v3320 = vunpack.c.l.b16 %v2449
      %v3321 = vunpack.c.l.b16 %v2450
      %v3322 = vunpack.c.l.b16 %v2451
      %v3323 = vunpack.c.l.b16 %v2452
      %v3324 = vunpack.c.l.b16 %v2453
      %v3325 = vunpack.c.l.b16 %v2454
      %v3326 = vunpack.c.l.b16 %v2455
      %v3327 = vunpack.c.l.b16 %v2456
      %v3328 = vunpack.c.l.b16 %v2457
      %v3329 = vunpack.c.l.b16 %v2458
      %v3330 = vunpack.c.l.b16 %v2459
      %v3331 = vunpack.c.l.b16 %v2460
      %v3332 = vunpack.c.l.b16 %v2461
      %v3333 = vunpack.c.l.b16 %v2462
      %v3334 = vunpack.c.l.b16 %v2463
      %v3335 = vunpack.c.l.b16 %v2464
      %v3336 = vunpack.c.l.b16 %v2465
      %v3337 = vunpack.c.l.b16 %v2466
      %v3338 = vunpack.c.l.b16 %v2467
      %v3339 = vunpack.c.l.b16 %v2468
      %v3340 = vunpack.c.l.b16 %v2469
      %v3341 = vunpack.c.l.b16 %v2470
      %v3342 = vunpack.c.l.b16 %v2471
      %v3343 = vunpack.c.l.b16 %v2472
      %v3344 = vunpack.c.l.b16 %v2473
      %v3345 = vunpack.c.l.b16 %v2474
      %v3346 = vunpack.c.l.b16 %v2475
      %v3347 = vunpack.c.l.b16 %v2476
      %v3348 = vunpack.c.l.b16 %v2477
      %v3349 = vunpack.c.l.b16 %v2478
      %v3350 = vunpack.c.l.b16 %v2479
      %v3351 = vunpack.c.l.b16 %v2480
      %v3352 = vunpack.c.l.b16 %v2481
      %v3353 = vunpack.c.l.b16 %v2482
      %v3354 = vunpack.c.l.b16 %v2483
      %v3355 = vunpack.c.l.b16 %v2484
      %v3356 = vunpack.c.l.b16 %v2485
      %v3357 = vunpack.c.l.b16 %v2486
      %v3358 = vunpack.c.l.b16 %v2487
      %v3359 = vunpack.c.l.b16 %v2488
      %v3360 = vunpack.c.l.b16 %v2489
      %v3361 = vunpack.c.l.b16 %v2490
      %v3362 = vunpack.c.l.b16 %v2491
      %v3363 = vunpack.c.l.b16 %v2492
      %v3364 = vunpack.c.l.b16 %v2493
      %v3365 = vunpack.c.l.b16 %v2494
      %v3366 = vunpack.c.l.b16 %v2495
      %v3367 = vunpack.c.l.b16 %v2496
      %v3368 = vunpack.c.l.b16 %v2497
      %v3369 = vunpack.c.l.b16 %v2498
      %v3370 = vunpack.c.l.b16 %v2499
      %v3371 = vunpack.c.l.b16 %v2500
      %v3372 = vunpack.c.l.b16 %v2501
      %v3373 = vunpack.c.l.b16 %v2502
      %v3374 = vunpack.c.l.b16 %v2503
      %v3375 = vunpack.c.l.b16 %v2504
      %v3376 = vunpack.c.l.b16 %v2505
      %v3377 = vunpack.c.l.b16 %v2506
      %v3378 = vunpack.c.l.b16 %v2507
      %v3379 = vunpack.c.l.b16 %v2508
      %v3380 = vunpack.c.l.b16 %v2509
      %v3381 = vunpack.c.l.b16 %v2510
      %v3382 = vunpack.c.l.b16 %v2511
      %v3383 = vunpack.c.l.b16 %v2512
      %v3384 = vunpack.c.l.b16 %v2513
      %v3385 = vunpack.c.l.b16 %v2514
      %v3386 = vunpack.c.l.b16 %v2515
      %v3387 = vunpack.c.l.b16 %v2516
      %v3388 = vunpack.c.l.b16 %v2517
      %v3389 = vunpack.c.l.b16 %v2518
      %v3390 = vunpack.c.l.b16 %v2519
      %v3391 = vunpack.c.l.b16 %v2520
      %v3392 = vunpack.c.l.b16 %v2521
      %v3393 = vunpack.c.l.b16 %v2522
      %v3394 = vunpack.c.l.b16 %v2523
      %v3395 = vunpack.c.l.b16 %v2524
      %v3396 = vunpack.c.l.b16 %v2525
      %v3397 = vunpack.c.l.b16 %v2526
      %v3398 = vunpack.c.l.b16 %v2527
      %v3399 = vunpack.c.l.b16 %v2528
      %v3400 = vunpack.c.l.b16 %v2529
      %v3401 = vunpack.c.l.b16 %v2530
      %v3402 = vunpack.c.l.b16 %v2531
      %v3403 = vunpack.c.l.b16 %v2532
      %v3404 = vunpack.c.l.b16 %v2533
      %v3405 = vunpack.c.l.b16 %v2534
      %v3406 = vunpack.c.l.b16 %v2535
      %v3407 = vunpack.c.l.b16 %v2536
      %v3408 = vunpack.c.l.b16 %v2537
      %v3409 = vunpack.c.l.b16 %v2538
      %v3410 = vunpack.c.l.b16 %v2539
      %v3411 = vunpack.c.l.b16 %v2540
      %v3412 = vunpack.c.l.b16 %v2541
      %v3413 = vunpack.c.l.b16 %v2542
      %v3414 = vunpack.c.l.b16 %v2543
      %v3415 = vunpack.c.l.b16 %v2544
      %v3416 = vunpack.c.l.b16 %v2545
      %v3417 = vunpack.c.l.b16 %v2546
      %v3418 = vunpack.c.l.b16 %v2547
      %v3419 = vunpack.c.l.b16 %v2548
      %v3420 = vunpack.c.l.b16 %v2549
      %v3421 = vpack.c.b16 %v2990, %v2989
      %v3422 = vpack.c.b16 %v2992, %v2991
      %v3423 = vpack.c.b16 %v2994, %v2993
      %v3424 = vpack.c.b16 %v2996, %v2995
      %v3425 = vpack.c.b16 %v2998, %v2997
      %v3426 = vpack.c.b16 %v3000, %v2999
      %v3427 = vpack.c.b16 %v3002, %v3001
      %v3428 = vpack.c.b16 %v3004, %v3003
      %v3429 = vpack.c.b16 %v3006, %v3005
      %v3430 = vpack.c.b16 %v3008, %v3007
      %v3431 = vpack.c.b16 %v3010, %v3009
      %v3432 = vpack.c.b16 %v3012, %v3011
      %v3433 = vpack.c.b16 %v3014, %v3013
      %v3434 = vpack.c.b16 %v3016, %v3015
      %v3435 = vpack.c.b16 %v3018, %v3017
      %v3436 = vpack.c.b16 %v3020, %v3019
      %v3437 = vpack.c.b16 %v3022, %v3021
      %v3438 = vpack.c.b16 %v3024, %v3023
      %v3439 = vpack.c.b16 %v3026, %v3025
      %v3440 = vpack.c.b16 %v3028, %v3027
      %v3441 = vpack.c.b16 %v3030, %v3029
      %v3442 = vpack.c.b16 %v3032, %v3031
      %v3443 = vpack.c.b16 %v3034, %v3033
      %v3444 = vpack.c.b16 %v3036, %v3035
      %v3445 = vpack.c.b16 %v3038, %v3037
      %v3446 = vpack.c.b16 %v3040, %v3039
      %v3447 = vpack.c.b16 %v3042, %v3041
      %v3448 = vpack.c.b16 %v3044, %v3043
      %v3449 = vpack.c.b16 %v3046, %v3045
      %v3450 = vpack.c.b16 %v3048, %v3047
      %v3451 = vpack.c.b16 %v3050, %v3049
      %v3452 = vpack.c.b16 %v3052, %v3051
      %v3453 = vpack.c.b16 %v3054, %v3053
      %v3454 = vpack.c.b16 %v3056, %v3055
      %v3455 = vpack.c.b16 %v3058, %v3057
      %v3456 = vpack.c.b16 %v3060, %v3059
      %v3457 = vpack.c.b16 %v3062, %v3061
      %v3458 = vpack.c.b16 %v3064, %v3063
      %v3459 = vpack.c.b16 %v3066, %v3065
      %v3460 = vpack.c.b16 %v3068, %v3067
      %v3461 = vpack.c.b16 %v3070, %v3069
      %v3462 = vpack.c.b16 %v3072, %v3071
      %v3463 = vpack.c.b16 %v3074, %v3073
      %v3464 = vpack.c.b16 %v3076, %v3075
      %v3465 = vpack.c.b16 %v3078, %v3077
      %v3466 = vpack.c.b16 %v3080, %v3079
      %v3467 = vpack.c.b16 %v3082, %v3081
      %v3468 = vpack.c.b16 %v3084, %v3083
      %v3469 = vpack.c.b16 %v3086, %v3085
      %v3470 = vpack.c.b16 %v3088, %v3087
      %v3471 = vpack.c.b16 %v3090, %v3089
      %v3472 = vpack.c.b16 %v3092, %v3091
      %v3473 = vpack.c.b16 %v3094, %v3093
      %v3474 = vpack.c.b16 %v3096, %v3095
      %v3475 = vpack.c.b16 %v3098, %v3097
      %v3476 = vpack.c.b16 %v3100, %v3099
      %v3477 = vpack.c.b16 %v3102, %v3101
      %v3478 = vpack.c.b16 %v3104, %v3103
      %v3479 = vpack.c.b16 %v3106, %v3105
      %v3480 = vpack.c.b16 %v3108, %v3107
      %v3481 = vpack.c.b16 %v3110, %v3109
      %v3482 = vpack.c.b16 %v3112, %v3111
      %v3483 = vpack.c.b16 %v3114, %v3113
      %v3484 = vpack.c.b16 %v3116, %v3115
      %v3485 = vpack.c.b16 %v3118, %v3117
      %v3486 = vpack.c.b16 %v3120, %v3119
      %v3487 = vpack.c.b16 %v3122, %v3121
      %v3488 = vpack.c.b16 %v3124, %v3123
      %v3489 = vpack.c.b16 %v3126, %v3125
      %v3490 = vpack.c.b16 %v3128, %v3127
      %v3491 = vpack.c.b16 %v3130, %v3129
      %v3492 = vpack.c.b16 %v3132, %v3131
      %v3493 = vpack.c.b16 %v3134, %v3133
      %v3494 = vpack.c.b16 %v3136, %v3135
      %v3495 = vpack.c.b16 %v3138, %v3137
      %v3496 = vpack.c.b16 %v3140, %v3139
      %v3497 = vpack.c.b16 %v3142, %v3141
      %v3498 = vpack.c.b16 %v3144, %v3143
      %v3499 = vpack.c.b16 %v3146, %v3145
      %v3500 = vpack.c.b16 %v3148, %v3147
      %v3501 = vpack.c.b16 %v3150, %v3149
      %v3502 = vpack.c.b16 %v3152, %v3151
      %v3503 = vpack.c.b16 %v3154, %v3153
      %v3504 = vpack.c.b16 %v3156, %v3155
      %v3505 = vpack.c.b16 %v3158, %v3157
      %v3506 = vpack.c.b16 %v3160, %v3159
      %v3507 = vpack.c.b16 %v3162, %v3161
      %v3508 = vpack.c.b16 %v3164, %v3163
      %v3509 = vpack.c.b16 %v3166, %v3165
      %v3510 = vpack.c.b16 %v3168, %v3167
      %v3511 = vpack.c.b16 %v3170, %v3169
      %v3512 = vpack.c.b16 %v3172, %v3171
      %v3513 = vpack.c.b16 %v3174, %v3173
      %v3514 = vpack.c.b16 %v3176, %v3175
      %v3515 = vpack.c.b16 %v3178, %v3177
      %v3516 = vpack.c.b16 %v3180, %v3179
      %v3517 = vpack.c.b16 %v3182, %v3181
      %v3518 = vpack.c.b16 %v3184, %v3183
      %v3519 = vpack.c.b16 %v3186, %v3185
      %v3520 = vpack.c.b16 %v3188, %v3187
      %v3521 = vpack.c.b16 %v3190, %v3189
      %v3522 = vpack.c.b16 %v3192, %v3191
      %v3523 = vpack.c.b16 %v3194, %v3193
      %v3524 = vpack.c.b16 %v3196, %v3195
      %v3525 = vpack.c.b16 %v3198, %v3197
      %v3526 = vpack.c.b16 %v3200, %v3199
      %v3527 = vpack.c.b16 %v3202, %v3201
      %v3528 = vpack.c.b16 %v3204, %v3203
      %v3529 = vpack.c.b16 %v3206, %v3205
      %v3530 = vpack.c.b16 %v3208, %v3207
      %v3531 = vpack.c.b16 %v3210, %v3209
      %v3532 = vpack.c.b16 %v3212, %v3211
      %v3533 = vpack.c.b16 %v3214, %v3213
      %v3534 = vpack.c.b16 %v3216, %v3215
      %v3535 = vpack.c.b16 %v3218, %v3217
      %v3536 = vpack.c.b16 %v3220, %v3219
      %v3537 = vpack.c.b16 %v3222, %v3221
      %v3538 = vpack.c.b16 %v3224, %v3223
      %v3539 = vpack.c.b16 %v3226, %v3225
      %v3540 = vpack.c.b16 %v3228, %v3227
      %v3541 = vpack.c.b16 %v3230, %v3229
      %v3542 = vpack.c.b16 %v3232, %v3231
      %v3543 = vpack.c.b16 %v3234, %v3233
      %v3544 = vpack.c.b16 %v3236, %v3235
      %v3545 = vpack.c.b16 %v3238, %v3237
      %v3546 = vpack.c.b16 %v3240, %v3239
      %v3547 = vpack.c.b16 %v3242, %v3241
      %v3548 = vpack.c.b16 %v3244, %v3243
      %v3549 = vpack.c.b16 %v3246, %v3245
      %v3550 = vpack.c.b16 %v3248, %v3247
      %v3551 = vpack.c.b16 %v3250, %v3249
      %v3552 = vpack.c.b16 %v3252, %v3251
      %v3553 = vpack.c.b16 %v3254, %v3253
      %v3554 = vpack.c.b16 %v3256, %v3255
      %v3555 = vpack.c.b16 %v3258, %v3257
      %v3556 = vpack.c.b16 %v3260, %v3259
      %v3557 = vpack.c.b16 %v3262, %v3261
      %v3558 = vpack.c.b16 %v3264, %v3263
      %v3559 = vpack.c.b16 %v3266, %v3265
      %v3560 = vpack.c.b16 %v3268, %v3267
      %v3561 = vpack.c.b16 %v3270, %v3269
      %v3562 = vpack.c.b16 %v3272, %v3271
      %v3563 = vpack.c.b16 %v3274, %v3273
      %v3564 = vpack.c.b16 %v3276, %v3275
      %v3565 = vpack.c.b16 %v3278, %v3277
      %v3566 = vpack.c.b16 %v3280, %v3279
      %v3567 = vpack.c.b16 %v3282, %v3281
      %v3568 = vpack.c.b16 %v3284, %v3283
      %v3569 = vpack.c.b16 %v3286, %v3285
      %v3570 = vpack.c.b16 %v3288, %v3287
      %v3571 = vpack.c.b16 %v3290, %v3289
      %v3572 = vpack.c.b16 %v3292, %v3291
      %v3573 = vpack.c.b16 %v3294, %v3293
      %v3574 = vpack.c.b16 %v3296, %v3295
      %v3575 = vpack.c.b16 %v3298, %v3297
      %v3576 = vpack.c.b16 %v3300, %v3299
      %v3577 = vpack.c.b16 %v3302, %v3301
      %v3578 = vpack.c.b16 %v3304, %v3303
      %v3579 = vpack.c.b16 %v3306, %v3305
      %v3580 = vpack.c.b16 %v3308, %v3307
      %v3581 = vpack.c.b16 %v3310, %v3309
      %v3582 = vpack.c.b16 %v3312, %v3311
      %v3583 = vpack.c.b16 %v3314, %v3313
      %v3584 = vpack.c.b16 %v3316, %v3315
      %v3585 = vpack.c.b16 %v3318, %v3317
      %v3586 = vpack.c.b16 %v3320, %v3319
      %v3587 = vpack.c.b16 %v3322, %v3321
      %v3588 = vpack.c.b16 %v3324, %v3323
      %v3589 = vpack.c.b16 %v3326, %v3325
      %v3590 = vpack.c.b16 %v3328, %v3327
      %v3591 = vpack.c.b16 %v3330, %v3329
      %v3592 = vpack.c.b16 %v3332, %v3331
      %v3593 = vpack.c.b16 %v3334, %v3333
      %v3594 = vpack.c.b16 %v3336, %v3335
      %v3595 = vpack.c.b16 %v3338, %v3337
      %v3596 = vpack.c.b16 %v3340, %v3339
      %v3597 = vpack.c.b16 %v3342, %v3341
      %v3598 = vpack.c.b16 %v3344, %v3343
      %v3599 = vpack.c.b16 %v3346, %v3345
      %v3600 = vpack.c.b16 %v3348, %v3347
      %v3601 = vpack.c.b16 %v3350, %v3349
      %v3602 = vpack.c.b16 %v3352, %v3351
      %v3603 = vpack.c.b16 %v3354, %v3353
      %v3604 = vpack.c.b16 %v3356, %v3355
      %v3605 = vpack.c.b16 %v3358, %v3357
      %v3606 = vpack.c.b16 %v3360, %v3359
      %v3607 = vpack.c.b16 %v3362, %v3361
      %v3608 = vpack.c.b16 %v3364, %v3363
      %v3609 = vpack.c.b16 %v3366, %v3365
      %v3610 = vpack.c.b16 %v3368, %v3367
      %v3611 = vpack.c.b16 %v3370, %v3369
      %v3612 = vpack.c.b16 %v3372, %v3371
      %v3613 = vpack.c.b16 %v3374, %v3373
      %v3614 = vpack.c.b16 %v3376, %v3375
      %v3615 = vpack.c.b16 %v3378, %v3377
      %v3616 = vpack.c.b16 %v3380, %v3379
      %v3617 = vpack.c.b16 %v3382, %v3381
      %v3618 = vpack.c.b16 %v3384, %v3383
      %v3619 = vpack.c.b16 %v3386, %v3385
      %v3620 = vpack.c.b16 %v3388, %v3387
      %v3621 = vpack.c.b16 %v3390, %v3389
      %v3622 = vpack.c.b16 %v3392, %v3391
      %v3623 = vpack.c.b16 %v3394, %v3393
      %v3624 = vpack.c.b16 %v3396, %v3395
      %v3625 = vpack.c.b16 %v3398, %v3397
      %v3626 = vpack.c.b16 %v3400, %v3399
      %v3627 = vpack.c.b16 %v3402, %v3401
      %v3628 = vpack.c.b16 %v3404, %v3403
      %v3629 = vpack.c.b16 %v3406, %v3405
      %v3630 = vpack.c.b16 %v3408, %v3407
      %v3631 = vpack.c.b16 %v3410, %v3409
      %v3632 = vpack.c.b16 %v3412, %v3411
      %v3633 = vpack.c.b16 %v3414, %v3413
      %v3634 = vpack.c.b16 %v3416, %v3415
      %v3635 = vpack.c.b16 %v3418, %v3417
      %v3636 = vpack.c.b16 %v3420, %v3419
      %3853 = vmatprep.subr.bf16.mxu0 0
      %3854 = vmatpush1.bf16.msra.mxu0 %v3421
      %3855 = vmatprep.subr.bf16.mxu0 0
      %3856 = vmatpush1.bf16.msra.mxu0 %v3422
      %3857 = vmatprep.subr.bf16.mxu0 0
      %3858 = vmatpush1.bf16.msra.mxu0 %v3423
      %3859 = vmatprep.subr.bf16.mxu0 0
      %3860 = vmatpush1.bf16.msra.mxu0 %v3424
      %3861 = vmatprep.subr.bf16.mxu0 0
      %3862 = vmatpush1.bf16.msra.mxu0 %v3425
      %3863 = vmatprep.subr.bf16.mxu0 0
      %3864 = vmatpush1.bf16.msra.mxu0 %v3426
      %3865 = vmatprep.subr.bf16.mxu0 0
      %3866 = vmatpush1.bf16.msra.mxu0 %v3427
      %3867 = vmatprep.subr.bf16.mxu0 0
      %3868 = vmatpush1.bf16.msra.mxu0 %v3428
      %3869 = vmatprep.subr.bf16.mxu0 0
      %3870 = vmatpush1.bf16.msra.mxu0 %v3429
      %3871 = vmatprep.subr.bf16.mxu0 0
      %3872 = vmatpush1.bf16.msra.mxu0 %v3430
      %3873 = vmatprep.subr.bf16.mxu0 0
      %3874 = vmatpush1.bf16.msra.mxu0 %v3431
      %3875 = vmatprep.subr.bf16.mxu0 0
      %3876 = vmatpush1.bf16.msra.mxu0 %v3432
      %3877 = vmatprep.subr.bf16.mxu0 0
      %3878 = vmatpush1.bf16.msra.mxu0 %v3433
      %3879 = vmatprep.subr.bf16.mxu0 0
      %3880 = vmatpush1.bf16.msra.mxu0 %v3434
      %3881 = vmatprep.subr.bf16.mxu0 0
      %3882 = vmatpush1.bf16.msra.mxu0 %v3435
      %3883 = vmatprep.subr.bf16.mxu0 0
      %3884 = vmatpush1.bf16.msra.mxu0 %v3436
      %3885 = vmatprep.mubr.bf16.mxu0 %v594
      %3886 = vmatmul.mubr.bf16.gmra.mrb[0].mxu0 %v569
      %v3887 = vpop.f32.mrb[0].mxu0
      %v3888 = vadd.f32 %v2555, %v3887
      %v3889 = vpop.f32.mrb[0].mxu0
      %v3890 = vpop.f32.mrb[0].mxu0
      %v3891 = vadd.f32 %v2555, %v3890
      %v3892 = vpop.f32.mrb[0].mxu0
      %3893 = vmatprep.mubr.bf16.mxu0 %v602
      %3894 = vmatmul.mubr.bf16.gmra.mrb[0].mxu0 %v570
      %v3895 = vpop.f32.mrb[0].mxu0
      %v3896 = vadd.f32 %v2555, %v3895
      %v3897 = vpop.f32.mrb[0].mxu0
      %v3898 = vpop.f32.mrb[0].mxu0
      %v3899 = vadd.f32 %v2555, %v3898
      %v3900 = vpop.f32.mrb[0].mxu0
      %3901 = vmatprep.mubr.bf16.mxu0 %v610
      %3902 = vmatmul.mubr.bf16.gmra.mrb[0].mxu0 %v571
      %v3903 = vpop.f32.mrb[0].mxu0
      %v3904 = vadd.f32 %v2555, %v3903
      %v3905 = vpop.f32.mrb[0].mxu0
      %v3906 = vpop.f32.mrb[0].mxu0
      %v3907 = vadd.f32 %v2555, %v3906
      %v3908 = vpop.f32.mrb[0].mxu0
      %3909 = vmatprep.mubr.bf16.mxu0 %v618
      %3910 = vmatmul.mubr.bf16.gmra.mrb[0].mxu0 %v572
      %v3911 = vpop.f32.mrb[0].mxu0
      %v3912 = vadd.f32 %v2555, %v3911
      %v3913 = vpop.f32.mrb[0].mxu0
      %v3914 = vpop.f32.mrb[0].mxu0
      %v3915 = vadd.f32 %v2555, %v3914
      %v3916 = vpop.f32.mrb[0].mxu0
      %3917 = vmatprep.mubr.bf16.mxu0 %v626
      %3918 = vmatmul.mubr.bf16.gmra.mrb[0].mxu0 %v573
      %v3919 = vpop.f32.mrb[0].mxu0
      %v3920 = vadd.f32 %v2555, %v3919
      %v3921 = vpop.f32.mrb[0].mxu0
      %v3922 = vpop.f32.mrb[0].mxu0
      %v3923 = vadd.f32 %v2555, %v3922
      %v3924 = vpop.f32.mrb[0].mxu0
      %3925 = vdwg.mxu0
      %3926 = vmatprep.subr.bf16.mxu0 0
      %3927 = vmatpush1.bf16.msra.mxu0 %v3437
      %3928 = vmatprep.subr.bf16.mxu0 0
      %3929 = vmatpush1.bf16.msra.mxu0 %v3438
      %3930 = vmatprep.subr.bf16.mxu0 0
      %3931 = vmatpush1.bf16.msra.mxu0 %v3439
      %3932 = vmatprep.subr.bf16.mxu0 0
      %3933 = vmatpush1.bf16.msra.mxu0 %v3440
      %3934 = vmatprep.subr.bf16.mxu0 0
      %3935 = vmatpush1.bf16.msra.mxu0 %v3441
      %3936 = vmatprep.subr.bf16.mxu0 0
      %3937 = vmatpush1.bf16.msra.mxu0 %v3442
      %3938 = vmatprep.subr.bf16.mxu0 0
      %3939 = vmatpush1.bf16.msra.mxu0 %v3443
      %3940 = vmatprep.subr.bf16.mxu0 0
      %3941 = vmatpush1.bf16.msra.mxu0 %v3444
      %3942 = vmatprep.subr.bf16.mxu0 0
      %3943 = vmatpush1.bf16.msra.mxu0 %v3445
      %3944 = vmatprep.subr.bf16.mxu0 0
      %3945 = vmatpush1.bf16.msra.mxu0 %v3446
      %3946 = vmatprep.subr.bf16.mxu0 0
      %3947 = vmatpush1.bf16.msra.mxu0 %v3447
      %3948 = vmatprep.subr.bf16.mxu0 0
      %3949 = vmatpush1.bf16.msra.mxu0 %v3448
      %3950 = vmatprep.subr.bf16.mxu0 0
      %3951 = vmatpush1.bf16.msra.mxu0 %v3449
      %3952 = vmatprep.subr.bf16.mxu0 0
      %3953 = vmatpush1.bf16.msra.mxu0 %v3450
      %3954 = vmatprep.subr.bf16.mxu0 0
      %3955 = vmatpush1.bf16.msra.mxu0 %v3451
      %3956 = vmatprep.subr.bf16.mxu0 0
      %3957 = vmatpush1.bf16.msra.mxu0 %v3452
      %3958 = vmatprep.mubr.bf16.mxu0 %v666
      %3959 = vmatmul.mubr.bf16.gmra.mrb[0].mxu0 %v638
      %v3960 = vpop.f32.mrb[0].mxu0
      %v3961 = vadd.f32 %v3888, %v3960
      %v3962 = vpop.f32.mrb[0].mxu0
      %v3963 = vpop.f32.mrb[0].mxu0
      %v3964 = vadd.f32 %v3891, %v3963
      %v3965 = vpop.f32.mrb[0].mxu0
      %3966 = vmatprep.mubr.bf16.mxu0 %v668
      %3967 = vmatmul.mubr.bf16.gmra.mrb[0].mxu0 %v640
      %v3968 = vpop.f32.mrb[0].mxu0
      %v3969 = vadd.f32 %v3896, %v3968
      %v3970 = vpop.f32.mrb[0].mxu0
      %v3971 = vpop.f32.mrb[0].mxu0
      %v3972 = vadd.f32 %v3899, %v3971
      %v3973 = vpop.f32.mrb[0].mxu0
      %3974 = vmatprep.mubr.bf16.mxu0 %v670
      %3975 = vmatmul.mubr.bf16.gmra.mrb[0].mxu0 %v642
      %v3976 = vpop.f32.mrb[0].mxu0
      %v3977 = vadd.f32 %v3904, %v3976
      %v3978 = vpop.f32.mrb[0].mxu0
      %v3979 = vpop.f32.mrb[0].mxu0
      %v3980 = vadd.f32 %v3907, %v3979
      %v3981 = vpop.f32.mrb[0].mxu0
      %3982 = vmatprep.mubr.bf16.mxu0 %v672
      %3983 = vmatmul.mubr.bf16.gmra.mrb[0].mxu0 %v644
      %v3984 = vpop.f32.mrb[0].mxu0
      %v3985 = vadd.f32 %v3912, %v3984
      %v3986 = vpop.f32.mrb[0].mxu0
      %v3987 = vpop.f32.mrb[0].mxu0
      %v3988 = vadd.f32 %v3915, %v3987
      %v3989 = vpop.f32.mrb[0].mxu0
      %3990 = vmatprep.mubr.bf16.mxu0 %v674
      %3991 = vmatmul.mubr.bf16.gmra.mrb[0].mxu0 %v646
      %v3992 = vpop.f32.mrb[0].mxu0
      %v3993 = vadd.f32 %v3920, %v3992
      %v3994 = vpop.f32.mrb[0].mxu0
      %v3995 = vpop.f32.mrb[0].mxu0
      %v3996 = vadd.f32 %v3923, %v3995
      %v3997 = vpop.f32.mrb[0].mxu0
      %3998 = vdwg.mxu0
      %3999 = vmatprep.subr.bf16.mxu0 0
      %4000 = vmatpush1.bf16.msra.mxu0 %v3453
      %4001 = vmatprep.subr.bf16.mxu0 0
      %4002 = vmatpush1.bf16.msra.mxu0 %v3454
      %4003 = vmatprep.subr.bf16.mxu0 0
      %4004 = vmatpush1.bf16.msra.mxu0 %v3455
      %4005 = vmatprep.subr.bf16.mxu0 0
      %4006 = vmatpush1.bf16.msra.mxu0 %v3456
      %4007 = vmatprep.subr.bf16.mxu0 0
      %4008 = vmatpush1.bf16.msra.mxu0 %v3457
      %4009 = vmatprep.subr.bf16.mxu0 0
      %4010 = vmatpush1.bf16.msra.mxu0 %v3458
      %4011 = vmatprep.subr.bf16.mxu0 0
      %4012 = vmatpush1.bf16.msra.mxu0 %v3459
      %4013 = vmatprep.subr.bf16.mxu0 0
      %4014 = vmatpush1.bf16.msra.mxu0 %v3460
      %4015 = vmatprep.subr.bf16.mxu0 0
      %4016 = vmatpush1.bf16.msra.mxu0 %v3461
      %4017 = vmatprep.subr.bf16.mxu0 0
      %4018 = vmatpush1.bf16.msra.mxu0 %v3462
      %4019 = vmatprep.subr.bf16.mxu0 0
      %4020 = vmatpush1.bf16.msra.mxu0 %v3463
      %4021 = vmatprep.subr.bf16.mxu0 0
      %4022 = vmatpush1.bf16.msra.mxu0 %v3464
      %4023 = vmatprep.subr.bf16.mxu0 0
      %4024 = vmatpush1.bf16.msra.mxu0 %v3465
      %4025 = vmatprep.subr.bf16.mxu0 0
      %4026 = vmatpush1.bf16.msra.mxu0 %v3466
      %4027 = vmatprep.subr.bf16.mxu0 0
      %4028 = vmatpush1.bf16.msra.mxu0 %v3467
      %4029 = vmatprep.subr.bf16.mxu0 0
      %4030 = vmatpush1.bf16.msra.mxu0 %v3468
      %4031 = vmatprep.mubr.bf16.mxu0 %v748
      %4032 = vmatmul.mubr.bf16.gmra.mrb[0].mxu0 %v700
      %v4033 = vpop.f32.mrb[0].mxu0
      %v4034 = vadd.f32 %v3961, %v4033
      %v4035 = vpop.f32.mrb[0].mxu0
      %v4036 = vpop.f32.mrb[0].mxu0
      %v4037 = vadd.f32 %v3964, %v4036
      %v4038 = vpop.f32.mrb[0].mxu0
      %4039 = vmatprep.mubr.bf16.mxu0 %v750
      %4040 = vmatmul.mubr.bf16.gmra.mrb[0].mxu0 %v709
      %v4041 = vpop.f32.mrb[0].mxu0
      %v4042 = vadd.f32 %v3969, %v4041
      %v4043 = vpop.f32.mrb[0].mxu0
      %v4044 = vpop.f32.mrb[0].mxu0
      %v4045 = vadd.f32 %v3972, %v4044
      %v4046 = vpop.f32.mrb[0].mxu0
      %4047 = vmatprep.mubr.bf16.mxu0 %v752
      %4048 = vmatmul.mubr.bf16.gmra.mrb[0].mxu0 %v718
      %v4049 = vpop.f32.mrb[0].mxu0
      %v4050 = vadd.f32 %v3977, %v4049
      %v4051 = vpop.f32.mrb[0].mxu0
      %v4052 = vpop.f32.mrb[0].mxu0
      %v4053 = vadd.f32 %v3980, %v4052
      %v4054 = vpop.f32.mrb[0].mxu0
      %4055 = vmatprep.mubr.bf16.mxu0 %v754
      %4056 = vmatmul.mubr.bf16.gmra.mrb[0].mxu0 %v727
      %v4057 = vpop.f32.mrb[0].mxu0
      %v4058 = vadd.f32 %v3985, %v4057
      %v4059 = vpop.f32.mrb[0].mxu0
      %v4060 = vpop.f32.mrb[0].mxu0
      %v4061 = vadd.f32 %v3988, %v4060
      %v4062 = vpop.f32.mrb[0].mxu0
      %4063 = vmatprep.mubr.bf16.mxu0 %v756
      %4064 = vmatmul.mubr.bf16.gmra.mrb[0].mxu0 %v736
      %v4065 = vpop.f32.mrb[0].mxu0
      %v4066 = vadd.f32 %v3993, %v4065
      %v4067 = vpop.f32.mrb[0].mxu0
      %v4068 = vpop.f32.mrb[0].mxu0
      %v4069 = vadd.f32 %v3996, %v4068
      %v4070 = vpop.f32.mrb[0].mxu0
      %4071 = vdwg.mxu0
      %4072 = vmatprep.subr.bf16.mxu0 0
      %4073 = vmatpush1.bf16.msra.mxu0 %v3469
      %4074 = vmatprep.subr.bf16.mxu0 0
      %4075 = vmatpush1.bf16.msra.mxu0 %v3470
      %4076 = vmatprep.subr.bf16.mxu0 0
      %4077 = vmatpush1.bf16.msra.mxu0 %v3471
      %4078 = vmatprep.subr.bf16.mxu0 0
      %4079 = vmatpush1.bf16.msra.mxu0 %v3472
      %4080 = vmatprep.subr.bf16.mxu0 0
      %4081 = vmatpush1.bf16.msra.mxu0 %v3473
      %4082 = vmatprep.subr.bf16.mxu0 0
      %4083 = vmatpush1.bf16.msra.mxu0 %v3474
      %4084 = vmatprep.subr.bf16.mxu0 0
      %4085 = vmatpush1.bf16.msra.mxu0 %v3475
      %4086 = vmatprep.subr.bf16.mxu0 0
      %4087 = vmatpush1.bf16.msra.mxu0 %v3476
      %4088 = vmatprep.subr.bf16.mxu0 0
      %4089 = vmatpush1.bf16.msra.mxu0 %v3477
      %4090 = vmatprep.subr.bf16.mxu0 0
      %4091 = vmatpush1.bf16.msra.mxu0 %v3478
      %4092 = vmatprep.subr.bf16.mxu0 0
      %4093 = vmatpush1.bf16.msra.mxu0 %v3479
      %4094 = vmatprep.subr.bf16.mxu0 0
      %4095 = vmatpush1.bf16.msra.mxu0 %v3480
      %4096 = vmatprep.subr.bf16.mxu0 0
      %4097 = vmatpush1.bf16.msra.mxu0 %v3481
      %4098 = vmatprep.subr.bf16.mxu0 0
      %4099 = vmatpush1.bf16.msra.mxu0 %v3482
      %4100 = vmatprep.subr.bf16.mxu0 0
      %4101 = vmatpush1.bf16.msra.mxu0 %v3483
      %4102 = vmatprep.subr.bf16.mxu0 0
      %4103 = vmatpush1.bf16.msra.mxu0 %v3484
      %4104 = vmatprep.mubr.bf16.mxu0 %v826
      %4105 = vmatmul.mubr.bf16.gmra.mrb[0].mxu0 %v792
      %v4106 = vpop.f32.mrb[0].mxu0
      %v4107 = vadd.f32 %v4034, %v4106
      %v4108 = vpop.f32.mrb[0].mxu0
      %v4109 = vpop.f32.mrb[0].mxu0
      %v4110 = vadd.f32 %v4037, %v4109
      %v4111 = vpop.f32.mrb[0].mxu0
      %4112 = vmatprep.mubr.bf16.mxu0 %v835
      %4113 = vmatmul.mubr.bf16.gmra.mrb[0].mxu0 %v794
      %v4114 = vpop.f32.mrb[0].mxu0
      %v4115 = vadd.f32 %v4042, %v4114
      %v4116 = vpop.f32.mrb[0].mxu0
      %v4117 = vpop.f32.mrb[0].mxu0
      %v4118 = vadd.f32 %v4045, %v4117
      %v4119 = vpop.f32.mrb[0].mxu0
      %4120 = vmatprep.mubr.bf16.mxu0 %v844
      %4121 = vmatmul.mubr.bf16.gmra.mrb[0].mxu0 %v796
      %v4122 = vpop.f32.mrb[0].mxu0
      %v4123 = vadd.f32 %v4050, %v4122
      %v4124 = vpop.f32.mrb[0].mxu0
      %v4125 = vpop.f32.mrb[0].mxu0
      %v4126 = vadd.f32 %v4053, %v4125
      %v4127 = vpop.f32.mrb[0].mxu0
      %4128 = vmatprep.mubr.bf16.mxu0 %v853
      %4129 = vmatmul.mubr.bf16.gmra.mrb[0].mxu0 %v798
      %v4130 = vpop.f32.mrb[0].mxu0
      %v4131 = vadd.f32 %v4058, %v4130
      %v4132 = vpop.f32.mrb[0].mxu0
      %v4133 = vpop.f32.mrb[0].mxu0
      %v4134 = vadd.f32 %v4061, %v4133
      %v4135 = vpop.f32.mrb[0].mxu0
      %4136 = vmatprep.mubr.bf16.mxu0 %v862
      %4137 = vmatmul.mubr.bf16.gmra.mrb[0].mxu0 %v800
      %v4138 = vpop.f32.mrb[0].mxu0
      %v4139 = vadd.f32 %v4066, %v4138
      %v4140 = vpop.f32.mrb[0].mxu0
      %v4141 = vpop.f32.mrb[0].mxu0
      %v4142 = vadd.f32 %v4069, %v4141
      %v4143 = vpop.f32.mrb[0].mxu0
      %4144 = vdwg.mxu0
      %4145 = vmatprep.subr.bf16.mxu0 0
      %4146 = vmatpush1.bf16.msra.mxu0 %v3485
      %4147 = vmatprep.subr.bf16.mxu0 0
      %4148 = vmatpush1.bf16.msra.mxu0 %v3486
      %4149 = vmatprep.subr.bf16.mxu0 0
      %4150 = vmatpush1.bf16.msra.mxu0 %v3487
      %4151 = vmatprep.subr.bf16.mxu0 0
      %4152 = vmatpush1.bf16.msra.mxu0 %v3488
      %4153 = vmatprep.subr.bf16.mxu0 0
      %4154 = vmatpush1.bf16.msra.mxu0 %v3489
      %4155 = vmatprep.subr.bf16.mxu0 0
      %4156 = vmatpush1.bf16.msra.mxu0 %v3490
      %4157 = vmatprep.subr.bf16.mxu0 0
      %4158 = vmatpush1.bf16.msra.mxu0 %v3491
      %4159 = vmatprep.subr.bf16.mxu0 0
      %4160 = vmatpush1.bf16.msra.mxu0 %v3492
      %4161 = vmatprep.subr.bf16.mxu0 0
      %4162 = vmatpush1.bf16.msra.mxu0 %v3493
      %4163 = vmatprep.subr.bf16.mxu0 0
      %4164 = vmatpush1.bf16.msra.mxu0 %v3494
      %4165 = vmatprep.subr.bf16.mxu0 0
      %4166 = vmatpush1.bf16.msra.mxu0 %v3495
      %4167 = vmatprep.subr.bf16.mxu0 0
      %4168 = vmatpush1.bf16.msra.mxu0 %v3496
      %4169 = vmatprep.subr.bf16.mxu0 0
      %4170 = vmatpush1.bf16.msra.mxu0 %v3497
      %4171 = vmatprep.subr.bf16.mxu0 0
      %4172 = vmatpush1.bf16.msra.mxu0 %v3498
      %4173 = vmatprep.subr.bf16.mxu0 0
      %4174 = vmatpush1.bf16.msra.mxu0 %v3499
      %4175 = vmatprep.subr.bf16.mxu0 0
      %4176 = vmatpush1.bf16.msra.mxu0 %v3500
      %4177 = vmatprep.mubr.bf16.mxu0 %v908
      %4178 = vmatmul.mubr.bf16.gmra.mrb[0].mxu0 %v874
      %v4179 = vpop.f32.mrb[0].mxu0
      %v4180 = vadd.f32 %v4107, %v4179
      %v4181 = vpop.f32.mrb[0].mxu0
      %v4182 = vpop.f32.mrb[0].mxu0
      %v4183 = vadd.f32 %v4110, %v4182
      %v4184 = vpop.f32.mrb[0].mxu0
      %4185 = vmatprep.mubr.bf16.mxu0 %v909
      %4186 = vmatmul.mubr.bf16.gmra.mrb[0].mxu0 %v876
      %v4187 = vpop.f32.mrb[0].mxu0
      %v4188 = vadd.f32 %v4115, %v4187
      %v4189 = vpop.f32.mrb[0].mxu0
      %v4190 = vpop.f32.mrb[0].mxu0
      %v4191 = vadd.f32 %v4118, %v4190
      %v4192 = vpop.f32.mrb[0].mxu0
      %4193 = vmatprep.mubr.bf16.mxu0 %v910
      %4194 = vmatmul.mubr.bf16.gmra.mrb[0].mxu0 %v878
      %v4195 = vpop.f32.mrb[0].mxu0
      %v4196 = vadd.f32 %v4123, %v4195
      %v4197 = vpop.f32.mrb[0].mxu0
      %v4198 = vpop.f32.mrb[0].mxu0
      %v4199 = vadd.f32 %v4126, %v4198
      %v4200 = vpop.f32.mrb[0].mxu0
      %4201 = vmatprep.mubr.bf16.mxu0 %v911
      %4202 = vmatmul.mubr.bf16.gmra.mrb[0].mxu0 %v880
      %v4203 = vpop.f32.mrb[0].mxu0
      %v4204 = vadd.f32 %v4131, %v4203
      %v4205 = vpop.f32.mrb[0].mxu0
      %v4206 = vpop.f32.mrb[0].mxu0
      %v4207 = vadd.f32 %v4134, %v4206
      %v4208 = vpop.f32.mrb[0].mxu0
      %4209 = vmatprep.mubr.bf16.mxu0 %v912
      %4210 = vmatmul.mubr.bf16.gmra.mrb[0].mxu0 %v882
      %v4211 = vpop.f32.mrb[0].mxu0
      %v4212 = vadd.f32 %v4139, %v4211
      %v4213 = vpop.f32.mrb[0].mxu0
      %v4214 = vpop.f32.mrb[0].mxu0
      %v4215 = vadd.f32 %v4142, %v4214
      %v4216 = vpop.f32.mrb[0].mxu0
      %4217 = vdwg.mxu0
      %4218 = vmatprep.subr.bf16.mxu0 0
      %4219 = vmatpush1.bf16.msra.mxu0 %v3501
      %4220 = vmatprep.subr.bf16.mxu0 0
      %4221 = vmatpush1.bf16.msra.mxu0 %v3502
      %4222 = vmatprep.subr.bf16.mxu0 0
      %4223 = vmatpush1.bf16.msra.mxu0 %v3503
      %4224 = vmatprep.subr.bf16.mxu0 0
      %4225 = vmatpush1.bf16.msra.mxu0 %v3504
      %4226 = vmatprep.subr.bf16.mxu0 0
      %4227 = vmatpush1.bf16.msra.mxu0 %v3505
      %4228 = vmatprep.subr.bf16.mxu0 0
      %4229 = vmatpush1.bf16.msra.mxu0 %v3506
      %4230 = vmatprep.subr.bf16.mxu0 0
      %4231 = vmatpush1.bf16.msra.mxu0 %v3507
      %4232 = vmatprep.subr.bf16.mxu0 0
      %4233 = vmatpush1.bf16.msra.mxu0 %v3508
      %4234 = vmatprep.subr.bf16.mxu0 0
      %4235 = vmatpush1.bf16.msra.mxu0 %v3509
      %4236 = vmatprep.subr.bf16.mxu0 0
      %4237 = vmatpush1.bf16.msra.mxu0 %v3510
      %4238 = vmatprep.subr.bf16.mxu0 0
      %4239 = vmatpush1.bf16.msra.mxu0 %v3511
      %4240 = vmatprep.subr.bf16.mxu0 0
      %4241 = vmatpush1.bf16.msra.mxu0 %v3512
      %4242 = vmatprep.subr.bf16.mxu0 0
      %4243 = vmatpush1.bf16.msra.mxu0 %v3513
      %4244 = vmatprep.subr.bf16.mxu0 0
      %4245 = vmatpush1.bf16.msra.mxu0 %v3514
      %4246 = vmatprep.subr.bf16.mxu0 0
      %4247 = vmatpush1.bf16.msra.mxu0 %v3515
      %4248 = vmatprep.subr.bf16.mxu0 0
      %4249 = vmatpush1.bf16.msra.mxu0 %v3516
      %4250 = vmatprep.mubr.bf16.mxu0 %v975
      %4251 = vmatmul.mubr.bf16.gmra.mrb[0].mxu0 %v932
      %v4252 = vpop.f32.mrb[0].mxu0
      %v4253 = vadd.f32 %v4180, %v4252
      %v4254 = vpop.f32.mrb[0].mxu0
      %v4255 = vpop.f32.mrb[0].mxu0
      %v4256 = vadd.f32 %v4183, %v4255
      %v4257 = vpop.f32.mrb[0].mxu0
      %4258 = vmatprep.mubr.bf16.mxu0 %v977
      %4259 = vmatmul.mubr.bf16.gmra.mrb[0].mxu0 %v940
      %v4260 = vpop.f32.mrb[0].mxu0
      %v4261 = vadd.f32 %v4188, %v4260
      %v4262 = vpop.f32.mrb[0].mxu0
      %v4263 = vpop.f32.mrb[0].mxu0
      %v4264 = vadd.f32 %v4191, %v4263
      %v4265 = vpop.f32.mrb[0].mxu0
      %4266 = vmatprep.mubr.bf16.mxu0 %v979
      %4267 = vmatmul.mubr.bf16.gmra.mrb[0].mxu0 %v948
      %v4268 = vpop.f32.mrb[0].mxu0
      %v4269 = vadd.f32 %v4196, %v4268
      %v4270 = vpop.f32.mrb[0].mxu0
      %v4271 = vpop.f32.mrb[0].mxu0
      %v4272 = vadd.f32 %v4199, %v4271
      %v4273 = vpop.f32.mrb[0].mxu0
      %4274 = vmatprep.mubr.bf16.mxu0 %v981
      %4275 = vmatmul.mubr.bf16.gmra.mrb[0].mxu0 %v956
      %v4276 = vpop.f32.mrb[0].mxu0
      %v4277 = vadd.f32 %v4204, %v4276
      %v4278 = vpop.f32.mrb[0].mxu0
      %v4279 = vpop.f32.mrb[0].mxu0
      %v4280 = vadd.f32 %v4207, %v4279
      %v4281 = vpop.f32.mrb[0].mxu0
      %4282 = vmatprep.mubr.bf16.mxu0 %v983
      %4283 = vmatmul.mubr.bf16.gmra.mrb[0].mxu0 %v964
      %v4284 = vpop.f32.mrb[0].mxu0
      %v4285 = vadd.f32 %v4212, %v4284
      %v4286 = vpop.f32.mrb[0].mxu0
      %v4287 = vpop.f32.mrb[0].mxu0
      %v4288 = vadd.f32 %v4215, %v4287
      %v4289 = vpop.f32.mrb[0].mxu0
      %4290 = vdwg.mxu0
      %4291 = vmatprep.subr.bf16.mxu0 0
      %4292 = vmatpush1.bf16.msra.mxu0 %v3517
      %4293 = vmatprep.subr.bf16.mxu0 0
      %4294 = vmatpush1.bf16.msra.mxu0 %v3518
      %4295 = vmatprep.subr.bf16.mxu0 0
      %4296 = vmatpush1.bf16.msra.mxu0 %v3519
      %4297 = vmatprep.subr.bf16.mxu0 0
      %4298 = vmatpush1.bf16.msra.mxu0 %v3520
      %4299 = vmatprep.subr.bf16.mxu0 0
      %4300 = vmatpush1.bf16.msra.mxu0 %v3521
      %4301 = vmatprep.subr.bf16.mxu0 0
      %4302 = vmatpush1.bf16.msra.mxu0 %v3522
      %4303 = vmatprep.subr.bf16.mxu0 0
      %4304 = vmatpush1.bf16.msra.mxu0 %v3523
      %4305 = vmatprep.subr.bf16.mxu0 0
      %4306 = vmatpush1.bf16.msra.mxu0 %v3524
      %4307 = vmatprep.subr.bf16.mxu0 0
      %4308 = vmatpush1.bf16.msra.mxu0 %v3525
      %4309 = vmatprep.subr.bf16.mxu0 0
      %4310 = vmatpush1.bf16.msra.mxu0 %v3526
      %4311 = vmatprep.subr.bf16.mxu0 0
      %4312 = vmatpush1.bf16.msra.mxu0 %v3527
      %4313 = vmatprep.subr.bf16.mxu0 0
      %4314 = vmatpush1.bf16.msra.mxu0 %v3528
      %4315 = vmatprep.subr.bf16.mxu0 0
      %4316 = vmatpush1.bf16.msra.mxu0 %v3529
      %4317 = vmatprep.subr.bf16.mxu0 0
      %4318 = vmatpush1.bf16.msra.mxu0 %v3530
      %4319 = vmatprep.subr.bf16.mxu0 0
      %4320 = vmatpush1.bf16.msra.mxu0 %v3531
      %4321 = vmatprep.subr.bf16.mxu0 0
      %4322 = vmatpush1.bf16.msra.mxu0 %v3532
      %4323 = vmatprep.mubr.bf16.mxu0 %v1036
      %4324 = vmatmul.mubr.bf16.gmra.mrb[0].mxu0 %v1003
      %v4325 = vpop.f32.mrb[0].mxu0
      %v4326 = vadd.f32 %v4253, %v4325
      %v4327 = vpop.f32.mrb[0].mxu0
      %v4328 = vpop.f32.mrb[0].mxu0
      %v4329 = vadd.f32 %v4256, %v4328
      %v4330 = vpop.f32.mrb[0].mxu0
      %4331 = vmatprep.mubr.bf16.mxu0 %v1045
      %4332 = vmatmul.mubr.bf16.gmra.mrb[0].mxu0 %v1005
      %v4333 = vpop.f32.mrb[0].mxu0
      %v4334 = vadd.f32 %v4261, %v4333
      %v4335 = vpop.f32.mrb[0].mxu0
      %v4336 = vpop.f32.mrb[0].mxu0
      %v4337 = vadd.f32 %v4264, %v4336
      %v4338 = vpop.f32.mrb[0].mxu0
      %4339 = vmatprep.mubr.bf16.mxu0 %v1054
      %4340 = vmatmul.mubr.bf16.gmra.mrb[0].mxu0 %v1007
      %v4341 = vpop.f32.mrb[0].mxu0
      %v4342 = vadd.f32 %v4269, %v4341
      %v4343 = vpop.f32.mrb[0].mxu0
      %v4344 = vpop.f32.mrb[0].mxu0
      %v4345 = vadd.f32 %v4272, %v4344
      %v4346 = vpop.f32.mrb[0].mxu0
      %4347 = vmatprep.mubr.bf16.mxu0 %v1063
      %4348 = vmatmul.mubr.bf16.gmra.mrb[0].mxu0 %v1009
      %v4349 = vpop.f32.mrb[0].mxu0
      %v4350 = vadd.f32 %v4277, %v4349
      %v4351 = vpop.f32.mrb[0].mxu0
      %v4352 = vpop.f32.mrb[0].mxu0
      %v4353 = vadd.f32 %v4280, %v4352
      %v4354 = vpop.f32.mrb[0].mxu0
      %4355 = vmatprep.mubr.bf16.mxu0 %v1072
      %4356 = vmatmul.mubr.bf16.gmra.mrb[0].mxu0 %v1011
      %v4357 = vpop.f32.mrb[0].mxu0
      %v4358 = vadd.f32 %v4285, %v4357
      %v4359 = vpop.f32.mrb[0].mxu0
      %v4360 = vpop.f32.mrb[0].mxu0
      %v4361 = vadd.f32 %v4288, %v4360
      %v4362 = vpop.f32.mrb[0].mxu0
      %4363 = vdwg.mxu0
      %4364 = vmatprep.subr.bf16.mxu0 0
      %4365 = vmatpush1.bf16.msra.mxu0 %v3533
      %4366 = vmatprep.subr.bf16.mxu0 0
      %4367 = vmatpush1.bf16.msra.mxu0 %v3534
      %4368 = vmatprep.subr.bf16.mxu0 0
      %4369 = vmatpush1.bf16.msra.mxu0 %v3535
      %4370 = vmatprep.subr.bf16.mxu0 0
      %4371 = vmatpush1.bf16.msra.mxu0 %v3536
      %4372 = vmatprep.subr.bf16.mxu0 0
      %4373 = vmatpush1.bf16.msra.mxu0 %v3537
      %4374 = vmatprep.subr.bf16.mxu0 0
      %4375 = vmatpush1.bf16.msra.mxu0 %v3538
      %4376 = vmatprep.subr.bf16.mxu0 0
      %4377 = vmatpush1.bf16.msra.mxu0 %v3539
      %4378 = vmatprep.subr.bf16.mxu0 0
      %4379 = vmatpush1.bf16.msra.mxu0 %v3540
      %4380 = vmatprep.subr.bf16.mxu0 0
      %4381 = vmatpush1.bf16.msra.mxu0 %v3541
      %4382 = vmatprep.subr.bf16.mxu0 0
      %4383 = vmatpush1.bf16.msra.mxu0 %v3542
      %4384 = vmatprep.subr.bf16.mxu0 0
      %4385 = vmatpush1.bf16.msra.mxu0 %v3543
      %4386 = vmatprep.subr.bf16.mxu0 0
      %4387 = vmatpush1.bf16.msra.mxu0 %v3544
      %4388 = vmatprep.subr.bf16.mxu0 0
      %4389 = vmatpush1.bf16.msra.mxu0 %v3545
      %4390 = vmatprep.subr.bf16.mxu0 0
      %4391 = vmatpush1.bf16.msra.mxu0 %v3546
      %4392 = vmatprep.subr.bf16.mxu0 0
      %4393 = vmatpush1.bf16.msra.mxu0 %v3547
      %4394 = vmatprep.subr.bf16.mxu0 0
      %4395 = vmatpush1.bf16.msra.mxu0 %v3548
      %4396 = vmatprep.mubr.bf16.mxu0 %v1127
      %4397 = vmatmul.mubr.bf16.gmra.mrb[0].mxu0 %v1083
      %v4398 = vpop.f32.mrb[0].mxu0
      %v4399 = vadd.f32 %v4326, %v4398
      %v4400 = vpop.f32.mrb[0].mxu0
      %v4401 = vpop.f32.mrb[0].mxu0
      %v4402 = vadd.f32 %v4329, %v4401
      %v4403 = vpop.f32.mrb[0].mxu0
      %4404 = vmatprep.mubr.bf16.mxu0 %v1129
      %4405 = vmatmul.mubr.bf16.gmra.mrb[0].mxu0 %v1085
      %v4406 = vpop.f32.mrb[0].mxu0
      %v4407 = vadd.f32 %v4334, %v4406
      %v4408 = vpop.f32.mrb[0].mxu0
      %v4409 = vpop.f32.mrb[0].mxu0
      %v4410 = vadd.f32 %v4337, %v4409
      %v4411 = vpop.f32.mrb[0].mxu0
      %4412 = vmatprep.mubr.bf16.mxu0 %v1131
      %4413 = vmatmul.mubr.bf16.gmra.mrb[0].mxu0 %v1087
      %v4414 = vpop.f32.mrb[0].mxu0
      %v4415 = vadd.f32 %v4342, %v4414
      %v4416 = vpop.f32.mrb[0].mxu0
      %v4417 = vpop.f32.mrb[0].mxu0
      %v4418 = vadd.f32 %v4345, %v4417
      %v4419 = vpop.f32.mrb[0].mxu0
      %4420 = vmatprep.mubr.bf16.mxu0 %v1133
      %4421 = vmatmul.mubr.bf16.gmra.mrb[0].mxu0 %v1089
      %v4422 = vpop.f32.mrb[0].mxu0
      %v4423 = vadd.f32 %v4350, %v4422
      %v4424 = vpop.f32.mrb[0].mxu0
      %v4425 = vpop.f32.mrb[0].mxu0
      %v4426 = vadd.f32 %v4353, %v4425
      %v4427 = vpop.f32.mrb[0].mxu0
      %4428 = vmatprep.mubr.bf16.mxu0 %v1135
      %4429 = vmatmul.mubr.bf16.gmra.mrb[0].mxu0 %v1091
      %v4430 = vpop.f32.mrb[0].mxu0
      %v4431 = vadd.f32 %v4358, %v4430
      %v4432 = vpop.f32.mrb[0].mxu0
      %v4433 = vpop.f32.mrb[0].mxu0
      %v4434 = vadd.f32 %v4361, %v4433
      %v4435 = vpop.f32.mrb[0].mxu0
      %4436 = vdwg.mxu0
      %4437 = vmatprep.subr.bf16.mxu0 0
      %4438 = vmatpush1.bf16.msra.mxu0 %v3549
      %4439 = vmatprep.subr.bf16.mxu0 0
      %4440 = vmatpush1.bf16.msra.mxu0 %v3550
      %4441 = vmatprep.subr.bf16.mxu0 0
      %4442 = vmatpush1.bf16.msra.mxu0 %v3551
      %4443 = vmatprep.subr.bf16.mxu0 0
      %4444 = vmatpush1.bf16.msra.mxu0 %v3552
      %4445 = vmatprep.subr.bf16.mxu0 0
      %4446 = vmatpush1.bf16.msra.mxu0 %v3553
      %4447 = vmatprep.subr.bf16.mxu0 0
      %4448 = vmatpush1.bf16.msra.mxu0 %v3554
      %4449 = vmatprep.subr.bf16.mxu0 0
      %4450 = vmatpush1.bf16.msra.mxu0 %v3555
      %4451 = vmatprep.subr.bf16.mxu0 0
      %4452 = vmatpush1.bf16.msra.mxu0 %v3556
      %4453 = vmatprep.subr.bf16.mxu0 0
      %4454 = vmatpush1.bf16.msra.mxu0 %v3557
      %4455 = vmatprep.subr.bf16.mxu0 0
      %4456 = vmatpush1.bf16.msra.mxu0 %v3558
      %4457 = vmatprep.subr.bf16.mxu0 0
      %4458 = vmatpush1.bf16.msra.mxu0 %v3559
      %4459 = vmatprep.subr.bf16.mxu0 0
      %4460 = vmatpush1.bf16.msra.mxu0 %v3560
      %4461 = vmatprep.subr.bf16.mxu0 0
      %4462 = vmatpush1.bf16.msra.mxu0 %v3561
      %4463 = vmatprep.subr.bf16.mxu0 0
      %4464 = vmatpush1.bf16.msra.mxu0 %v3562
      %4465 = vmatprep.subr.bf16.mxu0 0
      %4466 = vmatpush1.bf16.msra.mxu0 %v3563
      %4467 = vmatprep.subr.bf16.mxu0 0
      %4468 = vmatpush1.bf16.msra.mxu0 %v3564
      %4469 = vmatprep.mubr.bf16.mxu0 %v1563
      %4470 = vmatmul.mubr.bf16.gmra.mrb[0].mxu0 %v1546
      %v4471 = vpop.f32.mrb[0].mxu0
      %v4472 = vadd.f32 %v4399, %v4471
      %v4473 = vpop.f32.mrb[0].mxu0
      %v4474 = vpop.f32.mrb[0].mxu0
      %v4475 = vadd.f32 %v4402, %v4474
      %v4476 = vpop.f32.mrb[0].mxu0
      %4477 = vmatprep.mubr.bf16.mxu0 %v1719
      %4478 = vmatmul.mubr.bf16.gmra.mrb[0].mxu0 %v1710
      %v4479 = vpop.f32.mrb[0].mxu0
      %v4480 = vadd.f32 %v4407, %v4479
      %v4481 = vpop.f32.mrb[0].mxu0
      %v4482 = vpop.f32.mrb[0].mxu0
      %v4483 = vadd.f32 %v4410, %v4482
      %v4484 = vpop.f32.mrb[0].mxu0
      %4485 = vmatprep.mubr.bf16.mxu0 %v1808
      %4486 = vmatmul.mubr.bf16.gmra.mrb[0].mxu0 %v1799
      %v4487 = vpop.f32.mrb[0].mxu0
      %v4488 = vadd.f32 %v4415, %v4487
      %v4489 = vpop.f32.mrb[0].mxu0
      %v4490 = vpop.f32.mrb[0].mxu0
      %v4491 = vadd.f32 %v4418, %v4490
      %v4492 = vpop.f32.mrb[0].mxu0
      %4493 = vmatprep.mubr.bf16.mxu0 %v1897
      %4494 = vmatmul.mubr.bf16.gmra.mrb[0].mxu0 %v1888
      %v4495 = vpop.f32.mrb[0].mxu0
      %v4496 = vadd.f32 %v4423, %v4495
      %v4497 = vpop.f32.mrb[0].mxu0
      %v4498 = vpop.f32.mrb[0].mxu0
      %v4499 = vadd.f32 %v4426, %v4498
      %v4500 = vpop.f32.mrb[0].mxu0
      %4501 = vmatprep.mubr.bf16.mxu0 %v1986
      %4502 = vmatmul.mubr.bf16.gmra.mrb[0].mxu0 %v1977
      %v4503 = vpop.f32.mrb[0].mxu0
      %v4504 = vadd.f32 %v4431, %v4503
      %v4505 = vpop.f32.mrb[0].mxu0
      %v4506 = vpop.f32.mrb[0].mxu0
      %v4507 = vadd.f32 %v4434, %v4506
      %v4508 = vpop.f32.mrb[0].mxu0
      %4509 = vdwg.mxu0
      %4510 = vmatprep.subr.bf16.mxu0 0
      %4511 = vmatpush1.bf16.msra.mxu0 %v3565
      %4512 = vmatprep.subr.bf16.mxu0 0
      %4513 = vmatpush1.bf16.msra.mxu0 %v3566
      %4514 = vmatprep.subr.bf16.mxu0 0
      %4515 = vmatpush1.bf16.msra.mxu0 %v3567
      %4516 = vmatprep.subr.bf16.mxu0 0
      %4517 = vmatpush1.bf16.msra.mxu0 %v3568
      %4518 = vmatprep.subr.bf16.mxu0 0
      %4519 = vmatpush1.bf16.msra.mxu0 %v3569
      %4520 = vmatprep.subr.bf16.mxu0 0
      %4521 = vmatpush1.bf16.msra.mxu0 %v3570
      %4522 = vmatprep.subr.bf16.mxu0 0
      %4523 = vmatpush1.bf16.msra.mxu0 %v3571
      %4524 = vmatprep.subr.bf16.mxu0 0
      %4525 = vmatpush1.bf16.msra.mxu0 %v3572
      %4526 = vmatprep.subr.bf16.mxu0 0
      %4527 = vmatpush1.bf16.msra.mxu0 %v3573
      %4528 = vmatprep.subr.bf16.mxu0 0
      %4529 = vmatpush1.bf16.msra.mxu0 %v3574
      %4530 = vmatprep.subr.bf16.mxu0 0
      %4531 = vmatpush1.bf16.msra.mxu0 %v3575
      %4532 = vmatprep.subr.bf16.mxu0 0
      %4533 = vmatpush1.bf16.msra.mxu0 %v3576
      %4534 = vmatprep.subr.bf16.mxu0 0
      %4535 = vmatpush1.bf16.msra.mxu0 %v3577
      %4536 = vmatprep.subr.bf16.mxu0 0
      %4537 = vmatpush1.bf16.msra.mxu0 %v3578
      %4538 = vmatprep.subr.bf16.mxu0 0
      %4539 = vmatpush1.bf16.msra.mxu0 %v3579
      %4540 = vmatprep.subr.bf16.mxu0 0
      %4541 = vmatpush1.bf16.msra.mxu0 %v3580
      %4542 = vmatprep.mubr.bf16.mxu0 %v1597
      %4543 = vmatmul.mubr.bf16.gmra.mrb[0].mxu0 %v1580
      %v4544 = vpop.f32.mrb[0].mxu0
      %v4545 = vadd.f32 %v4472, %v4544
      %v4546 = vpop.f32.mrb[0].mxu0
      %v4547 = vpop.f32.mrb[0].mxu0
      %v4548 = vadd.f32 %v4475, %v4547
      %v4549 = vpop.f32.mrb[0].mxu0
      %4550 = vmatprep.mubr.bf16.mxu0 %v1737
      %4551 = vmatmul.mubr.bf16.gmra.mrb[0].mxu0 %v1728
      %v4552 = vpop.f32.mrb[0].mxu0
      %v4553 = vadd.f32 %v4480, %v4552
      %v4554 = vpop.f32.mrb[0].mxu0
      %v4555 = vpop.f32.mrb[0].mxu0
      %v4556 = vadd.f32 %v4483, %v4555
      %v4557 = vpop.f32.mrb[0].mxu0
      %4558 = vmatprep.mubr.bf16.mxu0 %v1826
      %4559 = vmatmul.mubr.bf16.gmra.mrb[0].mxu0 %v1817
      %v4560 = vpop.f32.mrb[0].mxu0
      %v4561 = vadd.f32 %v4488, %v4560
      %v4562 = vpop.f32.mrb[0].mxu0
      %v4563 = vpop.f32.mrb[0].mxu0
      %v4564 = vadd.f32 %v4491, %v4563
      %v4565 = vpop.f32.mrb[0].mxu0
      %4566 = vmatprep.mubr.bf16.mxu0 %v1915
      %4567 = vmatmul.mubr.bf16.gmra.mrb[0].mxu0 %v1906
      %v4568 = vpop.f32.mrb[0].mxu0
      %v4569 = vadd.f32 %v4496, %v4568
      %v4570 = vpop.f32.mrb[0].mxu0
      %v4571 = vpop.f32.mrb[0].mxu0
      %v4572 = vadd.f32 %v4499, %v4571
      %v4573 = vpop.f32.mrb[0].mxu0
      %4574 = vmatprep.mubr.bf16.mxu0 %v2004
      %4575 = vmatmul.mubr.bf16.gmra.mrb[0].mxu0 %v1995
      %v4576 = vpop.f32.mrb[0].mxu0
      %v4577 = vadd.f32 %v4504, %v4576
      %v4578 = vpop.f32.mrb[0].mxu0
      %v4579 = vpop.f32.mrb[0].mxu0
      %v4580 = vadd.f32 %v4507, %v4579
      %v4581 = vpop.f32.mrb[0].mxu0
      %4582 = vdwg.mxu0
      %4583 = vmatprep.subr.bf16.mxu0 0
      %4584 = vmatpush1.bf16.msra.mxu0 %v3581
      %4585 = vmatprep.subr.bf16.mxu0 0
      %4586 = vmatpush1.bf16.msra.mxu0 %v3582
      %4587 = vmatprep.subr.bf16.mxu0 0
      %4588 = vmatpush1.bf16.msra.mxu0 %v3583
      %4589 = vmatprep.subr.bf16.mxu0 0
      %4590 = vmatpush1.bf16.msra.mxu0 %v3584
      %4591 = vmatprep.subr.bf16.mxu0 0
      %4592 = vmatpush1.bf16.msra.mxu0 %v3585
      %4593 = vmatprep.subr.bf16.mxu0 0
      %4594 = vmatpush1.bf16.msra.mxu0 %v3586
      %4595 = vmatprep.subr.bf16.mxu0 0
      %4596 = vmatpush1.bf16.msra.mxu0 %v3587
      %4597 = vmatprep.subr.bf16.mxu0 0
      %4598 = vmatpush1.bf16.msra.mxu0 %v3588
      %4599 = vmatprep.subr.bf16.mxu0 0
      %4600 = vmatpush1.bf16.msra.mxu0 %v3589
      %4601 = vmatprep.subr.bf16.mxu0 0
      %4602 = vmatpush1.bf16.msra.mxu0 %v3590
      %4603 = vmatprep.subr.bf16.mxu0 0
      %4604 = vmatpush1.bf16.msra.mxu0 %v3591
      %4605 = vmatprep.subr.bf16.mxu0 0
      %4606 = vmatpush1.bf16.msra.mxu0 %v3592
      %4607 = vmatprep.subr.bf16.mxu0 0
      %4608 = vmatpush1.bf16.msra.mxu0 %v3593
      %4609 = vmatprep.subr.bf16.mxu0 0
      %4610 = vmatpush1.bf16.msra.mxu0 %v3594
      %4611 = vmatprep.subr.bf16.mxu0 0
      %4612 = vmatpush1.bf16.msra.mxu0 %v3595
      %4613 = vmatprep.subr.bf16.mxu0 0
      %4614 = vmatpush1.bf16.msra.mxu0 %v3596
      %4615 = vmatprep.mubr.bf16.mxu0 %v1631
      %4616 = vmatmul.mubr.bf16.gmra.mrb[0].mxu0 %v1614
      %v4617 = vpop.f32.mrb[0].mxu0
      %v4618 = vadd.f32 %v4545, %v4617
      %v4619 = vpop.f32.mrb[0].mxu0
      %v4620 = vpop.f32.mrb[0].mxu0
      %v4621 = vadd.f32 %v4548, %v4620
      %v4622 = vpop.f32.mrb[0].mxu0
      %4623 = vmatprep.mubr.bf16.mxu0 %v1755
      %4624 = vmatmul.mubr.bf16.gmra.mrb[0].mxu0 %v1746
      %v4625 = vpop.f32.mrb[0].mxu0
      %v4626 = vadd.f32 %v4553, %v4625
      %v4627 = vpop.f32.mrb[0].mxu0
      %v4628 = vpop.f32.mrb[0].mxu0
      %v4629 = vadd.f32 %v4556, %v4628
      %v4630 = vpop.f32.mrb[0].mxu0
      %4631 = vmatprep.mubr.bf16.mxu0 %v1844
      %4632 = vmatmul.mubr.bf16.gmra.mrb[0].mxu0 %v1835
      %v4633 = vpop.f32.mrb[0].mxu0
      %v4634 = vadd.f32 %v4561, %v4633
      %v4635 = vpop.f32.mrb[0].mxu0
      %v4636 = vpop.f32.mrb[0].mxu0
      %v4637 = vadd.f32 %v4564, %v4636
      %v4638 = vpop.f32.mrb[0].mxu0
      %4639 = vmatprep.mubr.bf16.mxu0 %v1933
      %4640 = vmatmul.mubr.bf16.gmra.mrb[0].mxu0 %v1924
      %v4641 = vpop.f32.mrb[0].mxu0
      %v4642 = vadd.f32 %v4569, %v4641
      %v4643 = vpop.f32.mrb[0].mxu0
      %v4644 = vpop.f32.mrb[0].mxu0
      %v4645 = vadd.f32 %v4572, %v4644
      %v4646 = vpop.f32.mrb[0].mxu0
      %4647 = vmatprep.mubr.bf16.mxu0 %v2022
      %4648 = vmatmul.mubr.bf16.gmra.mrb[0].mxu0 %v2013
      %v4649 = vpop.f32.mrb[0].mxu0
      %v4650 = vadd.f32 %v4577, %v4649
      %v4651 = vpop.f32.mrb[0].mxu0
      %v4652 = vpop.f32.mrb[0].mxu0
      %v4653 = vadd.f32 %v4580, %v4652
      %v4654 = vpop.f32.mrb[0].mxu0
      %4655 = vdwg.mxu0
      %4656 = vmatprep.subr.bf16.mxu0 0
      %4657 = vmatpush1.bf16.msra.mxu0 %v3597
      %4658 = vmatprep.subr.bf16.mxu0 0
      %4659 = vmatpush1.bf16.msra.mxu0 %v3598
      %4660 = vmatprep.subr.bf16.mxu0 0
      %4661 = vmatpush1.bf16.msra.mxu0 %v3599
      %4662 = vmatprep.subr.bf16.mxu0 0
      %4663 = vmatpush1.bf16.msra.mxu0 %v3600
      %4664 = vmatprep.subr.bf16.mxu0 0
      %4665 = vmatpush1.bf16.msra.mxu0 %v3601
      %4666 = vmatprep.subr.bf16.mxu0 0
      %4667 = vmatpush1.bf16.msra.mxu0 %v3602
      %4668 = vmatprep.subr.bf16.mxu0 0
      %4669 = vmatpush1.bf16.msra.mxu0 %v3603
      %4670 = vmatprep.subr.bf16.mxu0 0
      %4671 = vmatpush1.bf16.msra.mxu0 %v3604
      %4672 = vmatprep.subr.bf16.mxu0 0
      %4673 = vmatpush1.bf16.msra.mxu0 %v3605
      %4674 = vmatprep.subr.bf16.mxu0 0
      %4675 = vmatpush1.bf16.msra.mxu0 %v3606
      %4676 = vmatprep.subr.bf16.mxu0 0
      %4677 = vmatpush1.bf16.msra.mxu0 %v3607
      %4678 = vmatprep.subr.bf16.mxu0 0
      %4679 = vmatpush1.bf16.msra.mxu0 %v3608
      %4680 = vmatprep.subr.bf16.mxu0 0
      %4681 = vmatpush1.bf16.msra.mxu0 %v3609
      %4682 = vmatprep.subr.bf16.mxu0 0
      %4683 = vmatpush1.bf16.msra.mxu0 %v3610
      %4684 = vmatprep.subr.bf16.mxu0 0
      %4685 = vmatpush1.bf16.msra.mxu0 %v3611
      %4686 = vmatprep.subr.bf16.mxu0 0
      %4687 = vmatpush1.bf16.msra.mxu0 %v3612
      %4688 = vmatprep.mubr.bf16.mxu0 %v1665
      %4689 = vmatmul.mubr.bf16.gmra.mrb[0].mxu0 %v1648
      %v4690 = vpop.f32.mrb[0].mxu0
      %v4691 = vadd.f32 %v4618, %v4690
      %v4692 = vpop.f32.mrb[0].mxu0
      %v4693 = vpop.f32.mrb[0].mxu0
      %v4694 = vadd.f32 %v4621, %v4693
      %v4695 = vpop.f32.mrb[0].mxu0
      %4696 = vmatprep.mubr.bf16.mxu0 %v1773
      %4697 = vmatmul.mubr.bf16.gmra.mrb[0].mxu0 %v1764
      %v4698 = vpop.f32.mrb[0].mxu0
      %v4699 = vadd.f32 %v4626, %v4698
      %v4700 = vpop.f32.mrb[0].mxu0
      %v4701 = vpop.f32.mrb[0].mxu0
      %v4702 = vadd.f32 %v4629, %v4701
      %v4703 = vpop.f32.mrb[0].mxu0
      %4704 = vmatprep.mubr.bf16.mxu0 %v1862
      %4705 = vmatmul.mubr.bf16.gmra.mrb[0].mxu0 %v1853
      %v4706 = vpop.f32.mrb[0].mxu0
      %v4707 = vadd.f32 %v4634, %v4706
      %v4708 = vpop.f32.mrb[0].mxu0
      %v4709 = vpop.f32.mrb[0].mxu0
      %v4710 = vadd.f32 %v4637, %v4709
      %v4711 = vpop.f32.mrb[0].mxu0
      %4712 = vmatprep.mubr.bf16.mxu0 %v1951
      %4713 = vmatmul.mubr.bf16.gmra.mrb[0].mxu0 %v1942
      %v4714 = vpop.f32.mrb[0].mxu0
      %v4715 = vadd.f32 %v4642, %v4714
      %v4716 = vpop.f32.mrb[0].mxu0
      %v4717 = vpop.f32.mrb[0].mxu0
      %v4718 = vadd.f32 %v4645, %v4717
      %v4719 = vpop.f32.mrb[0].mxu0
      %4720 = vmatprep.mubr.bf16.mxu0 %v2040
      %4721 = vmatmul.mubr.bf16.gmra.mrb[0].mxu0 %v2031
      %v4722 = vpop.f32.mrb[0].mxu0
      %v4723 = vadd.f32 %v4650, %v4722
      %v4724 = vpop.f32.mrb[0].mxu0
      %v4725 = vpop.f32.mrb[0].mxu0
      %v4726 = vadd.f32 %v4653, %v4725
      %v4727 = vpop.f32.mrb[0].mxu0
      %4728 = vdwg.mxu0
      %4729 = vmatprep.subr.bf16.mxu0 0
      %4730 = vmatpush1.bf16.msra.mxu0 %v3613
      %4731 = vmatprep.subr.bf16.mxu0 0
      %4732 = vmatpush1.bf16.msra.mxu0 %v3614
      %4733 = vmatprep.subr.bf16.mxu0 0
      %4734 = vmatpush1.bf16.msra.mxu0 %v3615
      %4735 = vmatprep.subr.bf16.mxu0 0
      %4736 = vmatpush1.bf16.msra.mxu0 %v3616
      %4737 = vmatprep.subr.bf16.mxu0 0
      %4738 = vmatpush1.bf16.msra.mxu0 %v3617
      %4739 = vmatprep.subr.bf16.mxu0 0
      %4740 = vmatpush1.bf16.msra.mxu0 %v3618
      %4741 = vmatprep.subr.bf16.mxu0 0
      %4742 = vmatpush1.bf16.msra.mxu0 %v3619
      %4743 = vmatprep.subr.bf16.mxu0 0
      %4744 = vmatpush1.bf16.msra.mxu0 %v3620
      %4745 = vmatprep.subr.bf16.mxu0 0
      %4746 = vmatpush1.bf16.msra.mxu0 %v3621
      %4747 = vmatprep.subr.bf16.mxu0 0
      %4748 = vmatpush1.bf16.msra.mxu0 %v3622
      %4749 = vmatprep.subr.bf16.mxu0 0
      %4750 = vmatpush1.bf16.msra.mxu0 %v3623
      %4751 = vmatprep.subr.bf16.mxu0 0
      %4752 = vmatpush1.bf16.msra.mxu0 %v3624
      %4753 = vmatprep.subr.bf16.mxu0 0
      %4754 = vmatpush1.bf16.msra.mxu0 %v3625
      %4755 = vmatprep.subr.bf16.mxu0 0
      %4756 = vmatpush1.bf16.msra.mxu0 %v3626
      %4757 = vmatprep.subr.bf16.mxu0 0
      %4758 = vmatpush1.bf16.msra.mxu0 %v3627
      %4759 = vmatprep.subr.bf16.mxu0 0
      %4760 = vmatpush1.bf16.msra.mxu0 %v3628
      %4761 = vmatprep.mubr.bf16.mxu0 %v1689
      %4762 = vmatmul.mubr.bf16.gmra.mrb[0].mxu0 %v1682
      %v4763 = vpop.f32.mrb[0].mxu0
      %v4764 = vadd.f32 %v4691, %v4763
      %v4765 = vpop.f32.mrb[0].mxu0
      %v4766 = vpop.f32.mrb[0].mxu0
      %v4767 = vadd.f32 %v4694, %v4766
      %v4768 = vpop.f32.mrb[0].mxu0
      %4769 = vmatprep.mubr.bf16.mxu0 %v1786
      %4770 = vmatmul.mubr.bf16.gmra.mrb[0].mxu0 %v1782
      %v4771 = vpop.f32.mrb[0].mxu0
      %v4772 = vadd.f32 %v4699, %v4771
      %v4773 = vpop.f32.mrb[0].mxu0
      %v4774 = vpop.f32.mrb[0].mxu0
      %v4775 = vadd.f32 %v4702, %v4774
      %v4776 = vpop.f32.mrb[0].mxu0
      %4777 = vmatprep.mubr.bf16.mxu0 %v1875
      %4778 = vmatmul.mubr.bf16.gmra.mrb[0].mxu0 %v1871
      %v4779 = vpop.f32.mrb[0].mxu0
      %v4780 = vadd.f32 %v4707, %v4779
      %v4781 = vpop.f32.mrb[0].mxu0
      %v4782 = vpop.f32.mrb[0].mxu0
      %v4783 = vadd.f32 %v4710, %v4782
      %v4784 = vpop.f32.mrb[0].mxu0
      %4785 = vmatprep.mubr.bf16.mxu0 %v1964
      %4786 = vmatmul.mubr.bf16.gmra.mrb[0].mxu0 %v1960
      %v4787 = vpop.f32.mrb[0].mxu0
      %v4788 = vadd.f32 %v4715, %v4787
      %v4789 = vpop.f32.mrb[0].mxu0
      %v4790 = vpop.f32.mrb[0].mxu0
      %v4791 = vadd.f32 %v4718, %v4790
      %v4792 = vpop.f32.mrb[0].mxu0
      %4793 = vmatprep.mubr.bf16.mxu0 %v2053
      %4794 = vmatmul.mubr.bf16.gmra.mrb[0].mxu0 %v2049
      %v4795 = vpop.f32.mrb[0].mxu0
      %v4796 = vadd.f32 %v4723, %v4795
      %v4797 = vpop.f32.mrb[0].mxu0
      %v4798 = vpop.f32.mrb[0].mxu0
      %v4799 = vadd.f32 %v4726, %v4798
      %v4800 = vpop.f32.mrb[0].mxu0
      %4801 = vdwg.mxu0
      %4802 = vmatprep.subr.bf16.mxu0 0
      %4803 = vmatpush1.bf16.msra.mxu0 %v3629
      %4804 = vmatprep.subr.bf16.mxu0 0
      %4805 = vmatpush1.bf16.msra.mxu0 %v3630
      %4806 = vmatprep.subr.bf16.mxu0 0
      %4807 = vmatpush1.bf16.msra.mxu0 %v3631
      %4808 = vmatprep.subr.bf16.mxu0 0
      %4809 = vmatpush1.bf16.msra.mxu0 %v3632
      %4810 = vmatprep.subr.bf16.mxu0 0
      %4811 = vmatpush1.bf16.msra.mxu0 %v3633
      %4812 = vmatprep.subr.bf16.mxu0 0
      %4813 = vmatpush1.bf16.msra.mxu0 %v3634
      %4814 = vmatprep.subr.bf16.mxu0 0
      %4815 = vmatpush1.bf16.msra.mxu0 %v3635
      %4816 = vmatprep.subr.bf16.mxu0 0
      %4817 = vmatpush1.bf16.msra.mxu0 %v3636
      %4818 = vmatprep.subr.bf16.mxu0 0
      %4819 = vmatpush1.bf16.msra.mxu0 0
      %4820 = vmatprep.subr.bf16.mxu0 0
      %4821 = vmatpush1.bf16.msra.mxu0 0
      %4822 = vmatprep.subr.bf16.mxu0 0
      %4823 = vmatpush1.bf16.msra.mxu0 0
      %4824 = vmatprep.subr.bf16.mxu0 0
      %4825 = vmatpush1.bf16.msra.mxu0 0
      %4826 = vmatprep.subr.bf16.mxu0 0
      %4827 = vmatpush1.bf16.msra.mxu0 0
      %4828 = vmatprep.subr.bf16.mxu0 0
      %4829 = vmatpush1.bf16.msra.mxu0 0
      %4830 = vmatprep.subr.bf16.mxu0 0
      %4831 = vmatpush1.bf16.msra.mxu0 0
      %4832 = vmatprep.subr.bf16.mxu0 0
      %4833 = vmatpush1.bf16.msra.mxu0 0
      %4834 = vmatprep.mubr.bf16.mxu0 0
      %4835 = vmatmul.mubr.bf16.gmra.mrb[0].mxu0 %v1706
      %v4836 = vpop.f32.mrb[0].mxu0
      %v4837 = vadd.f32 %v4764, %v4836
      %v4838 = vpop.f32.mrb[0].mxu0
      %v4839 = vpop.f32.mrb[0].mxu0
      %v4840 = vadd.f32 %v4767, %v4839
      %v4841 = vpop.f32.mrb[0].mxu0
      %4842 = vmatprep.mubr.bf16.mxu0 0
      %4843 = vmatmul.mubr.bf16.gmra.mrb[0].mxu0 %v1795
      %v4844 = vpop.f32.mrb[0].mxu0
      %v4845 = vadd.f32 %v4772, %v4844
      %v4846 = vpop.f32.mrb[0].mxu0
      %v4847 = vpop.f32.mrb[0].mxu0
      %v4848 = vadd.f32 %v4775, %v4847
      %v4849 = vpop.f32.mrb[0].mxu0
      %4850 = vmatprep.mubr.bf16.mxu0 0
      %4851 = vmatmul.mubr.bf16.gmra.mrb[0].mxu0 %v1884
      %v4852 = vpop.f32.mrb[0].mxu0
      %v4853 = vadd.f32 %v4780, %v4852
      %v4854 = vpop.f32.mrb[0].mxu0
      %v4855 = vpop.f32.mrb[0].mxu0
      %v4856 = vadd.f32 %v4783, %v4855
      %v4857 = vpop.f32.mrb[0].mxu0
      %4858 = vmatprep.mubr.bf16.mxu0 0
      %4859 = vmatmul.mubr.bf16.gmra.mrb[0].mxu0 %v1973
      %v4860 = vpop.f32.mrb[0].mxu0
      %v4861 = vadd.f32 %v4788, %v4860
      %v4862 = vpop.f32.mrb[0].mxu0
      %v4863 = vpop.f32.mrb[0].mxu0
      %v4864 = vadd.f32 %v4791, %v4863
      %v4865 = vpop.f32.mrb[0].mxu0
      %4866 = vmatprep.mubr.bf16.mxu0 0
      %4867 = vmatmul.mubr.bf16.gmra.mrb[0].mxu0 %v2062
      %v4868 = vpop.f32.mrb[0].mxu0
      %v4869 = vadd.f32 %v4796, %v4868
      %v4870 = vpop.f32.mrb[0].mxu0
      %v4871 = vpop.f32.mrb[0].mxu0
      %v4872 = vadd.f32 %v4799, %v4871
      %v4873 = vpop.f32.mrb[0].mxu0
      %4874 = vdwg.mxu0
      %v4875 = vmax.f32 %v4837, 0.0
      %v4876 = vmax.f32 %v4840, 0.0
      %v4877 = vmax.f32 %v4845, 0.0
      %v4878 = vmax.f32 %v4848, 0.0
      %v4879 = vmax.f32 %v4853, 0.0
      %v4880 = vmax.f32 %v4856, 0.0
      %v4881 = vmax.f32 %v4861, 0.0
      %v4882 = vmax.f32 %v4864, 0.0
      %v4883 = vmax.f32 %v4869, 0.0
      %v4884 = vmax.f32 %v4872, 0.0
      %v4885 = vpack.c.bf16 %v4876, %v4875
      %v4886 = vpack.c.bf16 %v4878, %v4877
      %v4887 = vpack.c.bf16 %v4880, %v4879
      %v4888 = vpack.c.bf16 %v4882, %v4881
      %v4889 = vpack.c.bf16 %v4884, %v4883
      %v4890 = vld [vmem:[%s5] sm:$0xf]
      %v4891 = vld [vmem:[%s5 + $0x4] sm:$0xf]
      %v4892 = vld [vmem:[%s5 + $0x8] sm:$0xf]
      %v4893 = vld [vmem:[%s5 + $0xc] sm:$0xf]
      %v4894 = vld [vmem:[%s5 + $0x10] sm:$0xf]
      %v4895 = vld [vmem:[%s5 + $0x14] sm:$0xf]
      %v4896 = vld [vmem:[%s5 + $0x18] sm:$0xf]
      %v4897 = vld [vmem:[%s5 + $0x1c] sm:$0xf]
      %v4898 = vld [vmem:[%s5 + $0x20] sm:$0xf]
      %v4899 = vld [vmem:[%s5 + $0x24] sm:$0xf]
      %v4900 = vld [vmem:[%s5 + $0x28] sm:$0xf]
      %v4901 = vld [vmem:[%s5 + $0x2c] sm:$0xf]
      %v4902 = vld [vmem:[%s5 + $0x30] sm:$0xf]
      %v4903 = vld [vmem:[%s5 + $0x34] sm:$0xf]
      %v4904 = vld [vmem:[%s5 + $0x38] sm:$0xf]
      %v4905 = vld [vmem:[%s5 + $0x3c] sm:$0xf]
      %v4906 = vld [vmem:[%s6] sm:$0x1]
      %v4908 = vlaneseq
      %v4909 = vshrl.u32 %v4908, 7
      %v4910 = vsub.s32 0, %v4909
      %v4911 = vrot.slane %v4906, %v4910
      %v4929 = vunpack.c.l.b16 %v4890
      %v4930 = vunpack.c.l.b16 %v4891
      %v4931 = vunpack.c.l.b16 %v4892
      %v4932 = vunpack.c.l.b16 %v4893
      %v4933 = vunpack.c.l.b16 %v4894
      %v4934 = vunpack.c.l.b16 %v4895
      %v4935 = vunpack.c.l.b16 %v4896
      %v4936 = vunpack.c.l.b16 %v4897
      %v4937 = vunpack.c.l.b16 %v4898
      %v4938 = vunpack.c.l.b16 %v4899
      %v4939 = vunpack.c.l.b16 %v4900
      %v4940 = vunpack.c.l.b16 %v4901
      %v4941 = vunpack.c.l.b16 %v4902
      %v4942 = vunpack.c.l.b16 %v4903
      %v4943 = vunpack.c.l.b16 %v4904
      %v4944 = vunpack.c.l.b16 %v4905
      %v4945 = vpack.c.b16 %v4930, %v4929
      %v4946 = vpack.c.b16 %v4932, %v4931
      %v4947 = vpack.c.b16 %v4934, %v4933
      %v4948 = vpack.c.b16 %v4936, %v4935
      %v4949 = vpack.c.b16 %v4938, %v4937
      %v4950 = vpack.c.b16 %v4940, %v4939
      %v4951 = vpack.c.b16 %v4942, %v4941
      %v4952 = vpack.c.b16 %v4944, %v4943
      %4961 = vmatprep.subr.bf16.mxu0 0
      %4962 = vmatpush1.bf16.msra.mxu0 %v4945
      %4963 = vmatprep.subr.bf16.mxu0 0
      %4964 = vmatpush1.bf16.msra.mxu0 %v4946
      %4965 = vmatprep.subr.bf16.mxu0 0
      %4966 = vmatpush1.bf16.msra.mxu0 %v4947
      %4967 = vmatprep.subr.bf16.mxu0 0
      %4968 = vmatpush1.bf16.msra.mxu0 %v4948
      %4969 = vmatprep.subr.bf16.mxu0 0
      %4970 = vmatpush1.bf16.msra.mxu0 %v4949
      %4971 = vmatprep.subr.bf16.mxu0 0
      %4972 = vmatpush1.bf16.msra.mxu0 %v4950
      %4973 = vmatprep.subr.bf16.mxu0 0
      %4974 = vmatpush1.bf16.msra.mxu0 %v4951
      %4975 = vmatprep.subr.bf16.mxu0 0
      %4976 = vmatpush1.bf16.msra.mxu0 %v4952
      %4977 = vmatprep.subr.bf16.mxu0 0
      %4978 = vmatpush1.bf16.msra.mxu0 0
      %4979 = vmatprep.subr.bf16.mxu0 0
      %4980 = vmatpush1.bf16.msra.mxu0 0
      %4981 = vmatprep.subr.bf16.mxu0 0
      %4982 = vmatpush1.bf16.msra.mxu0 0
      %4983 = vmatprep.subr.bf16.mxu0 0
      %4984 = vmatpush1.bf16.msra.mxu0 0
      %4985 = vmatprep.subr.bf16.mxu0 0
      %4986 = vmatpush1.bf16.msra.mxu0 0
      %4987 = vmatprep.subr.bf16.mxu0 0
      %4988 = vmatpush1.bf16.msra.mxu0 0
      %4989 = vmatprep.subr.bf16.mxu0 0
      %4990 = vmatpush1.bf16.msra.mxu0 0
      %4991 = vmatprep.subr.bf16.mxu0 0
      %4992 = vmatpush1.bf16.msra.mxu0 0
      %4993 = vmatprep.mubr.bf16.mxu0 0
      %4994 = vmatmul.mubr.bf16.gmra.mrb[0].mxu0 %v4885
      %v4995 = vpop.f32.mrb[0].mxu0
      %v4996 = vadd.f32 %v4911, %v4995
      %v4997 = vpop.f32.mrb[0].mxu0
      %v4998 = vpop.f32.mrb[0].mxu0
      %v4999 = vadd.f32 %v4911, %v4998
      %v5000 = vpop.f32.mrb[0].mxu0
      %5001 = vmatprep.mubr.bf16.mxu0 0
      %5002 = vmatmul.mubr.bf16.gmra.mrb[0].mxu0 %v4886
      %v5003 = vpop.f32.mrb[0].mxu0
      %v5004 = vadd.f32 %v4911, %v5003
      %v5005 = vpop.f32.mrb[0].mxu0
      %v5006 = vpop.f32.mrb[0].mxu0
      %v5007 = vadd.f32 %v4911, %v5006
      %v5008 = vpop.f32.mrb[0].mxu0
      %5009 = vmatprep.mubr.bf16.mxu0 0
      %5010 = vmatmul.mubr.bf16.gmra.mrb[0].mxu0 %v4887
      %v5011 = vpop.f32.mrb[0].mxu0
      %v5012 = vadd.f32 %v4911, %v5011
      %v5013 = vpop.f32.mrb[0].mxu0
      %v5014 = vpop.f32.mrb[0].mxu0
      %v5015 = vadd.f32 %v4911, %v5014
      %v5016 = vpop.f32.mrb[0].mxu0
      %5017 = vmatprep.mubr.bf16.mxu0 0
      %5018 = vmatmul.mubr.bf16.gmra.mrb[0].mxu0 %v4888
      %v5019 = vpop.f32.mrb[0].mxu0
      %v5020 = vadd.f32 %v4911, %v5019
      %v5021 = vpop.f32.mrb[0].mxu0
      %v5022 = vpop.f32.mrb[0].mxu0
      %v5023 = vadd.f32 %v4911, %v5022
      %v5024 = vpop.f32.mrb[0].mxu0
      %5025 = vmatprep.mubr.bf16.mxu0 0
      %5026 = vmatmul.mubr.bf16.gmra.mrb[0].mxu0 %v4889
      %v5027 = vpop.f32.mrb[0].mxu0
      %v5028 = vadd.f32 %v4911, %v5027
      %v5029 = vpop.f32.mrb[0].mxu0
      %v5030 = vpop.f32.mrb[0].mxu0
      %v5031 = vadd.f32 %v4911, %v5030
      %v5032 = vpop.f32.mrb[0].mxu0
      %5033 = vdwg.mxu0
      %v5034 = vld [vmem:[%s448] sm:$0xff]
      %v5035 = vld [vmem:[%s448 + $0x8] sm:$0xff]
      %v5036 = vld [vmem:[%s448 + $0x10] sm:$0xff]
      %v5037 = vld [vmem:[%s448 + $0x18] sm:$0xff]
      %v5038 = vld [vmem:[%s448 + $0x20] sm:$0xff]
      %v5039 = vld [vmem:[%s448 + $0x28] sm:$0xff]
      %v5040 = vld [vmem:[%s448 + $0x30] sm:$0xff]
      %v5041 = vld [vmem:[%s448 + $0x38] sm:$0xff]
      %v5042 = vld [vmem:[%s448 + $0x40] sm:$0xff]
      %v5043 = vld [vmem:[%s448 + $0x48] sm:$0xff]
      %v5044 = vadd.f32 %v4996, %v5034
      %v5045 = vadd.f32 %v4999, %v5035
      %v5046 = vadd.f32 %v5004, %v5036
      %v5047 = vadd.f32 %v5007, %v5037
      %v5048 = vadd.f32 %v5012, %v5038
      %v5049 = vadd.f32 %v5015, %v5039
      %v5050 = vadd.f32 %v5020, %v5040
      %v5051 = vadd.f32 %v5023, %v5041
      %v5052 = vadd.f32 %v5028, %v5042
      %v5053 = vadd.f32 %v5031, %v5043
      %v5054 = vmax.f32 %v5044, 0.0
      %v5055 = vmax.f32 %v5045, 0.0
      %v5056 = vmax.f32 %v5046, 0.0
      %v5057 = vmax.f32 %v5047, 0.0
      %v5058 = vmax.f32 %v5048, 0.0
      %v5059 = vmax.f32 %v5049, 0.0
      %v5060 = vmax.f32 %v5050, 0.0
      %v5061 = vmax.f32 %v5051, 0.0
      %v5062 = vmax.f32 %v5052, 0.0
      %v5063 = vmax.f32 %v5053, 0.0
      %5064 = vst [vmem:[%s457] sm:$0xff] %v5054
      %5065 = vst [vmem:[%s457 + $0x8] sm:$0xff] %v5055
      %5066 = vst [vmem:[%s457 + $0x10] sm:$0xff] %v5056
      %5067 = vst [vmem:[%s457 + $0x18] sm:$0xff] %v5057
      %5068 = vst [vmem:[%s457 + $0x20] sm:$0xff] %v5058
      %5069 = vst [vmem:[%s457 + $0x28] sm:$0xff] %v5059
      %5070 = vst [vmem:[%s457 + $0x30] sm:$0xff] %v5060
      %5071 = vst [vmem:[%s457 + $0x38] sm:$0xff] %v5061
      %5072 = vst [vmem:[%s457 + $0x40] sm:$0xff] %v5062
      %5073 = vst [vmem:[%s457 + $0x48] sm:$0xff] %v5063
      %p5074 = scmp.lt.s32.totalorder %s23, 1
      %s5075 = scalar_select %p5074, %s23, 1
      %p5076 = scmp.lt.s32.totalorder %s24, 7
      %s5077 = scalar_select %p5076, %s24, 7
      %s5078 = smul.addr %s5077, 10
      %s5079 = smul.addr %s5075, 80
      %s5080 = sadd.s32 %s5078, %s5079
      %s5081 = smul.addr %s5080, 8
      %s5082 = scalar_lea.vmem %s8, %s5081
      // Predicated region
      $region53: #{bottleneck_forward.3} parent=51 // pred_check
        %p5083 = pneg %p251
      $region54: #{bottleneck_forward.3} parent=51 // pred_check_branch
        %5085 = sbr.rel (%p5083) target = $region56
      $region55: #{bottleneck_forward.3} parent=51 // pred_region
        _
      $region56: #{bottleneck_forward.3} parent=51 // pred_fallthru
        _
    $region52: #{bottleneck_forward.3} parent=5 // pred_fallthru
      _
    %p5086 = scmp.le.s32.totalorder 2, %s14
    // Predicated region
    $region57: #{bottleneck_forward.3} parent=5 // pred_check
      %p5087 = pneg %p5086
    $region58: #{bottleneck_forward.3} parent=5 // pred_check_branch
      %5089 = sbr.rel (%p5087) target = $region60
    $region59: #{bottleneck_forward.3} parent=5 // pred_region
      %s5090 = ssub.s32 %s14, 2
      // Predicated region
      $region61: #{bottleneck_forward.3} parent=59 // pred_check
        %p5091 = pneg %p257
      $region62: #{bottleneck_forward.3} parent=59 // pred_check_branch
        %5093 = sbr.rel (%p5091) target = $region64
      $region63: #{bottleneck_forward.3} parent=59 // pred_region
        %p5094 = scmp.lt.s32.totalorder %s25, 1
        %s5095 = scalar_select %p5094, %s25, 1
        %p5096 = scmp.lt.s32.totalorder %s26, 7
        %s5097 = scalar_select %p5096, %s26, 7
        %s5098 = smul.addr %s5097, 10
        %s5099 = smul.addr %s5095, 80
        %s5100 = sadd.s32 %s5098, %s5099
        %s5101 = smul.addr %s5100, 8
        %s5102 = scalar_lea.vmem %s8, %s5101
      $region64: #{bottleneck_forward.3} parent=59 // pred_fallthru
        _
    $region60: #{bottleneck_forward.3} parent=5 // pred_fallthru
      _
  $region6: #{bottleneck_forward.3} parent=0 // loop_footer
    %s18 = sadd.s32 1, %s14
  $region7: #{bottleneck_forward.3} parent=0 // loop_footer_branch
    %13 = sbr.rel target = $region3
  $region8: #{bottleneck_forward.3} parent=0 // loop_exit
    _

</llo_original>
